<compile_context>
chip_gen: v6e
topology: v6e:2x2x1
jax: 0.10.0
libtpu: 0.0.40
codegen_flags: <defaults>
</compile_context>

<pallas_src>
import functools

import jax
import jax.numpy as jnp
import numpy as np
from jax.experimental import pallas as pl
from jax.experimental.pallas import tpu as pltpu

N_HEADS = 8

KERNEL_PARAM_ORDER = (
    "w_ff1a", "w_ff1b", "w_qkv", "b_qkv", "w_ao",
    "w_pw1", "w_pw2", "w_ff2a", "w_ff2b", "vec_d", "vec_2d",
)

# Row indices inside the packed small-vector refs.
_VD = dict(ln1_g=0, ln1_b=1, b_ff1a=2, b_ff1b=3, b_ao=4, ln2_g=5, ln2_b=6,
           b_pw2=7, ln3_g=8, ln3_b=9, b_ff2a=10, b_ff2b=11)
_V2 = dict(b_pw1=0, dw_prev=1, dw_mid=2, dw_next=3, bn_scale=4, bn_shift=5)


def conformer_kernel(x_ref, w_ff1a, w_ff1b, w_qkv, b_qkv, w_ao,
                     w_pw1, w_pw2, w_ff2a, w_ff2b, vec_d, vec_2d,
                     out_ref, qkv_sc, attn_sc, *, seq_len, block_batch):
    f32, bf16 = jnp.float32, jnp.bfloat16
    Mt, D = x_ref.shape                      # Mt = block_batch * seq_len (flattened rows)
    L, Bt = seq_len, block_batch
    dh = D // N_HEADS

    def vd(name):
        i = _VD[name]
        return vec_d[i:i + 1, :]             # (1, D) f32

    def v2(name):
        i = _V2[name]
        return vec_2d[i:i + 1, :]            # (1, 2D) f32

    def layernorm(y, g, b):
        # One pass over y: sum and sum-of-squares together, var = E[y^2] - mu^2.
        s1 = jnp.sum(y, axis=-1, keepdims=True)
        s2 = jnp.sum(y * y, axis=-1, keepdims=True)
        mu = s1 * (1.0 / D)
        var = s2 * (1.0 / D) - mu * mu
        return (y - mu) * jax.lax.rsqrt(var + 1e-5) * g + b

    def gelu(y):
        # tanh-approximate GELU (cubic on the VPU, tanh on the EUP slot);
        # deviates from PyTorch's exact erf GELU by < 3e-3 absolute.
        c = 0.7978845608028654  # sqrt(2/pi)
        return 0.5 * y * (1.0 + jnp.tanh(c * (y + 0.044715 * y * y * y)))

    def matmul(y, w_ref):
        # bf16 operands on the MXU, f32 accumulation.
        return jnp.dot(y.astype(bf16), w_ref[...], preferred_element_type=f32)

    x = x_ref[...]                           # (Mt, D) f32, Bt samples stacked along rows

    # ---- feed_forward_1 (half-step residual); Dropout = identity ----
    h = layernorm(x, vd("ln1_g"), vd("ln1_b"))
    h = gelu(matmul(h, w_ff1a) + vd("b_ff1a"))
    h = matmul(h, w_ff1b) + vd("b_ff1b")
    x = 0.5 * h + x

    # ---- MHA: chained k/q/v pre-projections + in_proj fused host-side into one
    #      (D, 3D) matmul (1/sqrt(dh) folded into the fused Q weight). The fused
    #      QKV result lives in a VMEM scratch; per-head tiles are sliced from it. ----
    qkv_sc[...] = matmul(x, w_qkv) + b_qkv[...]            # (Mt, 3D) f32

    def attend_one_sample(b, carry):
        r0 = b * L
        if L % 8 == 0:
            r0 = pl.multiple_of(r0, 8)                     # sublane-aligned sample rows
        rows = pl.ds(r0, L)
        # Accumulate the out-projection per head: no head concat, no separate
        # (L, D) @ (D, D) matmul; static lane slices come from the qkv scratch ref.
        acc = jnp.zeros((L, D), f32)
        for hidx in range(N_HEADS):                        # static head loop, static offsets
            lo = hidx * dh
            qh = qkv_sc[rows, lo:lo + dh].astype(bf16)
            kh = qkv_sc[rows, D + lo:D + lo + dh].astype(bf16)
            vh = qkv_sc[rows, 2 * D + lo:2 * D + lo + dh].astype(bf16)
            s = jax.lax.dot_general(qh, kh, (((1,), (1,)), ((), ())),
                                    preferred_element_type=f32)          # (L, L) f32
            # bf16 exp (EUP); row-sum / reciprocal stay f32; normalize the (L, dh)
            # p@v result instead of the (L, L) probabilities.
            p = jnp.exp((s - jnp.max(s, axis=-1, keepdims=True)).astype(bf16))
            denom = jnp.sum(p.astype(f32), axis=-1, keepdims=True)
            o = jnp.dot(p, vh, preferred_element_type=f32)               # (L, dh) f32
            o = o * pl.reciprocal(denom, approx=True)
            acc = acc + jnp.dot(o.astype(bf16), w_ao[lo:lo + dh, :],
                                preferred_element_type=f32)              # += (L, D)
        attn_sc[rows, :] = acc
        return carry

    jax.lax.fori_loop(0, Bt, attend_one_sample, 0)
    x = attn_sc[...] + vd("b_ao") + x

    # ---- post-attention layer norm ----
    x = layernorm(x, vd("ln2_g"), vd("ln2_b"))

    # ---- convolution module (channels-last; PyTorch transposes are implicit) ----
    h = gelu(matmul(x, w_pw1) + v2("b_pw1"))               # pointwise conv D -> 2D
    # Depthwise conv k=3, pad=1 over each sample: sublane rolls (XLU) across the
    # flattened rows + per-sample boundary masks (zero padding at l=0 / l=L-1).
    row = jax.lax.broadcasted_iota(jnp.int32, (Mt, 1), 0)
    is_first = row == 0
    is_last = row == (L - 1)
    for b in range(1, Bt):                                 # Bt is small by construction
        is_first = jnp.logical_or(is_first, row == b * L)
        is_last = jnp.logical_or(is_last, row == b * L + L - 1)
    h_prev = jnp.where(is_first, 0.0, pltpu.roll(h, shift=1, axis=0))       # h[l-1]
    h_next = jnp.where(is_last, 0.0, pltpu.roll(h, shift=Mt - 1, axis=0))   # h[l+1]
    h = h_prev * v2("dw_prev") + h * v2("dw_mid") + h_next * v2("dw_next")
    # BatchNorm1d (eval, running stats) folded host-side into scale/shift.
    h = h * v2("bn_scale") + v2("bn_shift")
    h = gelu(h)
    h = matmul(h, w_pw2) + vd("b_pw2")                     # pointwise conv 2D -> D
    x = h + x

    # ---- feed_forward_2 (half-step residual) ----
    h = layernorm(x, vd("ln3_g"), vd("ln3_b"))
    h = gelu(matmul(h, w_ff2a) + vd("b_ff2a"))
    h = matmul(h, w_ff2b) + vd("b_ff2b")
    x = 0.5 * h + x

    out_ref[...] = x.astype(out_ref.dtype)


def pack_params(P):
    """Host-side weight fusion/packing: fused QKV (+ scale fold), BN fold,
    bf16 matrices, and all small vectors stacked into two refs."""
    f32, bf16 = jnp.float32, jnp.bfloat16
    D = P["w_ff1a"].shape[0]
    dh = D // N_HEADS
    scale = 1.0 / float(np.sqrt(dh))

    # q = (x @ w_k + b_k) @ w_qi + b_qi  (and similarly for k, v) -> one fused matmul.
    wq = (P["w_k"] @ P["w_qi"]) * scale
    bq = (P["b_k"] @ P["w_qi"] + P["b_qi"]) * scale
    wk = P["w_q"] @ P["w_ki"]
    bk = P["b_q"] @ P["w_ki"] + P["b_ki"]
    wv = P["w_v"] @ P["w_vi"]
    bv = P["b_v"] @ P["w_vi"] + P["b_vi"]
    w_qkv = jnp.concatenate([wq, wk, wv], axis=1)                # (D, 3D)
    b_qkv = jnp.concatenate([bq, bk, bv], axis=1).astype(f32)    # (1, 3D)

    bn_scale = P["bn_g"] / jnp.sqrt(P["bn_v"] + 1e-5)
    bn_shift = P["bn_b"] - P["bn_m"] * bn_scale

    vec_d = jnp.concatenate([
        P["ln1_g"], P["ln1_b"], P["b_ff1a"], P["b_ff1b"], P["b_ao"],
        P["ln2_g"], P["ln2_b"], P["b_pw2"],
        P["ln3_g"], P["ln3_b"], P["b_ff2a"], P["b_ff2b"]], axis=0).astype(f32)
    vec_2d = jnp.concatenate([
        P["b_pw1"], P["w_dw"][0:1], P["w_dw"][1:2], P["w_dw"][2:3],
        bn_scale, bn_shift], axis=0).astype(f32)

    return {
        "w_ff1a": P["w_ff1a"].astype(bf16), "w_ff1b": P["w_ff1b"].astype(bf16),
        "w_qkv": w_qkv.astype(bf16), "b_qkv": b_qkv,
        "w_ao": P["w_ao"].astype(bf16),
        "w_pw1": P["w_pw1"].astype(bf16), "w_pw2": P["w_pw2"].astype(bf16),
        "w_ff2a": P["w_ff2a"].astype(bf16), "w_ff2b": P["w_ff2b"].astype(bf16),
        "vec_d": vec_d, "vec_2d": vec_2d,
    }


def _choose_block_batch(B, L):
    """Samples per grid step: enough rows to feed the MXU (~1K), at least 2 grid
    steps when B allows (so v7x's two TensorCores both get work), and sublane
    aligned blocks (Bt*L % 8 == 0)."""
    target_rows = 1024
    cap = max(1, target_rows // max(L, 1))
    if B >= 2:
        cap = min(cap, max(1, B // 2))
    for bt in range(min(cap, B), 0, -1):
        if B % bt == 0 and (bt * L) % 8 == 0:
            return bt
    # No aligned divisor: one grid step over the whole batch (block == full array).
    return B


def _vmem_limit_bytes():
    """VMEM ceiling with headroom below physical capacity (64 MiB/TC on v7x,
    128 MiB on v5e/v6e); never request the entire chip."""
    mib = 1024 * 1024
    cap = 64 * mib
    try:
        cap = int(pltpu.get_tpu_info().vmem_capacity_bytes)
    except Exception:
        pass  # best-effort hardware query; fall back to the v7x floor
    return int(min(max(cap - 16 * mib, 32 * mib), 100 * mib))


def _weight_spec(shape, single_buffer):
    nd = len(shape)
    index_map = lambda i, _nd=nd: (0,) * _nd     # constant across the grid -> resident
    if single_buffer:
        return pl.BlockSpec(shape, index_map, pipeline_mode=pl.Buffered(1))
    return pl.BlockSpec(shape, index_map)


def _build_call(B, L, D, Bt, params, single_buffer_weights):
    Mt = Bt * L
    in_specs = [pl.BlockSpec((Mt, D), lambda i: (i, 0))]
    in_specs += [_weight_spec(p.shape, single_buffer_weights) for p in params]
    out_spec = pl.BlockSpec((Mt, D), lambda i: (i, 0))

    kernel = functools.partial(conformer_kernel, seq_len=L, block_batch=Bt)
    return pl.pallas_call(
        kernel,
        out_shape=jax.ShapeDtypeStruct((B * L, D), jnp.float32),
        grid_spec=pltpu.PrefetchScalarGridSpec(
            num_scalar_prefetch=0,
            grid=(B // Bt,),
            in_specs=in_specs,
            out_specs=out_spec,
            scratch_shapes=[pltpu.VMEM((Mt, 3 * D), jnp.float32),   # fused QKV
                            pltpu.VMEM((Mt, D), jnp.float32)],      # attention output
        ),
        compiler_params=pltpu.CompilerParams(
            dimension_semantics=("parallel",),
            vmem_limit_bytes=_vmem_limit_bytes()),
    )


def conformer_forward(x, params_dict):
    B, L, D = x.shape
    assert D % N_HEADS == 0, "out_features must be divisible by the 8 attention heads"
    Bt = _choose_block_batch(B, L)
    packed = pack_params(params_dict)
    params = [packed[name] for name in KERNEL_PARAM_ORDER]
    x2 = x.reshape(B * L, D).astype(jnp.float32)

    try:
        out = _build_call(B, L, D, Bt, params, single_buffer_weights=True)(x2, *params)
    except (TypeError, ValueError, NotImplementedError, pltpu.LoweringException) as e:
        # Only swallow a missing pipeline_mode / pl.Buffered API (older jax);
        # any other failure is a genuine bug and must surface.
        keywords = ("pipeline_mode", "pipeline mode", "Buffered", "buffer_count",
                    "buffer count")
        if not any(k in str(e) for k in keywords):
            raise
        # TODO(synk): this fallback double-buffers the resident weights (2x VMEM);
        # fine on v5e/v6e, avoid on v7x by upgrading jax.
        out = _build_call(B, L, D, Bt, params, single_buffer_weights=False)(x2, *params)

    return jax.block_until_ready(out).reshape(B, L, D)


def init_params(key, D):
    D2 = 2 * D
    keys = iter(jax.random.split(key, 64))

    def w(shape, scale=0.05):
        return (scale * jax.random.normal(next(keys), shape)).astype(jnp.float32)

    ones = lambda n: jnp.ones((1, n), jnp.float32)
    zeros = lambda n: jnp.zeros((1, n), jnp.float32)

    return {
        # feed_forward_1: LayerNorm, Linear, GELU, Linear  (weights stored as (in, out))
        "ln1_g": ones(D), "ln1_b": zeros(D),
        "w_ff1a": w((D, D)), "b_ff1a": w((1, D)),
        "w_ff1b": w((D, D)), "b_ff1b": w((1, D)),
        # k / q / v pre-projections
        "w_k": w((D, D)), "b_k": w((1, D)),
        "w_q": w((D, D)), "b_q": w((1, D)),
        "w_v": w((D, D)), "b_v": w((1, D)),
        # MultiheadAttention in_proj (split) + out_proj
        "w_qi": w((D, D)), "b_qi": w((1, D)),
        "w_ki": w((D, D)), "b_ki": w((1, D)),
        "w_vi": w((D, D)), "b_vi": w((1, D)),
        "w_ao": w((D, D)), "b_ao": w((1, D)),
        # post-attention LayerNorm
        "ln2_g": ones(D), "ln2_b": zeros(D),
        # conv module: pw conv1 (D->2D), depthwise k=3 (per-channel taps), BN, pw conv2
        "w_pw1": w((D, D2)), "b_pw1": w((1, D2)),
        "w_dw": w((3, D2)),
        "bn_g": ones(D2), "bn_b": zeros(D2), "bn_m": zeros(D2), "bn_v": ones(D2),
        "w_pw2": w((D2, D)), "b_pw2": w((1, D)),
        # feed_forward_2
        "ln3_g": ones(D), "ln3_b": zeros(D),
        "w_ff2a": w((D, D)), "b_ff2a": w((1, D)),
        "w_ff2b": w((D, D)), "b_ff2b": w((1, D)),
    }


def reference_forward(x, P):
    """Pure-JAX f32 reference mirroring the PyTorch module (eval mode)."""
    def layernorm(y, g, b):
        mu = y.mean(-1, keepdims=True)
        var = ((y - mu) ** 2).mean(-1, keepdims=True)
        return (y - mu) / jnp.sqrt(var + 1e-5) * g + b

    def gelu(y):
        return 0.5 * y * (1.0 + jax.scipy.special.erf(y / jnp.sqrt(2.0)))

    def linear(y, w, b):
        return y @ w + b

    B, L, D = x.shape
    dh = D // N_HEADS

    h = layernorm(x, P["ln1_g"], P["ln1_b"])
    h = gelu(linear(h, P["w_ff1a"], P["b_ff1a"]))
    h = linear(h, P["w_ff1b"], P["b_ff1b"])
    x = 0.5 * h + x

    qry = linear(x, P["w_k"], P["b_k"])
    kee = linear(x, P["w_q"], P["b_q"])
    val = linear(x, P["w_v"], P["b_v"])
    q = linear(qry, P["w_qi"], P["b_qi"]).reshape(B, L, N_HEADS, dh)
    k = linear(kee, P["w_ki"], P["b_ki"]).reshape(B, L, N_HEADS, dh)
    v = linear(val, P["w_vi"], P["b_vi"]).reshape(B, L, N_HEADS, dh)
    s = jnp.einsum("blhd,bmhd->bhlm", q, k) / jnp.sqrt(float(dh))
    p = jax.nn.softmax(s, axis=-1)
    o = jnp.einsum("bhlm,bmhd->blhd", p, v).reshape(B, L, D)
    x = linear(o, P["w_ao"], P["b_ao"]) + x

    x = layernorm(x, P["ln2_g"], P["ln2_b"])

    h = gelu(linear(x, P["w_pw1"], P["b_pw1"]))
    hp = jnp.pad(h, ((0, 0), (1, 1), (0, 0)))
    wdw = P["w_dw"]
    h = hp[:, :-2] * wdw[0] + hp[:, 1:-1] * wdw[1] + hp[:, 2:] * wdw[2]
    h = (h - P["bn_m"]) / jnp.sqrt(P["bn_v"] + 1e-5) * P["bn_g"] + P["bn_b"]
    h = gelu(h)
    h = linear(h, P["w_pw2"], P["b_pw2"])
    x = h + x

    h = layernorm(x, P["ln3_g"], P["ln3_b"])
    h = gelu(linear(h, P["w_ff2a"], P["b_ff2a"]))
    h = linear(h, P["w_ff2b"], P["b_ff2b"])
    x = 0.5 * h + x
    return x


if __name__ == "__main__":
    B, L, D = 2, 8, 32  # in_features == out_features (required by the residuals)
    key = jax.random.PRNGKey(0)
    kx, kp = jax.random.split(key)
    x = jax.random.normal(kx, (B, L, D), dtype=jnp.float32)
    params = init_params(kp, D)

    out = conformer_forward(x, params)
    out = jax.block_until_ready(out)

    ref = reference_forward(x, params)
    # bf16 matmuls + bf16 exp + tanh-approx GELU + approx reciprocal vs exact f32 ref.
    np.testing.assert_allclose(np.asarray(out), np.asarray(ref), rtol=2e-2, atol=2e-2)

    print("KERNEL_OK")
</pallas_src>

<mosaic_0001>
module attributes {stable_mosaic.version = 11 : i64} {
  func.func @conformer_kernel(%arg0: i32, %arg1: memref<8x32xf32, #tpu.memory_space<vmem>>, %arg2: memref<32x32xbf16, #tpu.memory_space<vmem>>, %arg3: memref<32x32xbf16, #tpu.memory_space<vmem>>, %arg4: memref<32x96xbf16, #tpu.memory_space<vmem>>, %arg5: memref<1x96xf32, #tpu.memory_space<vmem>>, %arg6: memref<32x32xbf16, #tpu.memory_space<vmem>>, %arg7: memref<32x64xbf16, #tpu.memory_space<vmem>>, %arg8: memref<64x32xbf16, #tpu.memory_space<vmem>>, %arg9: memref<32x32xbf16, #tpu.memory_space<vmem>>, %arg10: memref<32x32xbf16, #tpu.memory_space<vmem>>, %arg11: memref<12x32xf32, #tpu.memory_space<vmem>>, %arg12: memref<6x64xf32, #tpu.memory_space<vmem>>, %arg13: memref<8x32xf32, #tpu.memory_space<vmem>>, %arg14: memref<8x96xf32, #tpu.memory_space<vmem>>, %arg15: memref<8x32xf32, #tpu.memory_space<vmem>>) attributes {dimension_semantics = [#tpu.dimension_semantics<parallel>], iteration_bounds = array<i64: 2>, scalar_prefetch = 0 : i64, scratch_operands = 2 : i64, tpu.core_type = #tpu.core_type<tc>, window_params = [{transform_indices = @transform_0, window_bounds = array<i64: 8, 32>}, {pipeline_mode = #tpu.pipeline_mode<synchronous>, transform_indices = @transform_1, window_bounds = array<i64: 32, 32>}, {pipeline_mode = #tpu.pipeline_mode<synchronous>, transform_indices = @transform_2, window_bounds = array<i64: 32, 32>}, {pipeline_mode = #tpu.pipeline_mode<synchronous>, transform_indices = @transform_3, window_bounds = array<i64: 32, 96>}, {pipeline_mode = #tpu.pipeline_mode<synchronous>, transform_indices = @transform_4, window_bounds = array<i64: 1, 96>}, {pipeline_mode = #tpu.pipeline_mode<synchronous>, transform_indices = @transform_5, window_bounds = array<i64: 32, 32>}, {pipeline_mode = #tpu.pipeline_mode<synchronous>, transform_indices = @transform_6, window_bounds = array<i64: 32, 64>}, {pipeline_mode = #tpu.pipeline_mode<synchronous>, transform_indices = @transform_7, window_bounds = array<i64: 64, 32>}, {pipeline_mode = #tpu.pipeline_mode<synchronous>, transform_indices = @transform_8, window_bounds = array<i64: 32, 32>}, {pipeline_mode = #tpu.pipeline_mode<synchronous>, transform_indices = @transform_9, window_bounds = array<i64: 32, 32>}, {pipeline_mode = #tpu.pipeline_mode<synchronous>, transform_indices = @transform_10, window_bounds = array<i64: 12, 32>}, {pipeline_mode = #tpu.pipeline_mode<synchronous>, transform_indices = @transform_11, window_bounds = array<i64: 6, 64>}, {transform_indices = @transform_12, window_bounds = array<i64: 8, 32>}]} {
    %c0 = arith.constant 0 : index
    %c0_0 = arith.constant 0 : index
    %0 = vector.load %arg1[%c0, %c0_0] : memref<8x32xf32, #tpu.memory_space<vmem>>, vector<8x32xf32>
    %c0_1 = arith.constant 0 : index
    %c0_2 = arith.constant 0 : index
    %1 = vector.load %arg11[%c0_1, %c0_2] : memref<12x32xf32, #tpu.memory_space<vmem>>, vector<1x32xf32>
    %c1 = arith.constant 1 : index
    %c0_3 = arith.constant 0 : index
    %2 = vector.load %arg11[%c1, %c0_3] : memref<12x32xf32, #tpu.memory_space<vmem>>, vector<1x32xf32>
    %cst = arith.constant dense<0.000000e+00> : vector<8xf32>
    %3 = vector.multi_reduction <add>, %0, %cst [1] : vector<8x32xf32> to vector<8xf32>
    %4 = vector.shape_cast %3 : vector<8xf32> to vector<8x1xf32>
    %5 = arith.mulf %0, %0 : vector<8x32xf32>
    %cst_4 = arith.constant dense<0.000000e+00> : vector<8xf32>
    %6 = vector.multi_reduction <add>, %5, %cst_4 [1] : vector<8x32xf32> to vector<8xf32>
    %7 = vector.shape_cast %6 : vector<8xf32> to vector<8x1xf32>
    %cst_5 = arith.constant 3.125000e-02 : f32
    %8 = vector.broadcast %cst_5 : f32 to vector<8x1xf32>
    %9 = arith.mulf %4, %8 : vector<8x1xf32>
    %cst_6 = arith.constant 3.125000e-02 : f32
    %10 = vector.broadcast %cst_6 : f32 to vector<8x1xf32>
    %11 = arith.mulf %7, %10 : vector<8x1xf32>
    %12 = arith.mulf %9, %9 : vector<8x1xf32>
    %13 = arith.subf %11, %12 : vector<8x1xf32>
    %14 = vector.broadcast %9 : vector<8x1xf32> to vector<8x32xf32>
    %15 = arith.subf %0, %14 : vector<8x32xf32>
    %cst_7 = arith.constant 9.99999974E-6 : f32
    %16 = vector.broadcast %cst_7 : f32 to vector<8x1xf32>
    %17 = arith.addf %13, %16 : vector<8x1xf32>
    %18 = math.rsqrt %17 : vector<8x1xf32>
    %19 = vector.broadcast %18 : vector<8x1xf32> to vector<8x32xf32>
    %20 = arith.mulf %15, %19 : vector<8x32xf32>
    %21 = vector.broadcast %1 : vector<1x32xf32> to vector<8x32xf32>
    %22 = arith.mulf %20, %21 : vector<8x32xf32>
    %23 = vector.broadcast %2 : vector<1x32xf32> to vector<8x32xf32>
    %24 = arith.addf %22, %23 : vector<8x32xf32>
    %25 = arith.truncf %24 : vector<8x32xf32> to vector<8x32xbf16>
    %c0_8 = arith.constant 0 : index
    %c0_9 = arith.constant 0 : index
    %26 = vector.load %arg2[%c0_8, %c0_9] : memref<32x32xbf16, #tpu.memory_space<vmem>>, vector<32x32xbf16>
    %cst_10 = arith.constant dense<0.000000e+00> : vector<8x32xf32>
    %27 = tpu.matmul %25, %26, %cst_10 {dimension_numbers = #tpu.dot_dimension_numbers<[1], [0], [0], [1], [0, 0, 1, 1], [], []>} : vector<8x32xbf16>, vector<32x32xbf16>, vector<8x32xf32> -> vector<8x32xf32>
    %c2 = arith.constant 2 : index
    %c0_11 = arith.constant 0 : index
    %28 = vector.load %arg11[%c2, %c0_11] : memref<12x32xf32, #tpu.memory_space<vmem>>, vector<1x32xf32>
    %29 = vector.broadcast %28 : vector<1x32xf32> to vector<8x32xf32>
    %30 = arith.addf %27, %29 : vector<8x32xf32>
    %cst_12 = arith.constant 5.000000e-01 : f32
    %31 = vector.broadcast %cst_12 : f32 to vector<8x32xf32>
    %32 = arith.mulf %31, %30 : vector<8x32xf32>
    %cst_13 = arith.constant 4.471500e-02 : f32
    %33 = vector.broadcast %cst_13 : f32 to vector<8x32xf32>
    %34 = arith.mulf %33, %30 : vector<8x32xf32>
    %35 = arith.mulf %34, %30 : vector<8x32xf32>
    %36 = arith.mulf %35, %30 : vector<8x32xf32>
    %37 = arith.addf %30, %36 : vector<8x32xf32>
    %cst_14 = arith.constant 0.797884583 : f32
    %38 = vector.broadcast %cst_14 : f32 to vector<8x32xf32>
    %39 = arith.mulf %38, %37 : vector<8x32xf32>
    %40 = math.tanh %39 : vector<8x32xf32>
    %cst_15 = arith.constant 1.000000e+00 : f32
    %41 = vector.broadcast %cst_15 : f32 to vector<8x32xf32>
    %42 = arith.addf %41, %40 : vector<8x32xf32>
    %43 = arith.mulf %32, %42 : vector<8x32xf32>
    %44 = arith.truncf %43 : vector<8x32xf32> to vector<8x32xbf16>
    %c0_16 = arith.constant 0 : index
    %c0_17 = arith.constant 0 : index
    %45 = vector.load %arg3[%c0_16, %c0_17] : memref<32x32xbf16, #tpu.memory_space<vmem>>, vector<32x32xbf16>
    %cst_18 = arith.constant dense<0.000000e+00> : vector<8x32xf32>
    %46 = tpu.matmul %44, %45, %cst_18 {dimension_numbers = #tpu.dot_dimension_numbers<[1], [0], [0], [1], [0, 0, 1, 1], [], []>} : vector<8x32xbf16>, vector<32x32xbf16>, vector<8x32xf32> -> vector<8x32xf32>
    %c3 = arith.constant 3 : index
    %c0_19 = arith.constant 0 : index
    %47 = vector.load %arg11[%c3, %c0_19] : memref<12x32xf32, #tpu.memory_space<vmem>>, vector<1x32xf32>
    %48 = vector.broadcast %47 : vector<1x32xf32> to vector<8x32xf32>
    %49 = arith.addf %46, %48 : vector<8x32xf32>
    %cst_20 = arith.constant 5.000000e-01 : f32
    %50 = vector.broadcast %cst_20 : f32 to vector<8x32xf32>
    %51 = arith.mulf %50, %49 : vector<8x32xf32>
    %52 = arith.addf %51, %0 : vector<8x32xf32>
    %53 = arith.truncf %52 : vector<8x32xf32> to vector<8x32xbf16>
    %c0_21 = arith.constant 0 : index
    %c0_22 = arith.constant 0 : index
    %54 = vector.load %arg4[%c0_21, %c0_22] : memref<32x96xbf16, #tpu.memory_space<vmem>>, vector<32x96xbf16>
    %cst_23 = arith.constant dense<0.000000e+00> : vector<8x96xf32>
    %55 = tpu.matmul %53, %54, %cst_23 {dimension_numbers = #tpu.dot_dimension_numbers<[1], [0], [0], [1], [0, 0, 1, 1], [], []>} : vector<8x32xbf16>, vector<32x96xbf16>, vector<8x96xf32> -> vector<8x96xf32>
    %c0_24 = arith.constant 0 : index
    %c0_25 = arith.constant 0 : index
    %56 = vector.load %arg5[%c0_24, %c0_25] : memref<1x96xf32, #tpu.memory_space<vmem>>, vector<1x96xf32>
    %57 = vector.broadcast %56 : vector<1x96xf32> to vector<8x96xf32>
    %58 = arith.addf %55, %57 : vector<8x96xf32>
    %c0_26 = arith.constant 0 : index
    %c0_27 = arith.constant 0 : index
    %59 = vector.load %arg14[%c0_26, %c0_27] : memref<8x96xf32, #tpu.memory_space<vmem>>, vector<8x96xf32>
    tpu.vector_store %arg14[%c0_26, %c0_27], %58 {strides = array<i32>} : memref<8x96xf32, #tpu.memory_space<vmem>>, vector<8x96xf32>,
    %c0_i32 = arith.constant 0 : i32
    %c8_i32 = arith.constant 8 : i32
    %60 = arith.muli %c0_i32, %c8_i32 : i32
    %61 = tpu.assume_multiple %60, 8 : i32
    %cst_28 = arith.constant 0.000000e+00 : f32
    %62 = vector.broadcast %cst_28 : f32 to vector<8x32xf32>
    %63 = arith.index_cast %61 : i32 to index
    %c0_29 = arith.constant 0 : index
    %64 = vector.load %arg14[%63, %c0_29] : memref<8x96xf32, #tpu.memory_space<vmem>>, vector<8x4xf32>
    %65 = arith.truncf %64 : vector<8x4xf32> to vector<8x4xbf16>
    %66 = arith.index_cast %61 : i32 to index
    %c32 = arith.constant 32 : index
    %67 = vector.load %arg14[%66, %c32] : memref<8x96xf32, #tpu.memory_space<vmem>>, vector<8x4xf32>
    %68 = arith.truncf %67 : vector<8x4xf32> to vector<8x4xbf16>
    %69 = arith.index_cast %61 : i32 to index
    %c64 = arith.constant 64 : index
    %70 = vector.load %arg14[%69, %c64] : memref<8x96xf32, #tpu.memory_space<vmem>>, vector<8x4xf32>
    %71 = arith.truncf %70 : vector<8x4xf32> to vector<8x4xbf16>
    %cst_30 = arith.constant dense<0.000000e+00> : vector<8x8xf32>
    %72 = tpu.matmul %65, %68, %cst_30 {dimension_numbers = #tpu.dot_dimension_numbers<[1], [1], [0], [0], [0, 0, 1, 0], [], []>} : vector<8x4xbf16>, vector<8x4xbf16>, vector<8x8xf32> -> vector<8x8xf32>
    %cst_31 = arith.constant dense<0xFF800000> : vector<8xf32>
    %73 = vector.multi_reduction <maximumf>, %72, %cst_31 [1] : vector<8x8xf32> to vector<8xf32>
    %74 = vector.shape_cast %73 : vector<8xf32> to vector<8x1xf32>
    %75 = vector.broadcast %74 : vector<8x1xf32> to vector<8x8xf32>
    %76 = arith.subf %72, %75 : vector<8x8xf32>
    %77 = arith.truncf %76 : vector<8x8xf32> to vector<8x8xbf16>
    %78 = math.exp %77 : vector<8x8xbf16>
    %79 = arith.extf %78 : vector<8x8xbf16> to vector<8x8xf32>
    %cst_32 = arith.constant dense<0.000000e+00> : vector<8xf32>
    %80 = vector.multi_reduction <add>, %79, %cst_32 [1] : vector<8x8xf32> to vector<8xf32>
    %81 = vector.shape_cast %80 : vector<8xf32> to vector<8x1xf32>
    %cst_33 = arith.constant dense<0.000000e+00> : vector<8x4xf32>
    %82 = tpu.matmul %78, %71, %cst_33 {dimension_numbers = #tpu.dot_dimension_numbers<[1], [0], [0], [1], [0, 0, 1, 1], [], []>} : vector<8x8xbf16>, vector<8x4xbf16>, vector<8x4xf32> -> vector<8x4xf32>
    %83 = tpu.reciprocal %81 {approx = true} : vector<8x1xf32> -> vector<8x1xf32>
    %84 = vector.broadcast %83 : vector<8x1xf32> to vector<8x4xf32>
    %85 = arith.mulf %82, %84 : vector<8x4xf32>
    %86 = arith.truncf %85 : vector<8x4xf32> to vector<8x4xbf16>
    %c0_34 = arith.constant 0 : index
    %c0_35 = arith.constant 0 : index
    %87 = vector.load %arg6[%c0_34, %c0_35] : memref<32x32xbf16, #tpu.memory_space<vmem>>, vector<4x32xbf16>
    %cst_36 = arith.constant dense<0.000000e+00> : vector<8x32xf32>
    %88 = tpu.matmul %86, %87, %cst_36 {dimension_numbers = #tpu.dot_dimension_numbers<[1], [0], [0], [1], [0, 0, 1, 1], [], []>} : vector<8x4xbf16>, vector<4x32xbf16>, vector<8x32xf32> -> vector<8x32xf32>
    %89 = arith.addf %62, %88 : vector<8x32xf32>
    %90 = arith.index_cast %61 : i32 to index
    %c4 = arith.constant 4 : index
    %91 = vector.load %arg14[%90, %c4] : memref<8x96xf32, #tpu.memory_space<vmem>>, vector<8x4xf32>
    %92 = arith.truncf %91 : vector<8x4xf32> to vector<8x4xbf16>
    %93 = arith.index_cast %61 : i32 to index
    %c36 = arith.constant 36 : index
    %94 = vector.load %arg14[%93, %c36] : memref<8x96xf32, #tpu.memory_space<vmem>>, vector<8x4xf32>
    %95 = arith.truncf %94 : vector<8x4xf32> to vector<8x4xbf16>
    %96 = arith.index_cast %61 : i32 to index
    %c68 = arith.constant 68 : index
    %97 = vector.load %arg14[%96, %c68] : memref<8x96xf32, #tpu.memory_space<vmem>>, vector<8x4xf32>
    %98 = arith.truncf %97 : vector<8x4xf32> to vector<8x4xbf16>
    %cst_37 = arith.constant dense<0.000000e+00> : vector<8x8xf32>
    %99 = tpu.matmul %92, %95, %cst_37 {dimension_numbers = #tpu.dot_dimension_numbers<[1], [1], [0], [0], [0, 0, 1, 0], [], []>} : vector<8x4xbf16>, vector<8x4xbf16>, vector<8x8xf32> -> vector<8x8xf32>
    %cst_38 = arith.constant dense<0xFF800000> : vector<8xf32>
    %100 = vector.multi_reduction <maximumf>, %99, %cst_38 [1] : vector<8x8xf32> to vector<8xf32>
    %101 = vector.shape_cast %100 : vector<8xf32> to vector<8x1xf32>
    %102 = vector.broadcast %101 : vector<8x1xf32> to vector<8x8xf32>
    %103 = arith.subf %99, %102 : vector<8x8xf32>
    %104 = arith.truncf %103 : vector<8x8xf32> to vector<8x8xbf16>
    %105 = math.exp %104 : vector<8x8xbf16>
    %106 = arith.extf %105 : vector<8x8xbf16> to vector<8x8xf32>
    %cst_39 = arith.constant dense<0.000000e+00> : vector<8xf32>
    %107 = vector.multi_reduction <add>, %106, %cst_39 [1] : vector<8x8xf32> to vector<8xf32>
    %108 = vector.shape_cast %107 : vector<8xf32> to vector<8x1xf32>
    %cst_40 = arith.constant dense<0.000000e+00> : vector<8x4xf32>
    %109 = tpu.matmul %105, %98, %cst_40 {dimension_numbers = #tpu.dot_dimension_numbers<[1], [0], [0], [1], [0, 0, 1, 1], [], []>} : vector<8x8xbf16>, vector<8x4xbf16>, vector<8x4xf32> -> vector<8x4xf32>
    %110 = tpu.reciprocal %108 {approx = true} : vector<8x1xf32> -> vector<8x1xf32>
    %111 = vector.broadcast %110 : vector<8x1xf32> to vector<8x4xf32>
    %112 = arith.mulf %109, %111 : vector<8x4xf32>
    %113 = arith.truncf %112 : vector<8x4xf32> to vector<8x4xbf16>
    %c4_41 = arith.constant 4 : index
    %c0_42 = arith.constant 0 : index
    %114 = vector.load %arg6[%c4_41, %c0_42] : memref<32x32xbf16, #tpu.memory_space<vmem>>, vector<4x32xbf16>
    %cst_43 = arith.constant dense<0.000000e+00> : vector<8x32xf32>
    %115 = tpu.matmul %113, %114, %cst_43 {dimension_numbers = #tpu.dot_dimension_numbers<[1], [0], [0], [1], [0, 0, 1, 1], [], []>} : vector<8x4xbf16>, vector<4x32xbf16>, vector<8x32xf32> -> vector<8x32xf32>
    %116 = arith.addf %89, %115 : vector<8x32xf32>
    %117 = arith.index_cast %61 : i32 to index
    %c8 = arith.constant 8 : index
    %118 = vector.load %arg14[%117, %c8] : memref<8x96xf32, #tpu.memory_space<vmem>>, vector<8x4xf32>
    %119 = arith.truncf %118 : vector<8x4xf32> to vector<8x4xbf16>
    %120 = arith.index_cast %61 : i32 to index
    %c40 = arith.constant 40 : index
    %121 = vector.load %arg14[%120, %c40] : memref<8x96xf32, #tpu.memory_space<vmem>>, vector<8x4xf32>
    %122 = arith.truncf %121 : vector<8x4xf32> to vector<8x4xbf16>
    %123 = arith.index_cast %61 : i32 to index
    %c72 = arith.constant 72 : index
    %124 = vector.load %arg14[%123, %c72] : memref<8x96xf32, #tpu.memory_space<vmem>>, vector<8x4xf32>
    %125 = arith.truncf %124 : vector<8x4xf32> to vector<8x4xbf16>
    %cst_44 = arith.constant dense<0.000000e+00> : vector<8x8xf32>
    %126 = tpu.matmul %119, %122, %cst_44 {dimension_numbers = #tpu.dot_dimension_numbers<[1], [1], [0], [0], [0, 0, 1, 0], [], []>} : vector<8x4xbf16>, vector<8x4xbf16>, vector<8x8xf32> -> vector<8x8xf32>
    %cst_45 = arith.constant dense<0xFF800000> : vector<8xf32>
    %127 = vector.multi_reduction <maximumf>, %126, %cst_45 [1] : vector<8x8xf32> to vector<8xf32>
    %128 = vector.shape_cast %127 : vector<8xf32> to vector<8x1xf32>
    %129 = vector.broadcast %128 : vector<8x1xf32> to vector<8x8xf32>
    %130 = arith.subf %126, %129 : vector<8x8xf32>
    %131 = arith.truncf %130 : vector<8x8xf32> to vector<8x8xbf16>
    %132 = math.exp %131 : vector<8x8xbf16>
    %133 = arith.extf %132 : vector<8x8xbf16> to vector<8x8xf32>
    %cst_46 = arith.constant dense<0.000000e+00> : vector<8xf32>
    %134 = vector.multi_reduction <add>, %133, %cst_46 [1] : vector<8x8xf32> to vector<8xf32>
    %135 = vector.shape_cast %134 : vector<8xf32> to vector<8x1xf32>
    %cst_47 = arith.constant dense<0.000000e+00> : vector<8x4xf32>
    %136 = tpu.matmul %132, %125, %cst_47 {dimension_numbers = #tpu.dot_dimension_numbers<[1], [0], [0], [1], [0, 0, 1, 1], [], []>} : vector<8x8xbf16>, vector<8x4xbf16>, vector<8x4xf32> -> vector<8x4xf32>
    %137 = tpu.reciprocal %135 {approx = true} : vector<8x1xf32> -> vector<8x1xf32>
    %138 = vector.broadcast %137 : vector<8x1xf32> to vector<8x4xf32>
    %139 = arith.mulf %136, %138 : vector<8x4xf32>
    %140 = arith.truncf %139 : vector<8x4xf32> to vector<8x4xbf16>
    %c8_48 = arith.constant 8 : index
    %c0_49 = arith.constant 0 : index
    %141 = vector.load %arg6[%c8_48, %c0_49] : memref<32x32xbf16, #tpu.memory_space<vmem>>, vector<4x32xbf16>
    %cst_50 = arith.constant dense<0.000000e+00> : vector<8x32xf32>
    %142 = tpu.matmul %140, %141, %cst_50 {dimension_numbers = #tpu.dot_dimension_numbers<[1], [0], [0], [1], [0, 0, 1, 1], [], []>} : vector<8x4xbf16>, vector<4x32xbf16>, vector<8x32xf32> -> vector<8x32xf32>
    %143 = arith.addf %116, %142 : vector<8x32xf32>
    %144 = arith.index_cast %61 : i32 to index
    %c12 = arith.constant 12 : index
    %145 = vector.load %arg14[%144, %c12] : memref<8x96xf32, #tpu.memory_space<vmem>>, vector<8x4xf32>
    %146 = arith.truncf %145 : vector<8x4xf32> to vector<8x4xbf16>
    %147 = arith.index_cast %61 : i32 to index
    %c44 = arith.constant 44 : index
    %148 = vector.load %arg14[%147, %c44] : memref<8x96xf32, #tpu.memory_space<vmem>>, vector<8x4xf32>
    %149 = arith.truncf %148 : vector<8x4xf32> to vector<8x4xbf16>
    %150 = arith.index_cast %61 : i32 to index
    %c76 = arith.constant 76 : index
    %151 = vector.load %arg14[%150, %c76] : memref<8x96xf32, #tpu.memory_space<vmem>>, vector<8x4xf32>
    %152 = arith.truncf %151 : vector<8x4xf32> to vector<8x4xbf16>
    %cst_51 = arith.constant dense<0.000000e+00> : vector<8x8xf32>
    %153 = tpu.matmul %146, %149, %cst_51 {dimension_numbers = #tpu.dot_dimension_numbers<[1], [1], [0], [0], [0, 0, 1, 0], [], []>} : vector<8x4xbf16>, vector<8x4xbf16>, vector<8x8xf32> -> vector<8x8xf32>
    %cst_52 = arith.constant dense<0xFF800000> : vector<8xf32>
    %154 = vector.multi_reduction <maximumf>, %153, %cst_52 [1] : vector<8x8xf32> to vector<8xf32>
    %155 = vector.shape_cast %154 : vector<8xf32> to vector<8x1xf32>
    %156 = vector.broadcast %155 : vector<8x1xf32> to vector<8x8xf32>
    %157 = arith.subf %153, %156 : vector<8x8xf32>
    %158 = arith.truncf %157 : vector<8x8xf32> to vector<8x8xbf16>
    %159 = math.exp %158 : vector<8x8xbf16>
    %160 = arith.extf %159 : vector<8x8xbf16> to vector<8x8xf32>
    %cst_53 = arith.constant dense<0.000000e+00> : vector<8xf32>
    %161 = vector.multi_reduction <add>, %160, %cst_53 [1] : vector<8x8xf32> to vector<8xf32>
    %162 = vector.shape_cast %161 : vector<8xf32> to vector<8x1xf32>
    %cst_54 = arith.constant dense<0.000000e+00> : vector<8x4xf32>
    %163 = tpu.matmul %159, %152, %cst_54 {dimension_numbers = #tpu.dot_dimension_numbers<[1], [0], [0], [1], [0, 0, 1, 1], [], []>} : vector<8x8xbf16>, vector<8x4xbf16>, vector<8x4xf32> -> vector<8x4xf32>
    %164 = tpu.reciprocal %162 {approx = true} : vector<8x1xf32> -> vector<8x1xf32>
    %165 = vector.broadcast %164 : vector<8x1xf32> to vector<8x4xf32>
    %166 = arith.mulf %163, %165 : vector<8x4xf32>
    %167 = arith.truncf %166 : vector<8x4xf32> to vector<8x4xbf16>
    %c12_55 = arith.constant 12 : index
    %c0_56 = arith.constant 0 : index
    %168 = vector.load %arg6[%c12_55, %c0_56] : memref<32x32xbf16, #tpu.memory_space<vmem>>, vector<4x32xbf16>
    %cst_57 = arith.constant dense<0.000000e+00> : vector<8x32xf32>
    %169 = tpu.matmul %167, %168, %cst_57 {dimension_numbers = #tpu.dot_dimension_numbers<[1], [0], [0], [1], [0, 0, 1, 1], [], []>} : vector<8x4xbf16>, vector<4x32xbf16>, vector<8x32xf32> -> vector<8x32xf32>
    %170 = arith.addf %143, %169 : vector<8x32xf32>
    %171 = arith.index_cast %61 : i32 to index
    %c16 = arith.constant 16 : index
    %172 = vector.load %arg14[%171, %c16] : memref<8x96xf32, #tpu.memory_space<vmem>>, vector<8x4xf32>
    %173 = arith.truncf %172 : vector<8x4xf32> to vector<8x4xbf16>
    %174 = arith.index_cast %61 : i32 to index
    %c48 = arith.constant 48 : index
    %175 = vector.load %arg14[%174, %c48] : memref<8x96xf32, #tpu.memory_space<vmem>>, vector<8x4xf32>
    %176 = arith.truncf %175 : vector<8x4xf32> to vector<8x4xbf16>
    %177 = arith.index_cast %61 : i32 to index
    %c80 = arith.constant 80 : index
    %178 = vector.load %arg14[%177, %c80] : memref<8x96xf32, #tpu.memory_space<vmem>>, vector<8x4xf32>
    %179 = arith.truncf %178 : vector<8x4xf32> to vector<8x4xbf16>
    %cst_58 = arith.constant dense<0.000000e+00> : vector<8x8xf32>
    %180 = tpu.matmul %173, %176, %cst_58 {dimension_numbers = #tpu.dot_dimension_numbers<[1], [1], [0], [0], [0, 0, 1, 0], [], []>} : vector<8x4xbf16>, vector<8x4xbf16>, vector<8x8xf32> -> vector<8x8xf32>
    %cst_59 = arith.constant dense<0xFF800000> : vector<8xf32>
    %181 = vector.multi_reduction <maximumf>, %180, %cst_59 [1] : vector<8x8xf32> to vector<8xf32>
    %182 = vector.shape_cast %181 : vector<8xf32> to vector<8x1xf32>
    %183 = vector.broadcast %182 : vector<8x1xf32> to vector<8x8xf32>
    %184 = arith.subf %180, %183 : vector<8x8xf32>
    %185 = arith.truncf %184 : vector<8x8xf32> to vector<8x8xbf16>
    %186 = math.exp %185 : vector<8x8xbf16>
    %187 = arith.extf %186 : vector<8x8xbf16> to vector<8x8xf32>
    %cst_60 = arith.constant dense<0.000000e+00> : vector<8xf32>
    %188 = vector.multi_reduction <add>, %187, %cst_60 [1] : vector<8x8xf32> to vector<8xf32>
    %189 = vector.shape_cast %188 : vector<8xf32> to vector<8x1xf32>
    %cst_61 = arith.constant dense<0.000000e+00> : vector<8x4xf32>
    %190 = tpu.matmul %186, %179, %cst_61 {dimension_numbers = #tpu.dot_dimension_numbers<[1], [0], [0], [1], [0, 0, 1, 1], [], []>} : vector<8x8xbf16>, vector<8x4xbf16>, vector<8x4xf32> -> vector<8x4xf32>
    %191 = tpu.reciprocal %189 {approx = true} : vector<8x1xf32> -> vector<8x1xf32>
    %192 = vector.broadcast %191 : vector<8x1xf32> to vector<8x4xf32>
    %193 = arith.mulf %190, %192 : vector<8x4xf32>
    %194 = arith.truncf %193 : vector<8x4xf32> to vector<8x4xbf16>
    %c16_62 = arith.constant 16 : index
    %c0_63 = arith.constant 0 : index
    %195 = vector.load %arg6[%c16_62, %c0_63] : memref<32x32xbf16, #tpu.memory_space<vmem>>, vector<4x32xbf16>
    %cst_64 = arith.constant dense<0.000000e+00> : vector<8x32xf32>
    %196 = tpu.matmul %194, %195, %cst_64 {dimension_numbers = #tpu.dot_dimension_numbers<[1], [0], [0], [1], [0, 0, 1, 1], [], []>} : vector<8x4xbf16>, vector<4x32xbf16>, vector<8x32xf32> -> vector<8x32xf32>
    %197 = arith.addf %170, %196 : vector<8x32xf32>
    %198 = arith.index_cast %61 : i32 to index
    %c20 = arith.constant 20 : index
    %199 = vector.load %arg14[%198, %c20] : memref<8x96xf32, #tpu.memory_space<vmem>>, vector<8x4xf32>
    %200 = arith.truncf %199 : vector<8x4xf32> to vector<8x4xbf16>
    %201 = arith.index_cast %61 : i32 to index
    %c52 = arith.constant 52 : index
    %202 = vector.load %arg14[%201, %c52] : memref<8x96xf32, #tpu.memory_space<vmem>>, vector<8x4xf32>
    %203 = arith.truncf %202 : vector<8x4xf32> to vector<8x4xbf16>
    %204 = arith.index_cast %61 : i32 to index
    %c84 = arith.constant 84 : index
    %205 = vector.load %arg14[%204, %c84] : memref<8x96xf32, #tpu.memory_space<vmem>>, vector<8x4xf32>
    %206 = arith.truncf %205 : vector<8x4xf32> to vector<8x4xbf16>
    %cst_65 = arith.constant dense<0.000000e+00> : vector<8x8xf32>
    %207 = tpu.matmul %200, %203, %cst_65 {dimension_numbers = #tpu.dot_dimension_numbers<[1], [1], [0], [0], [0, 0, 1, 0], [], []>} : vector<8x4xbf16>, vector<8x4xbf16>, vector<8x8xf32> -> vector<8x8xf32>
    %cst_66 = arith.constant dense<0xFF800000> : vector<8xf32>
    %208 = vector.multi_reduction <maximumf>, %207, %cst_66 [1] : vector<8x8xf32> to vector<8xf32>
    %209 = vector.shape_cast %208 : vector<8xf32> to vector<8x1xf32>
    %210 = vector.broadcast %209 : vector<8x1xf32> to vector<8x8xf32>
    %211 = arith.subf %207, %210 : vector<8x8xf32>
    %212 = arith.truncf %211 : vector<8x8xf32> to vector<8x8xbf16>
    %213 = math.exp %212 : vector<8x8xbf16>
    %214 = arith.extf %213 : vector<8x8xbf16> to vector<8x8xf32>
    %cst_67 = arith.constant dense<0.000000e+00> : vector<8xf32>
    %215 = vector.multi_reduction <add>, %214, %cst_67 [1] : vector<8x8xf32> to vector<8xf32>
    %216 = vector.shape_cast %215 : vector<8xf32> to vector<8x1xf32>
    %cst_68 = arith.constant dense<0.000000e+00> : vector<8x4xf32>
    %217 = tpu.matmul %213, %206, %cst_68 {dimension_numbers = #tpu.dot_dimension_numbers<[1], [0], [0], [1], [0, 0, 1, 1], [], []>} : vector<8x8xbf16>, vector<8x4xbf16>, vector<8x4xf32> -> vector<8x4xf32>
    %218 = tpu.reciprocal %216 {approx = true} : vector<8x1xf32> -> vector<8x1xf32>
    %219 = vector.broadcast %218 : vector<8x1xf32> to vector<8x4xf32>
    %220 = arith.mulf %217, %219 : vector<8x4xf32>
    %221 = arith.truncf %220 : vector<8x4xf32> to vector<8x4xbf16>
    %c20_69 = arith.constant 20 : index
    %c0_70 = arith.constant 0 : index
    %222 = vector.load %arg6[%c20_69, %c0_70] : memref<32x32xbf16, #tpu.memory_space<vmem>>, vector<4x32xbf16>
    %cst_71 = arith.constant dense<0.000000e+00> : vector<8x32xf32>
    %223 = tpu.matmul %221, %222, %cst_71 {dimension_numbers = #tpu.dot_dimension_numbers<[1], [0], [0], [1], [0, 0, 1, 1], [], []>} : vector<8x4xbf16>, vector<4x32xbf16>, vector<8x32xf32> -> vector<8x32xf32>
    %224 = arith.addf %197, %223 : vector<8x32xf32>
    %225 = arith.index_cast %61 : i32 to index
    %c24 = arith.constant 24 : index
    %226 = vector.load %arg14[%225, %c24] : memref<8x96xf32, #tpu.memory_space<vmem>>, vector<8x4xf32>
    %227 = arith.truncf %226 : vector<8x4xf32> to vector<8x4xbf16>
    %228 = arith.index_cast %61 : i32 to index
    %c56 = arith.constant 56 : index
    %229 = vector.load %arg14[%228, %c56] : memref<8x96xf32, #tpu.memory_space<vmem>>, vector<8x4xf32>
    %230 = arith.truncf %229 : vector<8x4xf32> to vector<8x4xbf16>
    %231 = arith.index_cast %61 : i32 to index
    %c88 = arith.constant 88 : index
    %232 = vector.load %arg14[%231, %c88] : memref<8x96xf32, #tpu.memory_space<vmem>>, vector<8x4xf32>
    %233 = arith.truncf %232 : vector<8x4xf32> to vector<8x4xbf16>
    %cst_72 = arith.constant dense<0.000000e+00> : vector<8x8xf32>
    %234 = tpu.matmul %227, %230, %cst_72 {dimension_numbers = #tpu.dot_dimension_numbers<[1], [1], [0], [0], [0, 0, 1, 0], [], []>} : vector<8x4xbf16>, vector<8x4xbf16>, vector<8x8xf32> -> vector<8x8xf32>
    %cst_73 = arith.constant dense<0xFF800000> : vector<8xf32>
    %235 = vector.multi_reduction <maximumf>, %234, %cst_73 [1] : vector<8x8xf32> to vector<8xf32>
    %236 = vector.shape_cast %235 : vector<8xf32> to vector<8x1xf32>
    %237 = vector.broadcast %236 : vector<8x1xf32> to vector<8x8xf32>
    %238 = arith.subf %234, %237 : vector<8x8xf32>
    %239 = arith.truncf %238 : vector<8x8xf32> to vector<8x8xbf16>
    %240 = math.exp %239 : vector<8x8xbf16>
    %241 = arith.extf %240 : vector<8x8xbf16> to vector<8x8xf32>
    %cst_74 = arith.constant dense<0.000000e+00> : vector<8xf32>
    %242 = vector.multi_reduction <add>, %241, %cst_74 [1] : vector<8x8xf32> to vector<8xf32>
    %243 = vector.shape_cast %242 : vector<8xf32> to vector<8x1xf32>
    %cst_75 = arith.constant dense<0.000000e+00> : vector<8x4xf32>
    %244 = tpu.matmul %240, %233, %cst_75 {dimension_numbers = #tpu.dot_dimension_numbers<[1], [0], [0], [1], [0, 0, 1, 1], [], []>} : vector<8x8xbf16>, vector<8x4xbf16>, vector<8x4xf32> -> vector<8x4xf32>
    %245 = tpu.reciprocal %243 {approx = true} : vector<8x1xf32> -> vector<8x1xf32>
    %246 = vector.broadcast %245 : vector<8x1xf32> to vector<8x4xf32>
    %247 = arith.mulf %244, %246 : vector<8x4xf32>
    %248 = arith.truncf %247 : vector<8x4xf32> to vector<8x4xbf16>
    %c24_76 = arith.constant 24 : index
    %c0_77 = arith.constant 0 : index
    %249 = vector.load %arg6[%c24_76, %c0_77] : memref<32x32xbf16, #tpu.memory_space<vmem>>, vector<4x32xbf16>
    %cst_78 = arith.constant dense<0.000000e+00> : vector<8x32xf32>
    %250 = tpu.matmul %248, %249, %cst_78 {dimension_numbers = #tpu.dot_dimension_numbers<[1], [0], [0], [1], [0, 0, 1, 1], [], []>} : vector<8x4xbf16>, vector<4x32xbf16>, vector<8x32xf32> -> vector<8x32xf32>
    %251 = arith.addf %224, %250 : vector<8x32xf32>
    %252 = arith.index_cast %61 : i32 to index
    %c28 = arith.constant 28 : index
    %253 = vector.load %arg14[%252, %c28] : memref<8x96xf32, #tpu.memory_space<vmem>>, vector<8x4xf32>
    %254 = arith.truncf %253 : vector<8x4xf32> to vector<8x4xbf16>
    %255 = arith.index_cast %61 : i32 to index
    %c60 = arith.constant 60 : index
    %256 = vector.load %arg14[%255, %c60] : memref<8x96xf32, #tpu.memory_space<vmem>>, vector<8x4xf32>
    %257 = arith.truncf %256 : vector<8x4xf32> to vector<8x4xbf16>
    %258 = arith.index_cast %61 : i32 to index
    %c92 = arith.constant 92 : index
    %259 = vector.load %arg14[%258, %c92] : memref<8x96xf32, #tpu.memory_space<vmem>>, vector<8x4xf32>
    %260 = arith.truncf %259 : vector<8x4xf32> to vector<8x4xbf16>
    %cst_79 = arith.constant dense<0.000000e+00> : vector<8x8xf32>
    %261 = tpu.matmul %254, %257, %cst_79 {dimension_numbers = #tpu.dot_dimension_numbers<[1], [1], [0], [0], [0, 0, 1, 0], [], []>} : vector<8x4xbf16>, vector<8x4xbf16>, vector<8x8xf32> -> vector<8x8xf32>
    %cst_80 = arith.constant dense<0xFF800000> : vector<8xf32>
    %262 = vector.multi_reduction <maximumf>, %261, %cst_80 [1] : vector<8x8xf32> to vector<8xf32>
    %263 = vector.shape_cast %262 : vector<8xf32> to vector<8x1xf32>
    %264 = vector.broadcast %263 : vector<8x1xf32> to vector<8x8xf32>
    %265 = arith.subf %261, %264 : vector<8x8xf32>
    %266 = arith.truncf %265 : vector<8x8xf32> to vector<8x8xbf16>
    %267 = math.exp %266 : vector<8x8xbf16>
    %268 = arith.extf %267 : vector<8x8xbf16> to vector<8x8xf32>
    %cst_81 = arith.constant dense<0.000000e+00> : vector<8xf32>
    %269 = vector.multi_reduction <add>, %268, %cst_81 [1] : vector<8x8xf32> to vector<8xf32>
    %270 = vector.shape_cast %269 : vector<8xf32> to vector<8x1xf32>
    %cst_82 = arith.constant dense<0.000000e+00> : vector<8x4xf32>
    %271 = tpu.matmul %267, %260, %cst_82 {dimension_numbers = #tpu.dot_dimension_numbers<[1], [0], [0], [1], [0, 0, 1, 1], [], []>} : vector<8x8xbf16>, vector<8x4xbf16>, vector<8x4xf32> -> vector<8x4xf32>
    %272 = tpu.reciprocal %270 {approx = true} : vector<8x1xf32> -> vector<8x1xf32>
    %273 = vector.broadcast %272 : vector<8x1xf32> to vector<8x4xf32>
    %274 = arith.mulf %271, %273 : vector<8x4xf32>
    %275 = arith.truncf %274 : vector<8x4xf32> to vector<8x4xbf16>
    %c28_83 = arith.constant 28 : index
    %c0_84 = arith.constant 0 : index
    %276 = vector.load %arg6[%c28_83, %c0_84] : memref<32x32xbf16, #tpu.memory_space<vmem>>, vector<4x32xbf16>
    %cst_85 = arith.constant dense<0.000000e+00> : vector<8x32xf32>
    %277 = tpu.matmul %275, %276, %cst_85 {dimension_numbers = #tpu.dot_dimension_numbers<[1], [0], [0], [1], [0, 0, 1, 1], [], []>} : vector<8x4xbf16>, vector<4x32xbf16>, vector<8x32xf32> -> vector<8x32xf32>
    %278 = arith.addf %251, %277 : vector<8x32xf32>
    %279 = arith.index_cast %61 : i32 to index
    %c0_86 = arith.constant 0 : index
    %280 = vector.load %arg15[%279, %c0_86] : memref<8x32xf32, #tpu.memory_space<vmem>>, vector<8x32xf32>
    tpu.vector_store %arg15[%279, %c0_86], %278 {strides = array<i32>} : memref<8x32xf32, #tpu.memory_space<vmem>>, vector<8x32xf32>,
    %c1_i32 = arith.constant 1 : i32
    %c0_87 = arith.constant 0 : index
    %c0_88 = arith.constant 0 : index
    %281 = vector.load %arg15[%c0_87, %c0_88] : memref<8x32xf32, #tpu.memory_space<vmem>>, vector<8x32xf32>
    %c4_89 = arith.constant 4 : index
    %c0_90 = arith.constant 0 : index
    %282 = vector.load %arg11[%c4_89, %c0_90] : memref<12x32xf32, #tpu.memory_space<vmem>>, vector<1x32xf32>
    %283 = vector.broadcast %282 : vector<1x32xf32> to vector<8x32xf32>
    %284 = arith.addf %281, %283 : vector<8x32xf32>
    %285 = arith.addf %284, %52 : vector<8x32xf32>
    %c5 = arith.constant 5 : index
    %c0_91 = arith.constant 0 : index
    %286 = vector.load %arg11[%c5, %c0_91] : memref<12x32xf32, #tpu.memory_space<vmem>>, vector<1x32xf32>
    %c6 = arith.constant 6 : index
    %c0_92 = arith.constant 0 : index
    %287 = vector.load %arg11[%c6, %c0_92] : memref<12x32xf32, #tpu.memory_space<vmem>>, vector<1x32xf32>
    %cst_93 = arith.constant dense<0.000000e+00> : vector<8xf32>
    %288 = vector.multi_reduction <add>, %285, %cst_93 [1] : vector<8x32xf32> to vector<8xf32>
    %289 = vector.shape_cast %288 : vector<8xf32> to vector<8x1xf32>
    %290 = arith.mulf %285, %285 : vector<8x32xf32>
    %cst_94 = arith.constant dense<0.000000e+00> : vector<8xf32>
    %291 = vector.multi_reduction <add>, %290, %cst_94 [1] : vector<8x32xf32> to vector<8xf32>
    %292 = vector.shape_cast %291 : vector<8xf32> to vector<8x1xf32>
    %cst_95 = arith.constant 3.125000e-02 : f32
    %293 = vector.broadcast %cst_95 : f32 to vector<8x1xf32>
    %294 = arith.mulf %289, %293 : vector<8x1xf32>
    %cst_96 = arith.constant 3.125000e-02 : f32
    %295 = vector.broadcast %cst_96 : f32 to vector<8x1xf32>
    %296 = arith.mulf %292, %295 : vector<8x1xf32>
    %297 = arith.mulf %294, %294 : vector<8x1xf32>
    %298 = arith.subf %296, %297 : vector<8x1xf32>
    %299 = vector.broadcast %294 : vector<8x1xf32> to vector<8x32xf32>
    %300 = arith.subf %285, %299 : vector<8x32xf32>
    %cst_97 = arith.constant 9.99999974E-6 : f32
    %301 = vector.broadcast %cst_97 : f32 to vector<8x1xf32>
    %302 = arith.addf %298, %301 : vector<8x1xf32>
    %303 = math.rsqrt %302 : vector<8x1xf32>
    %304 = vector.broadcast %303 : vector<8x1xf32> to vector<8x32xf32>
    %305 = arith.mulf %300, %304 : vector<8x32xf32>
    %306 = vector.broadcast %286 : vector<1x32xf32> to vector<8x32xf32>
    %307 = arith.mulf %305, %306 : vector<8x32xf32>
    %308 = vector.broadcast %287 : vector<1x32xf32> to vector<8x32xf32>
    %309 = arith.addf %307, %308 : vector<8x32xf32>
    %310 = arith.truncf %309 : vector<8x32xf32> to vector<8x32xbf16>
    %c0_98 = arith.constant 0 : index
    %c0_99 = arith.constant 0 : index
    %311 = vector.load %arg7[%c0_98, %c0_99] : memref<32x64xbf16, #tpu.memory_space<vmem>>, vector<32x64xbf16>
    %cst_100 = arith.constant dense<0.000000e+00> : vector<8x64xf32>
    %312 = tpu.matmul %310, %311, %cst_100 {dimension_numbers = #tpu.dot_dimension_numbers<[1], [0], [0], [1], [0, 0, 1, 1], [], []>} : vector<8x32xbf16>, vector<32x64xbf16>, vector<8x64xf32> -> vector<8x64xf32>
    %c0_101 = arith.constant 0 : index
    %c0_102 = arith.constant 0 : index
    %313 = vector.load %arg12[%c0_101, %c0_102] : memref<6x64xf32, #tpu.memory_space<vmem>>, vector<1x64xf32>
    %314 = vector.broadcast %313 : vector<1x64xf32> to vector<8x64xf32>
    %315 = arith.addf %312, %314 : vector<8x64xf32>
    %cst_103 = arith.constant 5.000000e-01 : f32
    %316 = vector.broadcast %cst_103 : f32 to vector<8x64xf32>
    %317 = arith.mulf %316, %315 : vector<8x64xf32>
    %cst_104 = arith.constant 4.471500e-02 : f32
    %318 = vector.broadcast %cst_104 : f32 to vector<8x64xf32>
    %319 = arith.mulf %318, %315 : vector<8x64xf32>
    %320 = arith.mulf %319, %315 : vector<8x64xf32>
    %321 = arith.mulf %320, %315 : vector<8x64xf32>
    %322 = arith.addf %315, %321 : vector<8x64xf32>
    %cst_105 = arith.constant 0.797884583 : f32
    %323 = vector.broadcast %cst_105 : f32 to vector<8x64xf32>
    %324 = arith.mulf %323, %322 : vector<8x64xf32>
    %325 = math.tanh %324 : vector<8x64xf32>
    %cst_106 = arith.constant 1.000000e+00 : f32
    %326 = vector.broadcast %cst_106 : f32 to vector<8x64xf32>
    %327 = arith.addf %326, %325 : vector<8x64xf32>
    %328 = arith.mulf %317, %327 : vector<8x64xf32>
    %329 = tpu.iota {dimensions = array<i32: 0>} : vector<8x1xi32>
    %c0_i32_107 = arith.constant 0 : i32
    %330 = vector.broadcast %c0_i32_107 : i32 to vector<8x1xi32>
    %331 = arith.cmpi eq, %329, %330 : vector<8x1xi32>
    %c7_i32 = arith.constant 7 : i32
    %332 = vector.broadcast %c7_i32 : i32 to vector<8x1xi32>
    %333 = arith.cmpi eq, %329, %332 : vector<8x1xi32>
    %c1_i32_108 = arith.constant 1 : i32
    %334 = tpu.dynamic_rotate %328 by %c1_i32_108 dim 0 : vector<8x64xf32>, i32 -> vector<8x64xf32>
    %cst_109 = arith.constant 0.000000e+00 : f32
    %335 = vector.shape_cast %331 : vector<8x1xi1> to vector<8x1xi1>
    %336 = vector.broadcast %335 : vector<8x1xi1> to vector<8x64xi1>
    %337 = vector.broadcast %cst_109 : f32 to vector<8x64xf32>
    %338 = arith.select %336, %337, %334 : vector<8x64xi1>, vector<8x64xf32>
    %c7_i32_110 = arith.constant 7 : i32
    %339 = tpu.dynamic_rotate %328 by %c7_i32_110 dim 0 : vector<8x64xf32>, i32 -> vector<8x64xf32>
    %cst_111 = arith.constant 0.000000e+00 : f32
    %340 = vector.shape_cast %333 : vector<8x1xi1> to vector<8x1xi1>
    %341 = vector.broadcast %340 : vector<8x1xi1> to vector<8x64xi1>
    %342 = vector.broadcast %cst_111 : f32 to vector<8x64xf32>
    %343 = arith.select %341, %342, %339 : vector<8x64xi1>, vector<8x64xf32>
    %c1_112 = arith.constant 1 : index
    %c0_113 = arith.constant 0 : index
    %344 = vector.load %arg12[%c1_112, %c0_113] : memref<6x64xf32, #tpu.memory_space<vmem>>, vector<1x64xf32>
    %345 = vector.broadcast %344 : vector<1x64xf32> to vector<8x64xf32>
    %346 = arith.mulf %338, %345 : vector<8x64xf32>
    %c2_114 = arith.constant 2 : index
    %c0_115 = arith.constant 0 : index
    %347 = vector.load %arg12[%c2_114, %c0_115] : memref<6x64xf32, #tpu.memory_space<vmem>>, vector<1x64xf32>
    %348 = vector.broadcast %347 : vector<1x64xf32> to vector<8x64xf32>
    %349 = arith.mulf %328, %348 : vector<8x64xf32>
    %350 = arith.addf %346, %349 : vector<8x64xf32>
    %c3_116 = arith.constant 3 : index
    %c0_117 = arith.constant 0 : index
    %351 = vector.load %arg12[%c3_116, %c0_117] : memref<6x64xf32, #tpu.memory_space<vmem>>, vector<1x64xf32>
    %352 = vector.broadcast %351 : vector<1x64xf32> to vector<8x64xf32>
    %353 = arith.mulf %343, %352 : vector<8x64xf32>
    %354 = arith.addf %350, %353 : vector<8x64xf32>
    %c4_118 = arith.constant 4 : index
    %c0_119 = arith.constant 0 : index
    %355 = vector.load %arg12[%c4_118, %c0_119] : memref<6x64xf32, #tpu.memory_space<vmem>>, vector<1x64xf32>
    %356 = vector.broadcast %355 : vector<1x64xf32> to vector<8x64xf32>
    %357 = arith.mulf %354, %356 : vector<8x64xf32>
    %c5_120 = arith.constant 5 : index
    %c0_121 = arith.constant 0 : index
    %358 = vector.load %arg12[%c5_120, %c0_121] : memref<6x64xf32, #tpu.memory_space<vmem>>, vector<1x64xf32>
    %359 = vector.broadcast %358 : vector<1x64xf32> to vector<8x64xf32>
    %360 = arith.addf %357, %359 : vector<8x64xf32>
    %cst_122 = arith.constant 5.000000e-01 : f32
    %361 = vector.broadcast %cst_122 : f32 to vector<8x64xf32>
    %362 = arith.mulf %361, %360 : vector<8x64xf32>
    %cst_123 = arith.constant 4.471500e-02 : f32
    %363 = vector.broadcast %cst_123 : f32 to vector<8x64xf32>
    %364 = arith.mulf %363, %360 : vector<8x64xf32>
    %365 = arith.mulf %364, %360 : vector<8x64xf32>
    %366 = arith.mulf %365, %360 : vector<8x64xf32>
    %367 = arith.addf %360, %366 : vector<8x64xf32>
    %cst_124 = arith.constant 0.797884583 : f32
    %368 = vector.broadcast %cst_124 : f32 to vector<8x64xf32>
    %369 = arith.mulf %368, %367 : vector<8x64xf32>
    %370 = math.tanh %369 : vector<8x64xf32>
    %cst_125 = arith.constant 1.000000e+00 : f32
    %371 = vector.broadcast %cst_125 : f32 to vector<8x64xf32>
    %372 = arith.addf %371, %370 : vector<8x64xf32>
    %373 = arith.mulf %362, %372 : vector<8x64xf32>
    %374 = arith.truncf %373 : vector<8x64xf32> to vector<8x64xbf16>
    %c0_126 = arith.constant 0 : index
    %c0_127 = arith.constant 0 : index
    %375 = vector.load %arg8[%c0_126, %c0_127] : memref<64x32xbf16, #tpu.memory_space<vmem>>, vector<64x32xbf16>
    %cst_128 = arith.constant dense<0.000000e+00> : vector<8x32xf32>
    %376 = tpu.matmul %374, %375, %cst_128 {dimension_numbers = #tpu.dot_dimension_numbers<[1], [0], [0], [1], [0, 0, 1, 1], [], []>} : vector<8x64xbf16>, vector<64x32xbf16>, vector<8x32xf32> -> vector<8x32xf32>
    %c7 = arith.constant 7 : index
    %c0_129 = arith.constant 0 : index
    %377 = vector.load %arg11[%c7, %c0_129] : memref<12x32xf32, #tpu.memory_space<vmem>>, vector<1x32xf32>
    %378 = vector.broadcast %377 : vector<1x32xf32> to vector<8x32xf32>
    %379 = arith.addf %376, %378 : vector<8x32xf32>
    %380 = arith.addf %379, %309 : vector<8x32xf32>
    %c8_130 = arith.constant 8 : index
    %c0_131 = arith.constant 0 : index
    %381 = vector.load %arg11[%c8_130, %c0_131] : memref<12x32xf32, #tpu.memory_space<vmem>>, vector<1x32xf32>
    %c9 = arith.constant 9 : index
    %c0_132 = arith.constant 0 : index
    %382 = vector.load %arg11[%c9, %c0_132] : memref<12x32xf32, #tpu.memory_space<vmem>>, vector<1x32xf32>
    %cst_133 = arith.constant dense<0.000000e+00> : vector<8xf32>
    %383 = vector.multi_reduction <add>, %380, %cst_133 [1] : vector<8x32xf32> to vector<8xf32>
    %384 = vector.shape_cast %383 : vector<8xf32> to vector<8x1xf32>
    %385 = arith.mulf %380, %380 : vector<8x32xf32>
    %cst_134 = arith.constant dense<0.000000e+00> : vector<8xf32>
    %386 = vector.multi_reduction <add>, %385, %cst_134 [1] : vector<8x32xf32> to vector<8xf32>
    %387 = vector.shape_cast %386 : vector<8xf32> to vector<8x1xf32>
    %cst_135 = arith.constant 3.125000e-02 : f32
    %388 = vector.broadcast %cst_135 : f32 to vector<8x1xf32>
    %389 = arith.mulf %384, %388 : vector<8x1xf32>
    %cst_136 = arith.constant 3.125000e-02 : f32
    %390 = vector.broadcast %cst_136 : f32 to vector<8x1xf32>
    %391 = arith.mulf %387, %390 : vector<8x1xf32>
    %392 = arith.mulf %389, %389 : vector<8x1xf32>
    %393 = arith.subf %391, %392 : vector<8x1xf32>
    %394 = vector.broadcast %389 : vector<8x1xf32> to vector<8x32xf32>
    %395 = arith.subf %380, %394 : vector<8x32xf32>
    %cst_137 = arith.constant 9.99999974E-6 : f32
    %396 = vector.broadcast %cst_137 : f32 to vector<8x1xf32>
    %397 = arith.addf %393, %396 : vector<8x1xf32>
    %398 = math.rsqrt %397 : vector<8x1xf32>
    %399 = vector.broadcast %398 : vector<8x1xf32> to vector<8x32xf32>
    %400 = arith.mulf %395, %399 : vector<8x32xf32>
    %401 = vector.broadcast %381 : vector<1x32xf32> to vector<8x32xf32>
    %402 = arith.mulf %400, %401 : vector<8x32xf32>
    %403 = vector.broadcast %382 : vector<1x32xf32> to vector<8x32xf32>
    %404 = arith.addf %402, %403 : vector<8x32xf32>
    %405 = arith.truncf %404 : vector<8x32xf32> to vector<8x32xbf16>
    %c0_138 = arith.constant 0 : index
    %c0_139 = arith.constant 0 : index
    %406 = vector.load %arg9[%c0_138, %c0_139] : memref<32x32xbf16, #tpu.memory_space<vmem>>, vector<32x32xbf16>
    %cst_140 = arith.constant dense<0.000000e+00> : vector<8x32xf32>
    %407 = tpu.matmul %405, %406, %cst_140 {dimension_numbers = #tpu.dot_dimension_numbers<[1], [0], [0], [1], [0, 0, 1, 1], [], []>} : vector<8x32xbf16>, vector<32x32xbf16>, vector<8x32xf32> -> vector<8x32xf32>
    %c10 = arith.constant 10 : index
    %c0_141 = arith.constant 0 : index
    %408 = vector.load %arg11[%c10, %c0_141] : memref<12x32xf32, #tpu.memory_space<vmem>>, vector<1x32xf32>
    %409 = vector.broadcast %408 : vector<1x32xf32> to vector<8x32xf32>
    %410 = arith.addf %407, %409 : vector<8x32xf32>
    %cst_142 = arith.constant 5.000000e-01 : f32
    %411 = vector.broadcast %cst_142 : f32 to vector<8x32xf32>
    %412 = arith.mulf %411, %410 : vector<8x32xf32>
    %cst_143 = arith.constant 4.471500e-02 : f32
    %413 = vector.broadcast %cst_143 : f32 to vector<8x32xf32>
    %414 = arith.mulf %413, %410 : vector<8x32xf32>
    %415 = arith.mulf %414, %410 : vector<8x32xf32>
    %416 = arith.mulf %415, %410 : vector<8x32xf32>
    %417 = arith.addf %410, %416 : vector<8x32xf32>
    %cst_144 = arith.constant 0.797884583 : f32
    %418 = vector.broadcast %cst_144 : f32 to vector<8x32xf32>
    %419 = arith.mulf %418, %417 : vector<8x32xf32>
    %420 = math.tanh %419 : vector<8x32xf32>
    %cst_145 = arith.constant 1.000000e+00 : f32
    %421 = vector.broadcast %cst_145 : f32 to vector<8x32xf32>
    %422 = arith.addf %421, %420 : vector<8x32xf32>
    %423 = arith.mulf %412, %422 : vector<8x32xf32>
    %424 = arith.truncf %423 : vector<8x32xf32> to vector<8x32xbf16>
    %c0_146 = arith.constant 0 : index
    %c0_147 = arith.constant 0 : index
    %425 = vector.load %arg10[%c0_146, %c0_147] : memref<32x32xbf16, #tpu.memory_space<vmem>>, vector<32x32xbf16>
    %cst_148 = arith.constant dense<0.000000e+00> : vector<8x32xf32>
    %426 = tpu.matmul %424, %425, %cst_148 {dimension_numbers = #tpu.dot_dimension_numbers<[1], [0], [0], [1], [0, 0, 1, 1], [], []>} : vector<8x32xbf16>, vector<32x32xbf16>, vector<8x32xf32> -> vector<8x32xf32>
    %c11 = arith.constant 11 : index
    %c0_149 = arith.constant 0 : index
    %427 = vector.load %arg11[%c11, %c0_149] : memref<12x32xf32, #tpu.memory_space<vmem>>, vector<1x32xf32>
    %428 = vector.broadcast %427 : vector<1x32xf32> to vector<8x32xf32>
    %429 = arith.addf %426, %428 : vector<8x32xf32>
    %cst_150 = arith.constant 5.000000e-01 : f32
    %430 = vector.broadcast %cst_150 : f32 to vector<8x32xf32>
    %431 = arith.mulf %430, %429 : vector<8x32xf32>
    %432 = arith.addf %431, %380 : vector<8x32xf32>
    %c0_151 = arith.constant 0 : index
    %c0_152 = arith.constant 0 : index
    %433 = vector.load %arg13[%c0_151, %c0_152] : memref<8x32xf32, #tpu.memory_space<vmem>>, vector<8x32xf32>
    tpu.vector_store %arg13[%c0_151, %c0_152], %432 {strides = array<i32>} : memref<8x32xf32, #tpu.memory_space<vmem>>, vector<8x32xf32>,
    return
  }
  func.func @transform_0(%arg0: i32) -> (i32, i32) {
    %c0_i32 = arith.constant 0 : i32
    %c0_i32_0 = arith.constant 0 : i32
    return %arg0, %c0_i32 : i32, i32
  }
  func.func @transform_1(%arg0: i32) -> (i32, i32) {
    %c0_i32 = arith.constant 0 : i32
    %c0_i32_0 = arith.constant 0 : i32
    %c0_i32_1 = arith.constant 0 : i32
    return %c0_i32, %c0_i32_0 : i32, i32
  }
  func.func @transform_2(%arg0: i32) -> (i32, i32) {
    %c0_i32 = arith.constant 0 : i32
    %c0_i32_0 = arith.constant 0 : i32
    %c0_i32_1 = arith.constant 0 : i32
    return %c0_i32, %c0_i32_0 : i32, i32
  }
  func.func @transform_3(%arg0: i32) -> (i32, i32) {
    %c0_i32 = arith.constant 0 : i32
    %c0_i32_0 = arith.constant 0 : i32
    %c0_i32_1 = arith.constant 0 : i32
    return %c0_i32, %c0_i32_0 : i32, i32
  }
  func.func @transform_4(%arg0: i32) -> (i32, i32) {
    %c0_i32 = arith.constant 0 : i32
    %c0_i32_0 = arith.constant 0 : i32
    %c0_i32_1 = arith.constant 0 : i32
    return %c0_i32, %c0_i32_0 : i32, i32
  }
  func.func @transform_5(%arg0: i32) -> (i32, i32) {
    %c0_i32 = arith.constant 0 : i32
    %c0_i32_0 = arith.constant 0 : i32
    %c0_i32_1 = arith.constant 0 : i32
    return %c0_i32, %c0_i32_0 : i32, i32
  }
  func.func @transform_6(%arg0: i32) -> (i32, i32) {
    %c0_i32 = arith.constant 0 : i32
    %c0_i32_0 = arith.constant 0 : i32
    %c0_i32_1 = arith.constant 0 : i32
    return %c0_i32, %c0_i32_0 : i32, i32
  }
  func.func @transform_7(%arg0: i32) -> (i32, i32) {
    %c0_i32 = arith.constant 0 : i32
    %c0_i32_0 = arith.constant 0 : i32
    %c0_i32_1 = arith.constant 0 : i32
    return %c0_i32, %c0_i32_0 : i32, i32
  }
  func.func @transform_8(%arg0: i32) -> (i32, i32) {
    %c0_i32 = arith.constant 0 : i32
    %c0_i32_0 = arith.constant 0 : i32
    %c0_i32_1 = arith.constant 0 : i32
    return %c0_i32, %c0_i32_0 : i32, i32
  }
  func.func @transform_9(%arg0: i32) -> (i32, i32) {
    %c0_i32 = arith.constant 0 : i32
    %c0_i32_0 = arith.constant 0 : i32
    %c0_i32_1 = arith.constant 0 : i32
    return %c0_i32, %c0_i32_0 : i32, i32
  }
  func.func @transform_10(%arg0: i32) -> (i32, i32) {
    %c0_i32 = arith.constant 0 : i32
    %c0_i32_0 = arith.constant 0 : i32
    %c0_i32_1 = arith.constant 0 : i32
    return %c0_i32, %c0_i32_0 : i32, i32
  }
  func.func @transform_11(%arg0: i32) -> (i32, i32) {
    %c0_i32 = arith.constant 0 : i32
    %c0_i32_0 = arith.constant 0 : i32
    %c0_i32_1 = arith.constant 0 : i32
    return %c0_i32, %c0_i32_0 : i32, i32
  }
  func.func @transform_12(%arg0: i32) -> (i32, i32) {
    %c0_i32 = arith.constant 0 : i32
    %c0_i32_0 = arith.constant 0 : i32
    return %arg0, %c0_i32 : i32, i32
  }
}

</mosaic_0001>

<llo_original>
// kernel: tpu_custom_call.1
$region0: #{tpu_custom_call.1}
  #allocation0 [shape = 'u32[]', space=smem, size = 0x4, offset = 0x4, fixed_abs, tag = 'smem constant byte address 0x4 - core index']
  #allocation1 [shape = 'u32[144,128]{1,0:T(1,128)}', space=vmem, size = 0x12000, scoped, tag = 'internal scratch']
  #allocation2 [shape = 'f32[8,96]{1,0:T(8,128)}', space=vmem, size = 0x1000, scoped, tag = 'scratch operand']
  #allocation3 [shape = 'f32[8,32]{1,0:T(8,128)}', space=vmem, size = 0x1000, scoped, tag = 'scratch operand']
  %s0 = inlined_call_operand.vmem [shape: f32[16,32], index: 0, kind: input, shape index: {}]
  %s1 = inlined_call_operand.vmem [shape: bf16[32,32], index: 1, kind: input, shape index: {}]
  %s2 = inlined_call_operand.vmem [shape: bf16[32,32], index: 2, kind: input, shape index: {}]
  %s3 = inlined_call_operand.hbm [shape: bf16[32,96], index: 3, kind: input, shape index: {}]
  %s4 = inlined_call_operand.hbm [shape: f32[1,96], index: 4, kind: input, shape index: {}]
  %s5 = inlined_call_operand.hbm [shape: bf16[32,32], index: 5, kind: input, shape index: {}]
  %s6 = inlined_call_operand.hbm [shape: bf16[32,64], index: 6, kind: input, shape index: {}]
  %s7 = inlined_call_operand.vmem [shape: bf16[64,32], index: 7, kind: input, shape index: {}]
  %s8 = inlined_call_operand.hbm [shape: bf16[32,32], index: 8, kind: input, shape index: {}]
  %s9 = inlined_call_operand.vmem [shape: bf16[32,32], index: 9, kind: input, shape index: {}]
  %s10 = inlined_call_operand.hbm [shape: f32[12,32], index: 10, kind: input, shape index: {}]
  %s11 = inlined_call_operand.hbm [shape: f32[6,64], index: 11, kind: input, shape index: {}]
  %s12 = inlined_call_operand.hbm [shape: f32[16,32], index: 12, kind: output, shape index: {}]
  %s13 = sld [smem:[#allocation0]]
  $region109: #{tpu_custom_call.1} parent=0
    _
  %s15 = ssub.s32 1, %s13
  %s16 = scalar_select 0, %s15, %s13
  $region1: #{tpu_custom_call.1} parent=0
    #allocation4 [shape = 'u8[8192]{0}', space=vmem, size = 0x2000, scoped, tag = 'input window, operand 3, single buffered']
    #allocation5 [shape = 's32[2]{0}', space=sflag, size = 0x8, scoped, tag = 'scoped memory for tpu_custom_call.1']
    #allocation6 [shape = 's32[2]{0}', space=sflag, size = 0x8, scoped, tag = 'scoped memory for tpu_custom_call.1']
    #allocation7 [shape = 'u8[512]{0}', space=vmem, size = 0x400, scoped, tag = 'input window, operand 4, single buffered']
    #allocation8 [shape = 's32[1]{0}', space=sflag, size = 0x4, scoped, tag = 'scoped memory for tpu_custom_call.1']
    #allocation9 [shape = 'u8[8192]{0}', space=vmem, size = 0x2000, scoped, tag = 'input window, operand 5, single buffered']
    #allocation10 [shape = 'u8[8192]{0}', space=vmem, size = 0x2000, scoped, tag = 'input window, operand 6, single buffered']
    #allocation11 [shape = 's32[1]{0}', space=sflag, size = 0x4, scoped, tag = 'scoped memory for tpu_custom_call.1']
    #allocation12 [shape = 'u8[8192]{0}', space=vmem, size = 0x2000, scoped, tag = 'input window, operand 8, single buffered']
    #allocation13 [shape = 'u8[8192]{0}', space=vmem, size = 0x2000, scoped, tag = 'input window, operand 10, single buffered']
    #allocation14 [shape = 's32[1]{0}', space=sflag, size = 0x4, scoped, tag = 'scoped memory for tpu_custom_call.1']
    #allocation15 [shape = 'u8[4096]{0}', space=vmem, size = 0x1000, scoped, tag = 'input window, operand 11, single buffered']
    #allocation16 [shape = 'u8[8192]{0}', space=vmem, size = 0x2000, scoped, tag = 'output window, operand 0']
    %17 = vsyncpa [#allocation5], 0
    %18 = vsyncpa [#allocation8], 0
    %19 = vsyncpa [#allocation11], 0
    %20 = vsyncpa [#allocation14], 0
    %21 = vsyncpa [#allocation6], 0
    %s22 = scalar_lea.sflag [#allocation6], 1
    %23 = vsyncpa %s22, 0
    loop: start=0, step=1, limit=4
    $region2: #{tpu_custom_call.1} parent=1 // loop_pre_header
      _
    $region3: #{tpu_custom_call.1} parent=1 // loop_header
      %s25 = sphi 0, %s29
      %p26 = scmp.ge.s32.totalorder %s25, 4
      %s35 = sphi 0, %s37
      %s38 = sphi 0, %s35
      %s39 = sphi 0, %s38
      %s55 = sphi 0, %s39
      %s59 = sphi 0, %s59
      %s61 = sphi 0, %s59
      %s62 = sphi 0, %s61
      %s76 = sphi 0, %s62
      %s80 = sphi 0, %s80
      %s82 = sphi 0, %s80
      %s83 = sphi 0, %s82
      %s97 = sphi 0, %s83
      %s101 = sphi 0, %s101
      %s103 = sphi 0, %s101
      %s104 = sphi 0, %s103
      %s118 = sphi 0, %s104
      %s122 = sphi 0, %s122
      %s124 = sphi 0, %s122
      %s125 = sphi 0, %s124
      %s139 = sphi 0, %s125
      %s143 = sphi 0, %s143
      %s145 = sphi 0, %s143
      %s146 = sphi 0, %s145
      %s160 = sphi 0, %s146
      %s164 = sphi 0, %s164
      %s166 = sphi 0, %s164
      %s167 = sphi 0, %s166
      %s181 = sphi 0, %s167
      %s185 = sphi 0, %s185
      %s187 = sphi 0, %s185
      %s188 = sphi 0, %s187
      %s202 = sphi 0, %s188
      %s206 = sphi 0, %s206
      %s208 = sphi 0, %s206
      %s209 = sphi 0, %s208
      %s223 = sphi 0, %s209
      %s227 = sphi 0, %s227
      %s229 = sphi 0, %s227
      %s230 = sphi 0, %s229
      %s244 = sphi 0, %s230
      %s248 = sphi 0, %s248
      %s250 = sphi 0, %s248
      %s251 = sphi 0, %s250
      %s265 = sphi 0, %s251
      %s269 = sphi 0, %s269
      %s271 = sphi 0, %s269
      %s272 = sphi 0, %s271
      %s286 = sphi 0, %s272
      %s292 = sphi 0, %s294
      %s295 = sphi 0, %s292
      %s296 = sphi 0, %s295
      %s312 = sphi 0, %s296
    $region4: #{tpu_custom_call.1} parent=1 // loop_header_branch
      %28 = sbr.rel (%p26) target = $region8
    $region5: #{tpu_custom_call.1} parent=1 // loop_body
      %s30 = ssub.s32 %s25, 1
      %s31 = ssub.s32 %s25, 2
      %s32 = sadd.s32 %s25, 1
      %s33 = ssub.s32 %s25, %s32
      %p34 = scmp.eq.s32.totalorder %s33, 0
      %s36 = sadd.s32 %s35, 1
      %s37 = scalar_select %p34, %s35, %s36
      %p40 = pneg %p34
      %p41 = scmp.eq.s32.totalorder %s25, 1
      %p42 = por %p40, %p41
      %p43 = scmp.ne.s32.totalorder %s35, %s38
      %p44 = scmp.eq.s32.totalorder %s25, 0
      %p45 = por %p43, %p44
      %p46 = scmp.ne.s32.totalorder %s35, %s38
      %p47 = scmp.eq.s32.totalorder %s30, 1
      %p48 = por %p46, %p47
      %p49 = scmp.ne.s32.totalorder %s38, %s39
      %p50 = scmp.eq.s32.totalorder %s30, 0
      %p51 = por %p49, %p50
      %p52 = scmp.ne.s32.totalorder %s38, %s39
      %p53 = scmp.eq.s32.totalorder %s31, 1
      %p54 = por %p52, %p53
      %p56 = scmp.ne.s32.totalorder %s39, %s55
      %p57 = scmp.eq.s32.totalorder %s31, 0
      %p58 = por %p56, %p57
      %s60 = sadd.s32 %s59, 1
      %p63 = scmp.eq.s32.totalorder %s25, 1
      %p64 = scmp.ne.s32.totalorder %s59, %s61
      %p65 = scmp.eq.s32.totalorder %s25, 0
      %p66 = por %p64, %p65
      %p67 = scmp.ne.s32.totalorder %s59, %s61
      %p68 = scmp.eq.s32.totalorder %s30, 1
      %p69 = por %p67, %p68
      %p70 = scmp.ne.s32.totalorder %s61, %s62
      %p71 = scmp.eq.s32.totalorder %s30, 0
      %p72 = por %p70, %p71
      %p73 = scmp.ne.s32.totalorder %s61, %s62
      %p74 = scmp.eq.s32.totalorder %s31, 1
      %p75 = por %p73, %p74
      %p77 = scmp.ne.s32.totalorder %s62, %s76
      %p78 = scmp.eq.s32.totalorder %s31, 0
      %p79 = por %p77, %p78
      %s81 = sadd.s32 %s80, 1
      %p84 = scmp.eq.s32.totalorder %s25, 1
      %p85 = scmp.ne.s32.totalorder %s80, %s82
      %p86 = scmp.eq.s32.totalorder %s25, 0
      %p87 = por %p85, %p86
      %p88 = scmp.ne.s32.totalorder %s80, %s82
      %p89 = scmp.eq.s32.totalorder %s30, 1
      %p90 = por %p88, %p89
      %p91 = scmp.ne.s32.totalorder %s82, %s83
      %p92 = scmp.eq.s32.totalorder %s30, 0
      %p93 = por %p91, %p92
      %p94 = scmp.ne.s32.totalorder %s82, %s83
      %p95 = scmp.eq.s32.totalorder %s31, 1
      %p96 = por %p94, %p95
      %p98 = scmp.ne.s32.totalorder %s83, %s97
      %p99 = scmp.eq.s32.totalorder %s31, 0
      %p100 = por %p98, %p99
      %s102 = sadd.s32 %s101, 1
      %p105 = scmp.eq.s32.totalorder %s25, 1
      %p106 = scmp.ne.s32.totalorder %s101, %s103
      %p107 = scmp.eq.s32.totalorder %s25, 0
      %p108 = por %p106, %p107
      %p109 = scmp.ne.s32.totalorder %s101, %s103
      %p110 = scmp.eq.s32.totalorder %s30, 1
      %p111 = por %p109, %p110
      %p112 = scmp.ne.s32.totalorder %s103, %s104
      %p113 = scmp.eq.s32.totalorder %s30, 0
      %p114 = por %p112, %p113
      %p115 = scmp.ne.s32.totalorder %s103, %s104
      %p116 = scmp.eq.s32.totalorder %s31, 1
      %p117 = por %p115, %p116
      %p119 = scmp.ne.s32.totalorder %s104, %s118
      %p120 = scmp.eq.s32.totalorder %s31, 0
      %p121 = por %p119, %p120
      %s123 = sadd.s32 %s122, 1
      %p126 = scmp.eq.s32.totalorder %s25, 1
      %p127 = scmp.ne.s32.totalorder %s122, %s124
      %p128 = scmp.eq.s32.totalorder %s25, 0
      %p129 = por %p127, %p128
      %p130 = scmp.ne.s32.totalorder %s122, %s124
      %p131 = scmp.eq.s32.totalorder %s30, 1
      %p132 = por %p130, %p131
      %p133 = scmp.ne.s32.totalorder %s124, %s125
      %p134 = scmp.eq.s32.totalorder %s30, 0
      %p135 = por %p133, %p134
      %p136 = scmp.ne.s32.totalorder %s124, %s125
      %p137 = scmp.eq.s32.totalorder %s31, 1
      %p138 = por %p136, %p137
      %p140 = scmp.ne.s32.totalorder %s125, %s139
      %p141 = scmp.eq.s32.totalorder %s31, 0
      %p142 = por %p140, %p141
      %s144 = sadd.s32 %s143, 1
      %p147 = scmp.eq.s32.totalorder %s25, 1
      %p148 = scmp.ne.s32.totalorder %s143, %s145
      %p149 = scmp.eq.s32.totalorder %s25, 0
      %p150 = por %p148, %p149
      %p151 = scmp.ne.s32.totalorder %s143, %s145
      %p152 = scmp.eq.s32.totalorder %s30, 1
      %p153 = por %p151, %p152
      %p154 = scmp.ne.s32.totalorder %s145, %s146
      %p155 = scmp.eq.s32.totalorder %s30, 0
      %p156 = por %p154, %p155
      %p157 = scmp.ne.s32.totalorder %s145, %s146
      %p158 = scmp.eq.s32.totalorder %s31, 1
      %p159 = por %p157, %p158
      %p161 = scmp.ne.s32.totalorder %s146, %s160
      %p162 = scmp.eq.s32.totalorder %s31, 0
      %p163 = por %p161, %p162
      %s165 = sadd.s32 %s164, 1
      %p168 = scmp.eq.s32.totalorder %s25, 1
      %p169 = scmp.ne.s32.totalorder %s164, %s166
      %p170 = scmp.eq.s32.totalorder %s25, 0
      %p171 = por %p169, %p170
      %p172 = scmp.ne.s32.totalorder %s164, %s166
      %p173 = scmp.eq.s32.totalorder %s30, 1
      %p174 = por %p172, %p173
      %p175 = scmp.ne.s32.totalorder %s166, %s167
      %p176 = scmp.eq.s32.totalorder %s30, 0
      %p177 = por %p175, %p176
      %p178 = scmp.ne.s32.totalorder %s166, %s167
      %p179 = scmp.eq.s32.totalorder %s31, 1
      %p180 = por %p178, %p179
      %p182 = scmp.ne.s32.totalorder %s167, %s181
      %p183 = scmp.eq.s32.totalorder %s31, 0
      %p184 = por %p182, %p183
      %s186 = sadd.s32 %s185, 1
      %p189 = scmp.eq.s32.totalorder %s25, 1
      %p190 = scmp.ne.s32.totalorder %s185, %s187
      %p191 = scmp.eq.s32.totalorder %s25, 0
      %p192 = por %p190, %p191
      %p193 = scmp.ne.s32.totalorder %s185, %s187
      %p194 = scmp.eq.s32.totalorder %s30, 1
      %p195 = por %p193, %p194
      %p196 = scmp.ne.s32.totalorder %s187, %s188
      %p197 = scmp.eq.s32.totalorder %s30, 0
      %p198 = por %p196, %p197
      %p199 = scmp.ne.s32.totalorder %s187, %s188
      %p200 = scmp.eq.s32.totalorder %s31, 1
      %p201 = por %p199, %p200
      %p203 = scmp.ne.s32.totalorder %s188, %s202
      %p204 = scmp.eq.s32.totalorder %s31, 0
      %p205 = por %p203, %p204
      %s207 = sadd.s32 %s206, 1
      %p210 = scmp.eq.s32.totalorder %s25, 1
      %p211 = scmp.ne.s32.totalorder %s206, %s208
      %p212 = scmp.eq.s32.totalorder %s25, 0
      %p213 = por %p211, %p212
      %p214 = scmp.ne.s32.totalorder %s206, %s208
      %p215 = scmp.eq.s32.totalorder %s30, 1
      %p216 = por %p214, %p215
      %p217 = scmp.ne.s32.totalorder %s208, %s209
      %p218 = scmp.eq.s32.totalorder %s30, 0
      %p219 = por %p217, %p218
      %p220 = scmp.ne.s32.totalorder %s208, %s209
      %p221 = scmp.eq.s32.totalorder %s31, 1
      %p222 = por %p220, %p221
      %p224 = scmp.ne.s32.totalorder %s209, %s223
      %p225 = scmp.eq.s32.totalorder %s31, 0
      %p226 = por %p224, %p225
      %s228 = sadd.s32 %s227, 1
      %p231 = scmp.eq.s32.totalorder %s25, 1
      %p232 = scmp.ne.s32.totalorder %s227, %s229
      %p233 = scmp.eq.s32.totalorder %s25, 0
      %p234 = por %p232, %p233
      %p235 = scmp.ne.s32.totalorder %s227, %s229
      %p236 = scmp.eq.s32.totalorder %s30, 1
      %p237 = por %p235, %p236
      %p238 = scmp.ne.s32.totalorder %s229, %s230
      %p239 = scmp.eq.s32.totalorder %s30, 0
      %p240 = por %p238, %p239
      %p241 = scmp.ne.s32.totalorder %s229, %s230
      %p242 = scmp.eq.s32.totalorder %s31, 1
      %p243 = por %p241, %p242
      %p245 = scmp.ne.s32.totalorder %s230, %s244
      %p246 = scmp.eq.s32.totalorder %s31, 0
      %p247 = por %p245, %p246
      %s249 = sadd.s32 %s248, 1
      %p252 = scmp.eq.s32.totalorder %s25, 1
      %p253 = scmp.ne.s32.totalorder %s248, %s250
      %p254 = scmp.eq.s32.totalorder %s25, 0
      %p255 = por %p253, %p254
      %p256 = scmp.ne.s32.totalorder %s248, %s250
      %p257 = scmp.eq.s32.totalorder %s30, 1
      %p258 = por %p256, %p257
      %p259 = scmp.ne.s32.totalorder %s250, %s251
      %p260 = scmp.eq.s32.totalorder %s30, 0
      %p261 = por %p259, %p260
      %p262 = scmp.ne.s32.totalorder %s250, %s251
      %p263 = scmp.eq.s32.totalorder %s31, 1
      %p264 = por %p262, %p263
      %p266 = scmp.ne.s32.totalorder %s251, %s265
      %p267 = scmp.eq.s32.totalorder %s31, 0
      %p268 = por %p266, %p267
      %s270 = sadd.s32 %s269, 1
      %p273 = scmp.eq.s32.totalorder %s25, 1
      %p274 = scmp.ne.s32.totalorder %s269, %s271
      %p275 = scmp.eq.s32.totalorder %s25, 0
      %p276 = por %p274, %p275
      %p277 = scmp.ne.s32.totalorder %s269, %s271
      %p278 = scmp.eq.s32.totalorder %s30, 1
      %p279 = por %p277, %p278
      %p280 = scmp.ne.s32.totalorder %s271, %s272
      %p281 = scmp.eq.s32.totalorder %s30, 0
      %p282 = por %p280, %p281
      %p283 = scmp.ne.s32.totalorder %s271, %s272
      %p284 = scmp.eq.s32.totalorder %s31, 1
      %p285 = por %p283, %p284
      %p287 = scmp.ne.s32.totalorder %s272, %s286
      %p288 = scmp.eq.s32.totalorder %s31, 0
      %p289 = por %p287, %p288
      %s290 = ssub.s32 %s25, %s32
      %p291 = scmp.eq.s32.totalorder %s290, 0
      %s293 = sadd.s32 %s292, 1
      %s294 = scalar_select %p291, %s292, %s293
      %p297 = pneg %p291
      %p298 = scmp.eq.s32.totalorder %s25, 1
      %p299 = por %p297, %p298
      %p300 = scmp.ne.s32.totalorder %s292, %s295
      %p301 = scmp.eq.s32.totalorder %s25, 0
      %p302 = por %p300, %p301
      %p303 = scmp.ne.s32.totalorder %s292, %s295
      %p304 = scmp.eq.s32.totalorder %s30, 1
      %p305 = por %p303, %p304
      %p306 = scmp.ne.s32.totalorder %s295, %s296
      %p307 = scmp.eq.s32.totalorder %s30, 0
      %p308 = por %p306, %p307
      %p309 = scmp.ne.s32.totalorder %s295, %s296
      %p310 = scmp.eq.s32.totalorder %s31, 1
      %p311 = por %p309, %p310
      %p313 = scmp.ne.s32.totalorder %s296, %s312
      %p314 = scmp.eq.s32.totalorder %s31, 0
      %p315 = por %p313, %p314
      %p316 = scmp.le.s32.totalorder 1, %s25
      %p317 = scmp.lt.s32.totalorder %s25, 3
      %p318 = pnand %p316, %p317
      %p319 = pneg %p318
      // Predicated region
      $region9: #{tpu_custom_call.1} parent=5 // pred_check
        _
      $region10: #{tpu_custom_call.1} parent=5 // pred_check_branch
        %321 = sbr.rel (%p318) target = $region12
      $region11: #{tpu_custom_call.1} parent=5 // pred_region
        %s322 = ssub.s32 %s25, 1
        // Predicated region
        $region13: #{tpu_custom_call.1} parent=11 // pred_check
          %p323 = pneg %p72
        $region14: #{tpu_custom_call.1} parent=11 // pred_check_branch
          %325 = sbr.rel (%p323) target = $region16
        $region15: #{tpu_custom_call.1} parent=11 // pred_region
          _
        $region16: #{tpu_custom_call.1} parent=11 // pred_fallthru
          _
        // Predicated region
        $region17: #{tpu_custom_call.1} parent=11 // pred_check
          %p326 = pneg %p93
        $region18: #{tpu_custom_call.1} parent=11 // pred_check_branch
          %328 = sbr.rel (%p326) target = $region20
        $region19: #{tpu_custom_call.1} parent=11 // pred_region
          _
        $region20: #{tpu_custom_call.1} parent=11 // pred_fallthru
          _
        // Predicated region
        $region21: #{tpu_custom_call.1} parent=11 // pred_check
          %p329 = pneg %p114
        $region22: #{tpu_custom_call.1} parent=11 // pred_check_branch
          %331 = sbr.rel (%p329) target = $region24
        $region23: #{tpu_custom_call.1} parent=11 // pred_region
          %s333 = ssub.s32 256, 256
          %334 = vsyncadd [#allocation5], %s333
          %s335 = sshll.u32 [#allocation4], 4
          %s336 = int_to_ptr.vmem [resolvable:$true] %s335
          %341 = dma.hbm_to_vmem [thread:$0]  %s3, 256, %s336, [#allocation5], 64, 64, 4
        $region24: #{tpu_custom_call.1} parent=11 // pred_fallthru
          _
        // Predicated region
        $region25: #{tpu_custom_call.1} parent=11 // pred_check
          %p342 = pneg %p135
        $region26: #{tpu_custom_call.1} parent=11 // pred_check_branch
          %344 = sbr.rel (%p342) target = $region28
        $region27: #{tpu_custom_call.1} parent=11 // pred_region
          %s346 = ssub.s32 16, 16
          %347 = vsyncadd [#allocation8], %s346
          %s349 = sshll.u32 [#allocation7], 4
          %s350 = int_to_ptr.vmem [resolvable:$true] %s349
          %352 = dma.hbm_to_vmem [thread:$0]  %s4, 16, %s350, [#allocation8]
        $region28: #{tpu_custom_call.1} parent=11 // pred_fallthru
          _
        // Predicated region
        $region29: #{tpu_custom_call.1} parent=11 // pred_check
          %p353 = pneg %p156
        $region30: #{tpu_custom_call.1} parent=11 // pred_check_branch
          %355 = sbr.rel (%p353) target = $region32
        $region31: #{tpu_custom_call.1} parent=11 // pred_region
          %s357 = ssub.s32 256, 256
          %358 = vsyncadd [#allocation8], %s357
          %s359 = sshll.u32 [#allocation9], 4
          %s360 = int_to_ptr.vmem [resolvable:$true] %s359
          %365 = dma.hbm_to_vmem [thread:$0]  %s5, 256, %s360, [#allocation8], 64, 64, 4
        $region32: #{tpu_custom_call.1} parent=11 // pred_fallthru
          _
        // Predicated region
        $region33: #{tpu_custom_call.1} parent=11 // pred_check
          %p366 = pneg %p177
        $region34: #{tpu_custom_call.1} parent=11 // pred_check_branch
          %368 = sbr.rel (%p366) target = $region36
        $region35: #{tpu_custom_call.1} parent=11 // pred_region
          %s370 = ssub.s32 256, 256
          %371 = vsyncadd [#allocation11], %s370
          %s372 = sshll.u32 [#allocation10], 4
          %s373 = int_to_ptr.vmem [resolvable:$true] %s372
          %378 = dma.hbm_to_vmem [thread:$0]  %s6, 256, %s373, [#allocation11], 64, 64, 4
        $region36: #{tpu_custom_call.1} parent=11 // pred_fallthru
          _
        // Predicated region
        $region37: #{tpu_custom_call.1} parent=11 // pred_check
          %p379 = pneg %p198
        $region38: #{tpu_custom_call.1} parent=11 // pred_check_branch
          %381 = sbr.rel (%p379) target = $region40
        $region39: #{tpu_custom_call.1} parent=11 // pred_region
          _
        $region40: #{tpu_custom_call.1} parent=11 // pred_fallthru
          _
        // Predicated region
        $region41: #{tpu_custom_call.1} parent=11 // pred_check
          %p382 = pneg %p219
        $region42: #{tpu_custom_call.1} parent=11 // pred_check_branch
          %384 = sbr.rel (%p382) target = $region44
        $region43: #{tpu_custom_call.1} parent=11 // pred_region
          %s386 = ssub.s32 256, 256
          %387 = vsyncadd [#allocation11], %s386
          %s388 = sshll.u32 [#allocation12], 4
          %s389 = int_to_ptr.vmem [resolvable:$true] %s388
          %394 = dma.hbm_to_vmem [thread:$0]  %s8, 256, %s389, [#allocation11], 64, 64, 4
        $region44: #{tpu_custom_call.1} parent=11 // pred_fallthru
          _
        // Predicated region
        $region45: #{tpu_custom_call.1} parent=11 // pred_check
          %p395 = pneg %p240
        $region46: #{tpu_custom_call.1} parent=11 // pred_check_branch
          %397 = sbr.rel (%p395) target = $region48
        $region47: #{tpu_custom_call.1} parent=11 // pred_region
          _
        $region48: #{tpu_custom_call.1} parent=11 // pred_fallthru
          _
        // Predicated region
        $region49: #{tpu_custom_call.1} parent=11 // pred_check
          %p398 = pneg %p261
        $region50: #{tpu_custom_call.1} parent=11 // pred_check_branch
          %400 = sbr.rel (%p398) target = $region52
        $region51: #{tpu_custom_call.1} parent=11 // pred_region
          %s402 = ssub.s32 256, 256
          %403 = vsyncadd [#allocation14], %s402
          %s404 = sshll.u32 [#allocation13], 4
          %s405 = int_to_ptr.vmem [resolvable:$true] %s404
          %410 = dma.hbm_to_vmem [thread:$0]  %s10, 256, %s405, [#allocation14], 128, 128, 8
        $region52: #{tpu_custom_call.1} parent=11 // pred_fallthru
          _
        // Predicated region
        $region53: #{tpu_custom_call.1} parent=11 // pred_check
          %p411 = pneg %p282
        $region54: #{tpu_custom_call.1} parent=11 // pred_check_branch
          %413 = sbr.rel (%p411) target = $region56
        $region55: #{tpu_custom_call.1} parent=11 // pred_region
          %s415 = ssub.s32 128, 128
          %416 = vsyncadd [#allocation14], %s415
          %s418 = sshll.u32 [#allocation15], 4
          %s419 = int_to_ptr.vmem [resolvable:$true] %s418
          %421 = dma.hbm_to_vmem [thread:$0]  %s11, 128, %s419, [#allocation14]
        $region56: #{tpu_custom_call.1} parent=11 // pred_fallthru
          _
      $region12: #{tpu_custom_call.1} parent=5 // pred_fallthru
        _
      %p422 = scmp.lt.s32.totalorder %s25, 2
      // Predicated region
      $region57: #{tpu_custom_call.1} parent=5 // pred_check
        %p423 = pneg %p422
      $region58: #{tpu_custom_call.1} parent=5 // pred_check_branch
        %425 = sbr.rel (%p423) target = $region60
      $region59: #{tpu_custom_call.1} parent=5 // pred_region
        // Predicated region
        $region61: #{tpu_custom_call.1} parent=59 // pred_check
          %p426 = pneg %p45
        $region62: #{tpu_custom_call.1} parent=59 // pred_check_branch
          %428 = sbr.rel (%p426) target = $region64
        $region63: #{tpu_custom_call.1} parent=59 // pred_region
          %p429 = scmp.lt.s32.totalorder %s25, 1
          %s430 = scalar_select %p429, %s25, 1
          %s431 = smul.addr %s430, 8
          %s432 = scalar_lea.vmem %s0, %s431
        $region64: #{tpu_custom_call.1} parent=59 // pred_fallthru
          _
      $region60: #{tpu_custom_call.1} parent=5 // pred_fallthru
        _
      %p433 = scmp.le.s32.totalorder 1, %s25
      %p434 = scmp.lt.s32.totalorder %s25, 3
      %p435 = pnand %p433, %p434
      %p436 = pneg %p435
      // Predicated region
      $region65: #{tpu_custom_call.1} parent=5 // pred_check
        _
      $region66: #{tpu_custom_call.1} parent=5 // pred_check_branch
        %438 = sbr.rel (%p435) target = $region68
      $region67: #{tpu_custom_call.1} parent=5 // pred_region
        %s439 = ssub.s32 %s25, 1
        // Predicated region
        $region69: #{tpu_custom_call.1} parent=67 // pred_check
          %p440 = pneg %p114
        $region70: #{tpu_custom_call.1} parent=67 // pred_check_branch
          %442 = sbr.rel (%p440) target = $region72
        $region71: #{tpu_custom_call.1} parent=67 // pred_region
          %443 = dma.done [#allocation5], 256
        $region72: #{tpu_custom_call.1} parent=67 // pred_fallthru
          _
        // Predicated region
        $region73: #{tpu_custom_call.1} parent=67 // pred_check
          %p444 = pneg %p135
        $region74: #{tpu_custom_call.1} parent=67 // pred_check_branch
          %446 = sbr.rel (%p444) target = $region76
        $region75: #{tpu_custom_call.1} parent=67 // pred_region
          %447 = dma.done [#allocation8], 16
        $region76: #{tpu_custom_call.1} parent=67 // pred_fallthru
          _
        // Predicated region
        $region77: #{tpu_custom_call.1} parent=67 // pred_check
          %p448 = pneg %p156
        $region78: #{tpu_custom_call.1} parent=67 // pred_check_branch
          %450 = sbr.rel (%p448) target = $region80
        $region79: #{tpu_custom_call.1} parent=67 // pred_region
          %451 = dma.done [#allocation8], 256
        $region80: #{tpu_custom_call.1} parent=67 // pred_fallthru
          _
        // Predicated region
        $region81: #{tpu_custom_call.1} parent=67 // pred_check
          %p452 = pneg %p177
        $region82: #{tpu_custom_call.1} parent=67 // pred_check_branch
          %454 = sbr.rel (%p452) target = $region84
        $region83: #{tpu_custom_call.1} parent=67 // pred_region
          %455 = dma.done [#allocation11], 256
        $region84: #{tpu_custom_call.1} parent=67 // pred_fallthru
          _
        // Predicated region
        $region85: #{tpu_custom_call.1} parent=67 // pred_check
          %p456 = pneg %p219
        $region86: #{tpu_custom_call.1} parent=67 // pred_check_branch
          %458 = sbr.rel (%p456) target = $region88
        $region87: #{tpu_custom_call.1} parent=67 // pred_region
          %459 = dma.done [#allocation11], 256
        $region88: #{tpu_custom_call.1} parent=67 // pred_fallthru
          _
        // Predicated region
        $region89: #{tpu_custom_call.1} parent=67 // pred_check
          %p460 = pneg %p261
        $region90: #{tpu_custom_call.1} parent=67 // pred_check_branch
          %462 = sbr.rel (%p460) target = $region92
        $region91: #{tpu_custom_call.1} parent=67 // pred_region
          %463 = dma.done [#allocation14], 256
        $region92: #{tpu_custom_call.1} parent=67 // pred_fallthru
          _
        // Predicated region
        $region93: #{tpu_custom_call.1} parent=67 // pred_check
          %p464 = pneg %p282
        $region94: #{tpu_custom_call.1} parent=67 // pred_check_branch
          %466 = sbr.rel (%p464) target = $region96
        $region95: #{tpu_custom_call.1} parent=67 // pred_region
          %467 = dma.done [#allocation14], 128
        $region96: #{tpu_custom_call.1} parent=67 // pred_fallthru
          _
        %p468 = scmp.lt.s32.totalorder %s30, 1
        %s469 = scalar_select %p468, %s30, 1
        %s470 = smul.addr %s469, 8
        %s471 = scalar_lea.vmem %s0, %s470
        %p472 = pneg %p51
        %p473 = pneg %p48
        %p474 = pneg %p72
        %p475 = pneg %p69
        %p476 = pneg %p93
        %p477 = pneg %p90
        %p478 = pneg %p114
        %p479 = pneg %p111
        %p480 = pneg %p135
        %p481 = pneg %p132
        %p482 = pneg %p156
        %p483 = pneg %p153
        %p484 = pneg %p177
        %p485 = pneg %p174
        %p486 = pneg %p198
        %p487 = pneg %p195
        %p488 = pneg %p219
        %p489 = pneg %p216
        %p490 = pneg %p240
        %p491 = pneg %p237
        %p492 = pneg %p261
        %p493 = pneg %p258
        %p494 = pneg %p282
        %p495 = pneg %p279
        %p496 = pneg %p308
        %p497 = pneg %p305
        %s498 = sand.u32 %s295, 1
        %s499 = scalar_lea.sflag [#allocation6], %s498
        %s500 = sand.u32 %s295, 1
        %s501 = smul.addr %s500, 8
        %s502 = scalar_lea.vmem [#allocation16], %s501
        %p503 = scmp.lt.s32.totalorder %s30, 1
        %s504 = scalar_select %p503, %s30, 1
        %s505 = smul.addr %s504, 8
        %s506 = scalar_lea.vmem %s0, %s505
        %v508 = vld [vmem:[%s506] sm:$0xff]
        %v509 = vld [vmem:[#allocation13] sm:$0x1]
        %v510 = vld [vmem:[#allocation13 + $0x1] sm:$0x1]
        %vm511 = vcmask 261120
        %v512 = vsel %vm511, %v508, 0.0
        %513 = vadd.xlane.f32.xlu0 %v512
        %v514 = vpop.xlane.xlu0 %513
        %v515 = vmul.f32 %v508, %v508
        %v516 = vsel %vm511, %v515, 0.0
        %517 = vadd.xlane.f32.xlu0 %v516
        %v518 = vpop.xlane.xlu0 %517
        %v519 = vmul.f32 %v514, 0.03125
        %v520 = vmul.f32 %v518, 0.03125
        %v521 = vmul.f32 %v519, %v519
        %v522 = vsub.f32 %v520, %v521
        %v523 = vsub.f32 %v508, %v519
        %v524 = vadd.f32 %v522, 1e-05
        %v525 = vrsqrt.pop %v524
        %v526 = vmul.f32 %v523, %v525
        %v527 = vlaneseq
        %v528 = vshrl.u32 %v527, 7
        %v529 = vsub.s32 0, %v528
        %v530 = vrot.slane %v509, %v529
        %v531 = vmul.f32 %v526, %v530
        %v532 = vlaneseq
        %v533 = vshrl.u32 %v532, 7
        %v534 = vsub.s32 0, %v533
        %v535 = vrot.slane %v510, %v534
        %v536 = vadd.f32 %v531, %v535
        %v537 = vpack.c.bf16 %v536, %v536
        %v538 = vld [vmem:[%s1] sm:$0xf]
        %v539 = vld [vmem:[%s1 + $0x4] sm:$0xf]
        %v540 = vld [vmem:[%s1 + $0x8] sm:$0xf]
        %v541 = vld [vmem:[%s1 + $0xc] sm:$0xf]
        %v542 = vld [vmem:[#allocation13 + $0x2] sm:$0x1]
        %v543 = vlaneseq
        %v544 = vshrl.u32 %v543, 7
        %v545 = vsub.s32 0, %v544
        %v546 = vrot.slane %v542, %v545
        %v551 = vunpack.c.l.b16 %v538
        %v552 = vunpack.c.l.b16 %v539
        %v553 = vunpack.c.l.b16 %v540
        %v554 = vunpack.c.l.b16 %v541
        %v555 = vpack.c.b16 %v552, %v551
        %v556 = vpack.c.b16 %v554, %v553
        %v560 = vsel %vm511, %v537, 0
        %562 = vmatprep.subr.bf16.mxu0 0
        %563 = vmatpush1.bf16.msra.mxu0 0
        %564 = vmatprep.subr.bf16.mxu0 0
        %565 = vmatpush1.bf16.msra.mxu0 0
        %566 = vmatprep.subr.bf16.mxu0 0
        %567 = vmatpush1.bf16.msra.mxu0 0
        %568 = vmatprep.subr.bf16.mxu0 0
        %569 = vmatpush1.bf16.msra.mxu0 0
        %570 = vmatprep.subr.bf16.mxu0 0
        %571 = vmatpush1.bf16.msra.mxu0 0
        %572 = vmatprep.subr.bf16.mxu0 0
        %573 = vmatpush1.bf16.msra.mxu0 0
        %574 = vmatprep.subr.bf16.mxu0 0
        %575 = vmatpush1.bf16.msra.mxu0 %v556
        %576 = vmatprep.subr.bf16.mxu0 0
        %577 = vmatpush1.bf16.msra.mxu0 %v555
        %578 = vmatprep.subr.bf16.mxu0 0
        %579 = vmatpush2.bf16.msra.mxu0 0
        %580 = vmatprep.subr.bf16.mxu0 0
        %581 = vmatpush2.bf16.msra.mxu0 0
        %582 = vmatprep.subr.bf16.mxu0 0
        %583 = vmatpush2.bf16.msra.mxu0 0
        %584 = vmatprep.subr.bf16.mxu0 0
        %585 = vmatpush2.bf16.msra.mxu0 0
        %586 = vmatprep.subr.bf16.mxu0 0
        %587 = vmatpush2.bf16.msra.mxu0 0
        %588 = vmatprep.subr.bf16.mxu0 0
        %589 = vmatpush2.bf16.msra.mxu0 0
        %590 = vmatprep.subr.bf16.mxu0 0
        %591 = vmatpush2.bf16.msra.mxu0 0
        %592 = vmatprep.subr.bf16.mxu0 0
        %593 = vmatpush2.bf16.msra.mxu0 0
        %594 = vmatprep.mubr.bf16.mxu0 0
        %595 = vmatmul.mubr.bf16.gmra.mxu0 %v560
        %v596 = vpop.f32.mrf.mxu0
        %v597 = vadd.f32 %v546, %v596
        %v598 = vpop.f32.mrf.mxu0
        %v599 = vpop.f32.mrf.mxu0
        %v600 = vpop.f32.mrf.mxu0
        %601 = vdwg.mxu0
        %v602 = vmul.f32 %v597, 0.5
        %v603 = vmul.f32 %v597, 0.044715
        %v604 = vmul.f32 %v603, %v597
        %v605 = vmul.f32 %v604, %v597
        %v606 = vadd.f32 %v597, %v605
        %v607 = vmul.f32 %v606, 0.7978846
        %v608 = vtanh.pop %v607
        %v609 = vadd.f32 %v608, 1.0
        %v610 = vmul.f32 %v602, %v609
        %v611 = vpack.c.bf16 %v610, %v610
        %v612 = vld [vmem:[%s2] sm:$0xf]
        %v613 = vld [vmem:[%s2 + $0x4] sm:$0xf]
        %v614 = vld [vmem:[%s2 + $0x8] sm:$0xf]
        %v615 = vld [vmem:[%s2 + $0xc] sm:$0xf]
        %v616 = vld [vmem:[#allocation13 + $0x3] sm:$0x1]
        %v617 = vlaneseq
        %v618 = vshrl.u32 %v617, 7
        %v619 = vsub.s32 0, %v618
        %v620 = vrot.slane %v616, %v619
        %v625 = vunpack.c.l.b16 %v612
        %v626 = vunpack.c.l.b16 %v613
        %v627 = vunpack.c.l.b16 %v614
        %v628 = vunpack.c.l.b16 %v615
        %v629 = vpack.c.b16 %v626, %v625
        %v630 = vpack.c.b16 %v628, %v627
        %v634 = vsel %vm511, %v611, 0
        %636 = vmatprep.subr.bf16.mxu0 0
        %637 = vmatpush1.bf16.msra.mxu0 0
        %638 = vmatprep.subr.bf16.mxu0 0
        %639 = vmatpush1.bf16.msra.mxu0 0
        %640 = vmatprep.subr.bf16.mxu0 0
        %641 = vmatpush1.bf16.msra.mxu0 0
        %642 = vmatprep.subr.bf16.mxu0 0
        %643 = vmatpush1.bf16.msra.mxu0 0
        %644 = vmatprep.subr.bf16.mxu0 0
        %645 = vmatpush1.bf16.msra.mxu0 0
        %646 = vmatprep.subr.bf16.mxu0 0
        %647 = vmatpush1.bf16.msra.mxu0 0
        %648 = vmatprep.subr.bf16.mxu0 0
        %649 = vmatpush1.bf16.msra.mxu0 %v630
        %650 = vmatprep.subr.bf16.mxu0 0
        %651 = vmatpush1.bf16.msra.mxu0 %v629
        %652 = vmatprep.subr.bf16.mxu0 0
        %653 = vmatpush2.bf16.msra.mxu0 0
        %654 = vmatprep.subr.bf16.mxu0 0
        %655 = vmatpush2.bf16.msra.mxu0 0
        %656 = vmatprep.subr.bf16.mxu0 0
        %657 = vmatpush2.bf16.msra.mxu0 0
        %658 = vmatprep.subr.bf16.mxu0 0
        %659 = vmatpush2.bf16.msra.mxu0 0
        %660 = vmatprep.subr.bf16.mxu0 0
        %661 = vmatpush2.bf16.msra.mxu0 0
        %662 = vmatprep.subr.bf16.mxu0 0
        %663 = vmatpush2.bf16.msra.mxu0 0
        %664 = vmatprep.subr.bf16.mxu0 0
        %665 = vmatpush2.bf16.msra.mxu0 0
        %666 = vmatprep.subr.bf16.mxu0 0
        %667 = vmatpush2.bf16.msra.mxu0 0
        %668 = vmatprep.mubr.bf16.mxu0 0
        %669 = vmatmul.mubr.bf16.gmra.mxu0 %v634
        %v670 = vpop.f32.mrf.mxu0
        %v671 = vadd.f32 %v620, %v670
        %v672 = vpop.f32.mrf.mxu0
        %v673 = vpop.f32.mrf.mxu0
        %v674 = vpop.f32.mrf.mxu0
        %675 = vdwg.mxu0
        %v676 = vmul.f32 %v671, 0.5
        %v677 = vadd.f32 %v676, %v508
        %v678 = vpack.c.bf16 %v677, %v677
        %v679 = vld [vmem:[#allocation4] sm:$0xf]
        %v680 = vld [vmem:[#allocation4 + $0x4] sm:$0xf]
        %v681 = vld [vmem:[#allocation4 + $0x8] sm:$0xf]
        %v682 = vld [vmem:[#allocation4 + $0xc] sm:$0xf]
        %v683 = vld [vmem:[#allocation7] sm:$0x1]
        %v685 = vlaneseq
        %v686 = vshrl.u32 %v685, 7
        %v687 = vsub.s32 0, %v686
        %v688 = vrot.slane %v683, %v687
        %v694 = vunpack.c.l.b16 %v679
        %v695 = vunpack.c.l.b16 %v680
        %v696 = vunpack.c.l.b16 %v681
        %v697 = vunpack.c.l.b16 %v682
        %v698 = vpack.c.b16 %v695, %v694
        %v699 = vpack.c.b16 %v697, %v696
        %v703 = vsel %vm511, %v678, 0
        %705 = vmatprep.subr.bf16.mxu0 0
        %706 = vmatpush1.bf16.msra.mxu0 0
        %707 = vmatprep.subr.bf16.mxu0 0
        %708 = vmatpush1.bf16.msra.mxu0 0
        %709 = vmatprep.subr.bf16.mxu0 0
        %710 = vmatpush1.bf16.msra.mxu0 0
        %711 = vmatprep.subr.bf16.mxu0 0
        %712 = vmatpush1.bf16.msra.mxu0 0
        %713 = vmatprep.subr.bf16.mxu0 0
        %714 = vmatpush1.bf16.msra.mxu0 0
        %715 = vmatprep.subr.bf16.mxu0 0
        %716 = vmatpush1.bf16.msra.mxu0 0
        %717 = vmatprep.subr.bf16.mxu0 0
        %718 = vmatpush1.bf16.msra.mxu0 %v699
        %719 = vmatprep.subr.bf16.mxu0 0
        %720 = vmatpush1.bf16.msra.mxu0 %v698
        %721 = vmatprep.subr.bf16.mxu0 0
        %722 = vmatpush2.bf16.msra.mxu0 0
        %723 = vmatprep.subr.bf16.mxu0 0
        %724 = vmatpush2.bf16.msra.mxu0 0
        %725 = vmatprep.subr.bf16.mxu0 0
        %726 = vmatpush2.bf16.msra.mxu0 0
        %727 = vmatprep.subr.bf16.mxu0 0
        %728 = vmatpush2.bf16.msra.mxu0 0
        %729 = vmatprep.subr.bf16.mxu0 0
        %730 = vmatpush2.bf16.msra.mxu0 0
        %731 = vmatprep.subr.bf16.mxu0 0
        %732 = vmatpush2.bf16.msra.mxu0 0
        %733 = vmatprep.subr.bf16.mxu0 0
        %734 = vmatpush2.bf16.msra.mxu0 0
        %735 = vmatprep.subr.bf16.mxu0 0
        %736 = vmatpush2.bf16.msra.mxu0 0
        %737 = vmatprep.mubr.bf16.mxu0 0
        %738 = vmatmul.mubr.bf16.gmra.mxu0 %v703
        %v739 = vpop.f32.mrf.mxu0
        %v740 = vadd.f32 %v688, %v739
        %v741 = vpop.f32.mrf.mxu0
        %v742 = vpop.f32.mrf.mxu0
        %v743 = vpop.f32.mrf.mxu0
        %744 = vdwg.mxu0
        %vm745 = vcmask 785408
        %746 = vst.msk [vmem:[#allocation2] sm:$0xff] %vm745, %v740
        %v747 = vld [vmem:[#allocation2] sm:$0xff]
        %v748 = vpack.c.bf16 %v747, %v747
        %750 = vrot.lane.b32.xlu0 %v748, 96
        %v751 = vpop.permute.xlu0 %750
        %vm752 = vcmask 31744
        %v754 = vsel %vm752, %v748, 0
        %v757 = vsel %vm752, %v751, 0
        %759 = vmatprep.subr.bf16.mxu0 0
        %760 = vmatpush1.bf16.xpose.msra.mxu0 0
        %761 = vmatprep.subr.bf16.mxu0 0
        %762 = vmatpush1.bf16.xpose.msra.mxu0 0
        %763 = vmatprep.subr.bf16.mxu0 0
        %764 = vmatpush1.bf16.xpose.msra.mxu0 0
        %765 = vmatprep.subr.bf16.mxu0 0
        %766 = vmatpush1.bf16.xpose.msra.mxu0 0
        %767 = vmatprep.subr.bf16.mxu0 0
        %768 = vmatpush1.bf16.xpose.msra.mxu0 0
        %769 = vmatprep.subr.bf16.mxu0 0
        %770 = vmatpush1.bf16.xpose.msra.mxu0 0
        %771 = vmatprep.subr.bf16.mxu0 0
        %772 = vmatpush1.bf16.xpose.msra.mxu0 0
        %773 = vmatprep.subr.bf16.mxu0 0
        %774 = vmatpush1.bf16.xpose.msra.mxu0 %v757
        %775 = vmatprep.subr.bf16.mxu0 0
        %776 = vmatpush2.bf16.xpose.msra.mxu0 0
        %777 = vmatprep.subr.bf16.mxu0 0
        %778 = vmatpush2.bf16.xpose.msra.mxu0 0
        %779 = vmatprep.subr.bf16.mxu0 0
        %780 = vmatpush2.bf16.xpose.msra.mxu0 0
        %781 = vmatprep.subr.bf16.mxu0 0
        %782 = vmatpush2.bf16.xpose.msra.mxu0 0
        %783 = vmatprep.subr.bf16.mxu0 0
        %784 = vmatpush2.bf16.xpose.msra.mxu0 0
        %785 = vmatprep.subr.bf16.mxu0 0
        %786 = vmatpush2.bf16.xpose.msra.mxu0 0
        %787 = vmatprep.subr.bf16.mxu0 0
        %788 = vmatpush2.bf16.xpose.msra.mxu0 0
        %789 = vmatprep.subr.bf16.mxu0 0
        %790 = vmatpush2.bf16.xpose.msra.mxu0 0
        %791 = vmatprep.mubr.bf16.mxu0 0
        %792 = vmatmul.mubr.bf16.gmra.mxu0 %v754
        %v793 = vpop.f32.mrf.mxu0
        %v794 = vadd.f32 0.0, %v793
        %v795 = vpop.f32.mrf.mxu0
        %v796 = vpop.f32.mrf.mxu0
        %v797 = vpop.f32.mrf.mxu0
        %798 = vdwg.mxu0
        %vm799 = vcmask 64512
        %v800 = vsel %vm799, %v794, -inf
        %801 = vmax.xlane.f32.xlu0 %v800
        %v802 = vpop.xlane.xlu0 %801
        %v803 = vsub.f32 %v794, %v802
        %v804 = vpack.c.bf16 %v803, %v803
        %v806 = vmul.bf16 %v804, 1069105081
        %v807 = vpow.bf16.pop %v806
        %v808 = vunpack.c.l.bf16 %v807
        %v809 = vsel %vm799, %v808, 0.0
        %810 = vadd.xlane.f32.xlu0 %v809
        %v811 = vpop.xlane.xlu0 %810
        %812 = vrot.lane.b32.xlu0 %v748, 64
        %v813 = vpop.permute.xlu0 %812
        %v815 = vsel %vm799, %v807, 0
        %vm817 = vcmask 1043456
        %v819 = vsel %vm817, %v813, 0
        %821 = vmatprep.subr.bf16.mxu0 0
        %822 = vmatpush1.bf16.msra.mxu0 0
        %823 = vmatprep.subr.bf16.mxu0 0
        %824 = vmatpush1.bf16.msra.mxu0 0
        %825 = vmatprep.subr.bf16.mxu0 0
        %826 = vmatpush1.bf16.msra.mxu0 0
        %827 = vmatprep.subr.bf16.mxu0 0
        %828 = vmatpush1.bf16.msra.mxu0 0
        %829 = vmatprep.subr.bf16.mxu0 0
        %830 = vmatpush1.bf16.msra.mxu0 0
        %831 = vmatprep.subr.bf16.mxu0 0
        %832 = vmatpush1.bf16.msra.mxu0 0
        %833 = vmatprep.subr.bf16.mxu0 0
        %834 = vmatpush1.bf16.msra.mxu0 0
        %835 = vmatprep.subr.bf16.mxu0 0
        %836 = vmatpush1.bf16.msra.mxu0 %v819
        %837 = vmatprep.subr.bf16.mxu0 0
        %838 = vmatpush2.bf16.msra.mxu0 0
        %839 = vmatprep.subr.bf16.mxu0 0
        %840 = vmatpush2.bf16.msra.mxu0 0
        %841 = vmatprep.subr.bf16.mxu0 0
        %842 = vmatpush2.bf16.msra.mxu0 0
        %843 = vmatprep.subr.bf16.mxu0 0
        %844 = vmatpush2.bf16.msra.mxu0 0
        %845 = vmatprep.subr.bf16.mxu0 0
        %846 = vmatpush2.bf16.msra.mxu0 0
        %847 = vmatprep.subr.bf16.mxu0 0
        %848 = vmatpush2.bf16.msra.mxu0 0
        %849 = vmatprep.subr.bf16.mxu0 0
        %850 = vmatpush2.bf16.msra.mxu0 0
        %851 = vmatprep.subr.bf16.mxu0 0
        %852 = vmatpush2.bf16.msra.mxu0 0
        %853 = vmatprep.mubr.bf16.mxu0 0
        %854 = vmatmul.mubr.bf16.gmra.mxu0 %v815
        %v855 = vpop.f32.mrf.mxu0
        %v856 = vadd.f32 0.0, %v855
        %v857 = vpop.f32.mrf.mxu0
        %v858 = vpop.f32.mrf.mxu0
        %v859 = vpop.f32.mrf.mxu0
        %860 = vdwg.mxu0
        %v861 = vrcp.pop %v811
        %v862 = vmul.f32 %v856, %v861
        %v863 = vpack.c.bf16 %v862, %v862
        %v864 = vld [vmem:[#allocation9] sm:$0x3]
        %865 = vrot.lane.b32.xlu0 %v748, 124
        %v866 = vpop.permute.xlu0 %865
        %867 = vrot.lane.b32.xlu0 %v748, 92
        %v868 = vpop.permute.xlu0 %867
        %v870 = vsel %vm752, %v866, 0
        %v873 = vsel %vm752, %v868, 0
        %875 = vmatprep.subr.bf16.mxu0 0
        %876 = vmatpush1.bf16.xpose.msra.mxu0 0
        %877 = vmatprep.subr.bf16.mxu0 0
        %878 = vmatpush1.bf16.xpose.msra.mxu0 0
        %879 = vmatprep.subr.bf16.mxu0 0
        %880 = vmatpush1.bf16.xpose.msra.mxu0 0
        %881 = vmatprep.subr.bf16.mxu0 0
        %882 = vmatpush1.bf16.xpose.msra.mxu0 0
        %883 = vmatprep.subr.bf16.mxu0 0
        %884 = vmatpush1.bf16.xpose.msra.mxu0 0
        %885 = vmatprep.subr.bf16.mxu0 0
        %886 = vmatpush1.bf16.xpose.msra.mxu0 0
        %887 = vmatprep.subr.bf16.mxu0 0
        %888 = vmatpush1.bf16.xpose.msra.mxu0 0
        %889 = vmatprep.subr.bf16.mxu0 0
        %890 = vmatpush1.bf16.xpose.msra.mxu0 %v873
        %891 = vmatprep.subr.bf16.mxu0 0
        %892 = vmatpush2.bf16.xpose.msra.mxu0 0
        %893 = vmatprep.subr.bf16.mxu0 0
        %894 = vmatpush2.bf16.xpose.msra.mxu0 0
        %895 = vmatprep.subr.bf16.mxu0 0
        %896 = vmatpush2.bf16.xpose.msra.mxu0 0
        %897 = vmatprep.subr.bf16.mxu0 0
        %898 = vmatpush2.bf16.xpose.msra.mxu0 0
        %899 = vmatprep.subr.bf16.mxu0 0
        %900 = vmatpush2.bf16.xpose.msra.mxu0 0
        %901 = vmatprep.subr.bf16.mxu0 0
        %902 = vmatpush2.bf16.xpose.msra.mxu0 0
        %903 = vmatprep.subr.bf16.mxu0 0
        %904 = vmatpush2.bf16.xpose.msra.mxu0 0
        %905 = vmatprep.subr.bf16.mxu0 0
        %906 = vmatpush2.bf16.xpose.msra.mxu0 0
        %907 = vmatprep.mubr.bf16.mxu0 0
        %908 = vmatmul.mubr.bf16.gmra.mxu0 %v870
        %v909 = vpop.f32.mrf.mxu0
        %v910 = vadd.f32 0.0, %v909
        %v911 = vpop.f32.mrf.mxu0
        %v912 = vpop.f32.mrf.mxu0
        %v913 = vpop.f32.mrf.mxu0
        %914 = vdwg.mxu0
        %v915 = vsel %vm799, %v910, -inf
        %916 = vmax.xlane.f32.xlu0 %v915
        %v917 = vpop.xlane.xlu0 %916
        %v918 = vsub.f32 %v910, %v917
        %v919 = vpack.c.bf16 %v918, %v918
        %v921 = vmul.bf16 %v919, 1069105081
        %v922 = vpow.bf16.pop %v921
        %v923 = vunpack.c.l.bf16 %v922
        %v924 = vsel %vm799, %v923, 0.0
        %925 = vadd.xlane.f32.xlu0 %v924
        %v926 = vpop.xlane.xlu0 %925
        %927 = vrot.lane.b32.xlu0 %v748, 60
        %v928 = vpop.permute.xlu0 %927
        %v930 = vsel %vm799, %v922, 0
        %v933 = vsel %vm817, %v928, 0
        %935 = vmatprep.subr.bf16.mxu0 0
        %936 = vmatpush1.bf16.msra.mxu0 0
        %937 = vmatprep.subr.bf16.mxu0 0
        %938 = vmatpush1.bf16.msra.mxu0 0
        %939 = vmatprep.subr.bf16.mxu0 0
        %940 = vmatpush1.bf16.msra.mxu0 0
        %941 = vmatprep.subr.bf16.mxu0 0
        %942 = vmatpush1.bf16.msra.mxu0 0
        %943 = vmatprep.subr.bf16.mxu0 0
        %944 = vmatpush1.bf16.msra.mxu0 0
        %945 = vmatprep.subr.bf16.mxu0 0
        %946 = vmatpush1.bf16.msra.mxu0 0
        %947 = vmatprep.subr.bf16.mxu0 0
        %948 = vmatpush1.bf16.msra.mxu0 0
        %949 = vmatprep.subr.bf16.mxu0 0
        %950 = vmatpush1.bf16.msra.mxu0 %v933
        %951 = vmatprep.subr.bf16.mxu0 0
        %952 = vmatpush2.bf16.msra.mxu0 0
        %953 = vmatprep.subr.bf16.mxu0 0
        %954 = vmatpush2.bf16.msra.mxu0 0
        %955 = vmatprep.subr.bf16.mxu0 0
        %956 = vmatpush2.bf16.msra.mxu0 0
        %957 = vmatprep.subr.bf16.mxu0 0
        %958 = vmatpush2.bf16.msra.mxu0 0
        %959 = vmatprep.subr.bf16.mxu0 0
        %960 = vmatpush2.bf16.msra.mxu0 0
        %961 = vmatprep.subr.bf16.mxu0 0
        %962 = vmatpush2.bf16.msra.mxu0 0
        %963 = vmatprep.subr.bf16.mxu0 0
        %964 = vmatpush2.bf16.msra.mxu0 0
        %965 = vmatprep.subr.bf16.mxu0 0
        %966 = vmatpush2.bf16.msra.mxu0 0
        %967 = vmatprep.mubr.bf16.mxu0 0
        %968 = vmatmul.mubr.bf16.gmra.mxu0 %v930
        %v969 = vpop.f32.mrf.mxu0
        %v970 = vadd.f32 0.0, %v969
        %v971 = vpop.f32.mrf.mxu0
        %v972 = vpop.f32.mrf.mxu0
        %v973 = vpop.f32.mrf.mxu0
        %974 = vdwg.mxu0
        %v975 = vrcp.pop %v926
        %v976 = vmul.f32 %v970, %v975
        %v977 = vpack.c.bf16 %v976, %v976
        %v978 = vld [vmem:[#allocation9] sm:$0xc]
        %v980 = vunpack.c.l.b16 %v978
        %v981 = vpack.c.b16 %v980, %v980
        %v982 = vrot.slane %v981, 2
        %v984 = vsel %vm752, %v977, 0
        %vm986 = vcmask 1041408
        %v988 = vsel %vm986, %v982, 0
        %990 = vmatprep.subr.bf16.mxu0 0
        %991 = vmatpush1.bf16.msra.mxu0 0
        %992 = vmatprep.subr.bf16.mxu0 0
        %993 = vmatpush1.bf16.msra.mxu0 0
        %994 = vmatprep.subr.bf16.mxu0 0
        %995 = vmatpush1.bf16.msra.mxu0 0
        %996 = vmatprep.subr.bf16.mxu0 0
        %997 = vmatpush1.bf16.msra.mxu0 0
        %998 = vmatprep.subr.bf16.mxu0 0
        %999 = vmatpush1.bf16.msra.mxu0 0
        %1000 = vmatprep.subr.bf16.mxu0 0
        %1001 = vmatpush1.bf16.msra.mxu0 0
        %1002 = vmatprep.subr.bf16.mxu0 0
        %1003 = vmatpush1.bf16.msra.mxu0 0
        %1004 = vmatprep.subr.bf16.mxu0 0
        %1005 = vmatpush1.bf16.msra.mxu0 %v988
        %1006 = vmatprep.subr.bf16.mxu0 0
        %1007 = vmatpush2.bf16.msra.mxu0 0
        %1008 = vmatprep.subr.bf16.mxu0 0
        %1009 = vmatpush2.bf16.msra.mxu0 0
        %1010 = vmatprep.subr.bf16.mxu0 0
        %1011 = vmatpush2.bf16.msra.mxu0 0
        %1012 = vmatprep.subr.bf16.mxu0 0
        %1013 = vmatpush2.bf16.msra.mxu0 0
        %1014 = vmatprep.subr.bf16.mxu0 0
        %1015 = vmatpush2.bf16.msra.mxu0 0
        %1016 = vmatprep.subr.bf16.mxu0 0
        %1017 = vmatpush2.bf16.msra.mxu0 0
        %1018 = vmatprep.subr.bf16.mxu0 0
        %1019 = vmatpush2.bf16.msra.mxu0 0
        %1020 = vmatprep.subr.bf16.mxu0 0
        %1021 = vmatpush2.bf16.msra.mxu0 0
        %1022 = vmatprep.mubr.bf16.mxu0 0
        %1023 = vmatmul.mubr.bf16.gmra.mxu0 %v984
        %v1024 = vpop.f32.mrf.mxu0
        %v1025 = vadd.f32 0.0, %v1024
        %v1026 = vpop.f32.mrf.mxu0
        %v1027 = vpop.f32.mrf.mxu0
        %v1028 = vpop.f32.mrf.mxu0
        %1029 = vdwg.mxu0
        %v1031 = vsel %vm752, %v863, 0
        %v1034 = vsel %vm986, %v864, 0
        %1036 = vmatprep.subr.bf16.mxu0 0
        %1037 = vmatpush1.bf16.msra.mxu0 0
        %1038 = vmatprep.subr.bf16.mxu0 0
        %1039 = vmatpush1.bf16.msra.mxu0 0
        %1040 = vmatprep.subr.bf16.mxu0 0
        %1041 = vmatpush1.bf16.msra.mxu0 0
        %1042 = vmatprep.subr.bf16.mxu0 0
        %1043 = vmatpush1.bf16.msra.mxu0 0
        %1044 = vmatprep.subr.bf16.mxu0 0
        %1045 = vmatpush1.bf16.msra.mxu0 0
        %1046 = vmatprep.subr.bf16.mxu0 0
        %1047 = vmatpush1.bf16.msra.mxu0 0
        %1048 = vmatprep.subr.bf16.mxu0 0
        %1049 = vmatpush1.bf16.msra.mxu0 0
        %1050 = vmatprep.subr.bf16.mxu0 0
        %1051 = vmatpush1.bf16.msra.mxu0 %v1034
        %1052 = vmatprep.subr.bf16.mxu0 0
        %1053 = vmatpush2.bf16.msra.mxu0 0
        %1054 = vmatprep.subr.bf16.mxu0 0
        %1055 = vmatpush2.bf16.msra.mxu0 0
        %1056 = vmatprep.subr.bf16.mxu0 0
        %1057 = vmatpush2.bf16.msra.mxu0 0
        %1058 = vmatprep.subr.bf16.mxu0 0
        %1059 = vmatpush2.bf16.msra.mxu0 0
        %1060 = vmatprep.subr.bf16.mxu0 0
        %1061 = vmatpush2.bf16.msra.mxu0 0
        %1062 = vmatprep.subr.bf16.mxu0 0
        %1063 = vmatpush2.bf16.msra.mxu0 0
        %1064 = vmatprep.subr.bf16.mxu0 0
        %1065 = vmatpush2.bf16.msra.mxu0 0
        %1066 = vmatprep.subr.bf16.mxu0 0
        %1067 = vmatpush2.bf16.msra.mxu0 0
        %1068 = vmatprep.mubr.bf16.mxu0 0
        %1069 = vmatmul.mubr.bf16.gmra.mxu0 %v1031
        %v1070 = vpop.f32.mrf.mxu0
        %v1071 = vadd.f32 %v1025, %v1070
        %v1072 = vpop.f32.mrf.mxu0
        %v1073 = vpop.f32.mrf.mxu0
        %v1074 = vpop.f32.mrf.mxu0
        %1075 = vdwg.mxu0
        %1076 = vrot.lane.b32.xlu0 %v748, 120
        %v1077 = vpop.permute.xlu0 %1076
        %1078 = vrot.lane.b32.xlu0 %v748, 88
        %v1079 = vpop.permute.xlu0 %1078
        %v1081 = vsel %vm752, %v1077, 0
        %v1084 = vsel %vm752, %v1079, 0
        %1086 = vmatprep.subr.bf16.mxu0 0
        %1087 = vmatpush1.bf16.xpose.msra.mxu0 0
        %1088 = vmatprep.subr.bf16.mxu0 0
        %1089 = vmatpush1.bf16.xpose.msra.mxu0 0
        %1090 = vmatprep.subr.bf16.mxu0 0
        %1091 = vmatpush1.bf16.xpose.msra.mxu0 0
        %1092 = vmatprep.subr.bf16.mxu0 0
        %1093 = vmatpush1.bf16.xpose.msra.mxu0 0
        %1094 = vmatprep.subr.bf16.mxu0 0
        %1095 = vmatpush1.bf16.xpose.msra.mxu0 0
        %1096 = vmatprep.subr.bf16.mxu0 0
        %1097 = vmatpush1.bf16.xpose.msra.mxu0 0
        %1098 = vmatprep.subr.bf16.mxu0 0
        %1099 = vmatpush1.bf16.xpose.msra.mxu0 0
        %1100 = vmatprep.subr.bf16.mxu0 0
        %1101 = vmatpush1.bf16.xpose.msra.mxu0 %v1084
        %1102 = vmatprep.subr.bf16.mxu0 0
        %1103 = vmatpush2.bf16.xpose.msra.mxu0 0
        %1104 = vmatprep.subr.bf16.mxu0 0
        %1105 = vmatpush2.bf16.xpose.msra.mxu0 0
        %1106 = vmatprep.subr.bf16.mxu0 0
        %1107 = vmatpush2.bf16.xpose.msra.mxu0 0
        %1108 = vmatprep.subr.bf16.mxu0 0
        %1109 = vmatpush2.bf16.xpose.msra.mxu0 0
        %1110 = vmatprep.subr.bf16.mxu0 0
        %1111 = vmatpush2.bf16.xpose.msra.mxu0 0
        %1112 = vmatprep.subr.bf16.mxu0 0
        %1113 = vmatpush2.bf16.xpose.msra.mxu0 0
        %1114 = vmatprep.subr.bf16.mxu0 0
        %1115 = vmatpush2.bf16.xpose.msra.mxu0 0
        %1116 = vmatprep.subr.bf16.mxu0 0
        %1117 = vmatpush2.bf16.xpose.msra.mxu0 0
        %1118 = vmatprep.mubr.bf16.mxu0 0
        %1119 = vmatmul.mubr.bf16.gmra.mxu0 %v1081
        %v1120 = vpop.f32.mrf.mxu0
        %v1121 = vadd.f32 0.0, %v1120
        %v1122 = vpop.f32.mrf.mxu0
        %v1123 = vpop.f32.mrf.mxu0
        %v1124 = vpop.f32.mrf.mxu0
        %1125 = vdwg.mxu0
        %v1126 = vsel %vm799, %v1121, -inf
        %1127 = vmax.xlane.f32.xlu0 %v1126
        %v1128 = vpop.xlane.xlu0 %1127
        %v1129 = vsub.f32 %v1121, %v1128
        %v1130 = vpack.c.bf16 %v1129, %v1129
        %v1132 = vmul.bf16 %v1130, 1069105081
        %v1133 = vpow.bf16.pop %v1132
        %v1134 = vunpack.c.l.bf16 %v1133
        %v1135 = vsel %vm799, %v1134, 0.0
        %1136 = vadd.xlane.f32.xlu0 %v1135
        %v1137 = vpop.xlane.xlu0 %1136
        %1138 = vrot.lane.b32.xlu0 %v748, 56
        %v1139 = vpop.permute.xlu0 %1138
        %v1141 = vsel %vm799, %v1133, 0
        %v1144 = vsel %vm817, %v1139, 0
        %1146 = vmatprep.subr.bf16.mxu0 0
        %1147 = vmatpush1.bf16.msra.mxu0 0
        %1148 = vmatprep.subr.bf16.mxu0 0
        %1149 = vmatpush1.bf16.msra.mxu0 0
        %1150 = vmatprep.subr.bf16.mxu0 0
        %1151 = vmatpush1.bf16.msra.mxu0 0
        %1152 = vmatprep.subr.bf16.mxu0 0
        %1153 = vmatpush1.bf16.msra.mxu0 0
        %1154 = vmatprep.subr.bf16.mxu0 0
        %1155 = vmatpush1.bf16.msra.mxu0 0
        %1156 = vmatprep.subr.bf16.mxu0 0
        %1157 = vmatpush1.bf16.msra.mxu0 0
        %1158 = vmatprep.subr.bf16.mxu0 0
        %1159 = vmatpush1.bf16.msra.mxu0 0
        %1160 = vmatprep.subr.bf16.mxu0 0
        %1161 = vmatpush1.bf16.msra.mxu0 %v1144
        %1162 = vmatprep.subr.bf16.mxu0 0
        %1163 = vmatpush2.bf16.msra.mxu0 0
        %1164 = vmatprep.subr.bf16.mxu0 0
        %1165 = vmatpush2.bf16.msra.mxu0 0
        %1166 = vmatprep.subr.bf16.mxu0 0
        %1167 = vmatpush2.bf16.msra.mxu0 0
        %1168 = vmatprep.subr.bf16.mxu0 0
        %1169 = vmatpush2.bf16.msra.mxu0 0
        %1170 = vmatprep.subr.bf16.mxu0 0
        %1171 = vmatpush2.bf16.msra.mxu0 0
        %1172 = vmatprep.subr.bf16.mxu0 0
        %1173 = vmatpush2.bf16.msra.mxu0 0
        %1174 = vmatprep.subr.bf16.mxu0 0
        %1175 = vmatpush2.bf16.msra.mxu0 0
        %1176 = vmatprep.subr.bf16.mxu0 0
        %1177 = vmatpush2.bf16.msra.mxu0 0
        %1178 = vmatprep.mubr.bf16.mxu0 0
        %1179 = vmatmul.mubr.bf16.gmra.mxu0 %v1141
        %v1180 = vpop.f32.mrf.mxu0
        %v1181 = vadd.f32 0.0, %v1180
        %v1182 = vpop.f32.mrf.mxu0
        %v1183 = vpop.f32.mrf.mxu0
        %v1184 = vpop.f32.mrf.mxu0
        %1185 = vdwg.mxu0
        %v1186 = vrcp.pop %v1137
        %v1187 = vmul.f32 %v1181, %v1186
        %v1188 = vpack.c.bf16 %v1187, %v1187
        %v1189 = vld [vmem:[#allocation9 + $0x4] sm:$0x3]
        %v1191 = vsel %vm752, %v1188, 0
        %v1194 = vsel %vm986, %v1189, 0
        %1196 = vmatprep.subr.bf16.mxu0 0
        %1197 = vmatpush1.bf16.msra.mxu0 0
        %1198 = vmatprep.subr.bf16.mxu0 0
        %1199 = vmatpush1.bf16.msra.mxu0 0
        %1200 = vmatprep.subr.bf16.mxu0 0
        %1201 = vmatpush1.bf16.msra.mxu0 0
        %1202 = vmatprep.subr.bf16.mxu0 0
        %1203 = vmatpush1.bf16.msra.mxu0 0
        %1204 = vmatprep.subr.bf16.mxu0 0
        %1205 = vmatpush1.bf16.msra.mxu0 0
        %1206 = vmatprep.subr.bf16.mxu0 0
        %1207 = vmatpush1.bf16.msra.mxu0 0
        %1208 = vmatprep.subr.bf16.mxu0 0
        %1209 = vmatpush1.bf16.msra.mxu0 0
        %1210 = vmatprep.subr.bf16.mxu0 0
        %1211 = vmatpush1.bf16.msra.mxu0 %v1194
        %1212 = vmatprep.subr.bf16.mxu0 0
        %1213 = vmatpush2.bf16.msra.mxu0 0
        %1214 = vmatprep.subr.bf16.mxu0 0
        %1215 = vmatpush2.bf16.msra.mxu0 0
        %1216 = vmatprep.subr.bf16.mxu0 0
        %1217 = vmatpush2.bf16.msra.mxu0 0
        %1218 = vmatprep.subr.bf16.mxu0 0
        %1219 = vmatpush2.bf16.msra.mxu0 0
        %1220 = vmatprep.subr.bf16.mxu0 0
        %1221 = vmatpush2.bf16.msra.mxu0 0
        %1222 = vmatprep.subr.bf16.mxu0 0
        %1223 = vmatpush2.bf16.msra.mxu0 0
        %1224 = vmatprep.subr.bf16.mxu0 0
        %1225 = vmatpush2.bf16.msra.mxu0 0
        %1226 = vmatprep.subr.bf16.mxu0 0
        %1227 = vmatpush2.bf16.msra.mxu0 0
        %1228 = vmatprep.mubr.bf16.mxu0 0
        %1229 = vmatmul.mubr.bf16.gmra.mxu0 %v1191
        %v1230 = vpop.f32.mrf.mxu0
        %v1231 = vadd.f32 0.0, %v1230
        %v1232 = vpop.f32.mrf.mxu0
        %v1233 = vpop.f32.mrf.mxu0
        %v1234 = vpop.f32.mrf.mxu0
        %1235 = vdwg.mxu0
        %v1236 = vadd.f32 %v1071, %v1231
        %1237 = vrot.lane.b32.xlu0 %v748, 116
        %v1238 = vpop.permute.xlu0 %1237
        %1239 = vrot.lane.b32.xlu0 %v748, 84
        %v1240 = vpop.permute.xlu0 %1239
        %v1242 = vsel %vm752, %v1238, 0
        %v1245 = vsel %vm752, %v1240, 0
        %1247 = vmatprep.subr.bf16.mxu0 0
        %1248 = vmatpush1.bf16.xpose.msra.mxu0 0
        %1249 = vmatprep.subr.bf16.mxu0 0
        %1250 = vmatpush1.bf16.xpose.msra.mxu0 0
        %1251 = vmatprep.subr.bf16.mxu0 0
        %1252 = vmatpush1.bf16.xpose.msra.mxu0 0
        %1253 = vmatprep.subr.bf16.mxu0 0
        %1254 = vmatpush1.bf16.xpose.msra.mxu0 0
        %1255 = vmatprep.subr.bf16.mxu0 0
        %1256 = vmatpush1.bf16.xpose.msra.mxu0 0
        %1257 = vmatprep.subr.bf16.mxu0 0
        %1258 = vmatpush1.bf16.xpose.msra.mxu0 0
        %1259 = vmatprep.subr.bf16.mxu0 0
        %1260 = vmatpush1.bf16.xpose.msra.mxu0 0
        %1261 = vmatprep.subr.bf16.mxu0 0
        %1262 = vmatpush1.bf16.xpose.msra.mxu0 %v1245
        %1263 = vmatprep.subr.bf16.mxu0 0
        %1264 = vmatpush2.bf16.xpose.msra.mxu0 0
        %1265 = vmatprep.subr.bf16.mxu0 0
        %1266 = vmatpush2.bf16.xpose.msra.mxu0 0
        %1267 = vmatprep.subr.bf16.mxu0 0
        %1268 = vmatpush2.bf16.xpose.msra.mxu0 0
        %1269 = vmatprep.subr.bf16.mxu0 0
        %1270 = vmatpush2.bf16.xpose.msra.mxu0 0
        %1271 = vmatprep.subr.bf16.mxu0 0
        %1272 = vmatpush2.bf16.xpose.msra.mxu0 0
        %1273 = vmatprep.subr.bf16.mxu0 0
        %1274 = vmatpush2.bf16.xpose.msra.mxu0 0
        %1275 = vmatprep.subr.bf16.mxu0 0
        %1276 = vmatpush2.bf16.xpose.msra.mxu0 0
        %1277 = vmatprep.subr.bf16.mxu0 0
        %1278 = vmatpush2.bf16.xpose.msra.mxu0 0
        %1279 = vmatprep.mubr.bf16.mxu0 0
        %1280 = vmatmul.mubr.bf16.gmra.mxu0 %v1242
        %v1281 = vpop.f32.mrf.mxu0
        %v1282 = vadd.f32 0.0, %v1281
        %v1283 = vpop.f32.mrf.mxu0
        %v1284 = vpop.f32.mrf.mxu0
        %v1285 = vpop.f32.mrf.mxu0
        %1286 = vdwg.mxu0
        %v1287 = vsel %vm799, %v1282, -inf
        %1288 = vmax.xlane.f32.xlu0 %v1287
        %v1289 = vpop.xlane.xlu0 %1288
        %v1290 = vsub.f32 %v1282, %v1289
        %v1291 = vpack.c.bf16 %v1290, %v1290
        %v1293 = vmul.bf16 %v1291, 1069105081
        %v1294 = vpow.bf16.pop %v1293
        %v1295 = vunpack.c.l.bf16 %v1294
        %v1296 = vsel %vm799, %v1295, 0.0
        %1297 = vadd.xlane.f32.xlu0 %v1296
        %v1298 = vpop.xlane.xlu0 %1297
        %1299 = vrot.lane.b32.xlu0 %v748, 52
        %v1300 = vpop.permute.xlu0 %1299
        %v1302 = vsel %vm799, %v1294, 0
        %v1305 = vsel %vm817, %v1300, 0
        %1307 = vmatprep.subr.bf16.mxu0 0
        %1308 = vmatpush1.bf16.msra.mxu0 0
        %1309 = vmatprep.subr.bf16.mxu0 0
        %1310 = vmatpush1.bf16.msra.mxu0 0
        %1311 = vmatprep.subr.bf16.mxu0 0
        %1312 = vmatpush1.bf16.msra.mxu0 0
        %1313 = vmatprep.subr.bf16.mxu0 0
        %1314 = vmatpush1.bf16.msra.mxu0 0
        %1315 = vmatprep.subr.bf16.mxu0 0
        %1316 = vmatpush1.bf16.msra.mxu0 0
        %1317 = vmatprep.subr.bf16.mxu0 0
        %1318 = vmatpush1.bf16.msra.mxu0 0
        %1319 = vmatprep.subr.bf16.mxu0 0
        %1320 = vmatpush1.bf16.msra.mxu0 0
        %1321 = vmatprep.subr.bf16.mxu0 0
        %1322 = vmatpush1.bf16.msra.mxu0 %v1305
        %1323 = vmatprep.subr.bf16.mxu0 0
        %1324 = vmatpush2.bf16.msra.mxu0 0
        %1325 = vmatprep.subr.bf16.mxu0 0
        %1326 = vmatpush2.bf16.msra.mxu0 0
        %1327 = vmatprep.subr.bf16.mxu0 0
        %1328 = vmatpush2.bf16.msra.mxu0 0
        %1329 = vmatprep.subr.bf16.mxu0 0
        %1330 = vmatpush2.bf16.msra.mxu0 0
        %1331 = vmatprep.subr.bf16.mxu0 0
        %1332 = vmatpush2.bf16.msra.mxu0 0
        %1333 = vmatprep.subr.bf16.mxu0 0
        %1334 = vmatpush2.bf16.msra.mxu0 0
        %1335 = vmatprep.subr.bf16.mxu0 0
        %1336 = vmatpush2.bf16.msra.mxu0 0
        %1337 = vmatprep.subr.bf16.mxu0 0
        %1338 = vmatpush2.bf16.msra.mxu0 0
        %1339 = vmatprep.mubr.bf16.mxu0 0
        %1340 = vmatmul.mubr.bf16.gmra.mxu0 %v1302
        %v1341 = vpop.f32.mrf.mxu0
        %v1342 = vadd.f32 0.0, %v1341
        %v1343 = vpop.f32.mrf.mxu0
        %v1344 = vpop.f32.mrf.mxu0
        %v1345 = vpop.f32.mrf.mxu0
        %1346 = vdwg.mxu0
        %v1347 = vrcp.pop %v1298
        %v1348 = vmul.f32 %v1342, %v1347
        %v1349 = vpack.c.bf16 %v1348, %v1348
        %v1350 = vld [vmem:[#allocation9 + $0x4] sm:$0xc]
        %v1352 = vunpack.c.l.b16 %v1350
        %v1353 = vpack.c.b16 %v1352, %v1352
        %v1354 = vrot.slane %v1353, 2
        %v1356 = vsel %vm752, %v1349, 0
        %v1359 = vsel %vm986, %v1354, 0
        %1361 = vmatprep.subr.bf16.mxu0 0
        %1362 = vmatpush1.bf16.msra.mxu0 0
        %1363 = vmatprep.subr.bf16.mxu0 0
        %1364 = vmatpush1.bf16.msra.mxu0 0
        %1365 = vmatprep.subr.bf16.mxu0 0
        %1366 = vmatpush1.bf16.msra.mxu0 0
        %1367 = vmatprep.subr.bf16.mxu0 0
        %1368 = vmatpush1.bf16.msra.mxu0 0
        %1369 = vmatprep.subr.bf16.mxu0 0
        %1370 = vmatpush1.bf16.msra.mxu0 0
        %1371 = vmatprep.subr.bf16.mxu0 0
        %1372 = vmatpush1.bf16.msra.mxu0 0
        %1373 = vmatprep.subr.bf16.mxu0 0
        %1374 = vmatpush1.bf16.msra.mxu0 0
        %1375 = vmatprep.subr.bf16.mxu0 0
        %1376 = vmatpush1.bf16.msra.mxu0 %v1359
        %1377 = vmatprep.subr.bf16.mxu0 0
        %1378 = vmatpush2.bf16.msra.mxu0 0
        %1379 = vmatprep.subr.bf16.mxu0 0
        %1380 = vmatpush2.bf16.msra.mxu0 0
        %1381 = vmatprep.subr.bf16.mxu0 0
        %1382 = vmatpush2.bf16.msra.mxu0 0
        %1383 = vmatprep.subr.bf16.mxu0 0
        %1384 = vmatpush2.bf16.msra.mxu0 0
        %1385 = vmatprep.subr.bf16.mxu0 0
        %1386 = vmatpush2.bf16.msra.mxu0 0
        %1387 = vmatprep.subr.bf16.mxu0 0
        %1388 = vmatpush2.bf16.msra.mxu0 0
        %1389 = vmatprep.subr.bf16.mxu0 0
        %1390 = vmatpush2.bf16.msra.mxu0 0
        %1391 = vmatprep.subr.bf16.mxu0 0
        %1392 = vmatpush2.bf16.msra.mxu0 0
        %1393 = vmatprep.mubr.bf16.mxu0 0
        %1394 = vmatmul.mubr.bf16.gmra.mxu0 %v1356
        %v1395 = vpop.f32.mrf.mxu0
        %v1396 = vadd.f32 0.0, %v1395
        %v1397 = vpop.f32.mrf.mxu0
        %v1398 = vpop.f32.mrf.mxu0
        %v1399 = vpop.f32.mrf.mxu0
        %1400 = vdwg.mxu0
        %v1401 = vadd.f32 %v1236, %v1396
        %1402 = vrot.lane.b32.xlu0 %v748, 112
        %v1403 = vpop.permute.xlu0 %1402
        %1404 = vrot.lane.b32.xlu0 %v748, 80
        %v1405 = vpop.permute.xlu0 %1404
        %v1407 = vsel %vm752, %v1403, 0
        %v1410 = vsel %vm752, %v1405, 0
        %1412 = vmatprep.subr.bf16.mxu0 0
        %1413 = vmatpush1.bf16.xpose.msra.mxu0 0
        %1414 = vmatprep.subr.bf16.mxu0 0
        %1415 = vmatpush1.bf16.xpose.msra.mxu0 0
        %1416 = vmatprep.subr.bf16.mxu0 0
        %1417 = vmatpush1.bf16.xpose.msra.mxu0 0
        %1418 = vmatprep.subr.bf16.mxu0 0
        %1419 = vmatpush1.bf16.xpose.msra.mxu0 0
        %1420 = vmatprep.subr.bf16.mxu0 0
        %1421 = vmatpush1.bf16.xpose.msra.mxu0 0
        %1422 = vmatprep.subr.bf16.mxu0 0
        %1423 = vmatpush1.bf16.xpose.msra.mxu0 0
        %1424 = vmatprep.subr.bf16.mxu0 0
        %1425 = vmatpush1.bf16.xpose.msra.mxu0 0
        %1426 = vmatprep.subr.bf16.mxu0 0
        %1427 = vmatpush1.bf16.xpose.msra.mxu0 %v1410
        %1428 = vmatprep.subr.bf16.mxu0 0
        %1429 = vmatpush2.bf16.xpose.msra.mxu0 0
        %1430 = vmatprep.subr.bf16.mxu0 0
        %1431 = vmatpush2.bf16.xpose.msra.mxu0 0
        %1432 = vmatprep.subr.bf16.mxu0 0
        %1433 = vmatpush2.bf16.xpose.msra.mxu0 0
        %1434 = vmatprep.subr.bf16.mxu0 0
        %1435 = vmatpush2.bf16.xpose.msra.mxu0 0
        %1436 = vmatprep.subr.bf16.mxu0 0
        %1437 = vmatpush2.bf16.xpose.msra.mxu0 0
        %1438 = vmatprep.subr.bf16.mxu0 0
        %1439 = vmatpush2.bf16.xpose.msra.mxu0 0
        %1440 = vmatprep.subr.bf16.mxu0 0
        %1441 = vmatpush2.bf16.xpose.msra.mxu0 0
        %1442 = vmatprep.subr.bf16.mxu0 0
        %1443 = vmatpush2.bf16.xpose.msra.mxu0 0
        %1444 = vmatprep.mubr.bf16.mxu0 0
        %1445 = vmatmul.mubr.bf16.gmra.mxu0 %v1407
        %v1446 = vpop.f32.mrf.mxu0
        %v1447 = vadd.f32 0.0, %v1446
        %v1448 = vpop.f32.mrf.mxu0
        %v1449 = vpop.f32.mrf.mxu0
        %v1450 = vpop.f32.mrf.mxu0
        %1451 = vdwg.mxu0
        %v1452 = vsel %vm799, %v1447, -inf
        %1453 = vmax.xlane.f32.xlu0 %v1452
        %v1454 = vpop.xlane.xlu0 %1453
        %v1455 = vsub.f32 %v1447, %v1454
        %v1456 = vpack.c.bf16 %v1455, %v1455
        %v1458 = vmul.bf16 %v1456, 1069105081
        %v1459 = vpow.bf16.pop %v1458
        %v1460 = vunpack.c.l.bf16 %v1459
        %v1461 = vsel %vm799, %v1460, 0.0
        %1462 = vadd.xlane.f32.xlu0 %v1461
        %v1463 = vpop.xlane.xlu0 %1462
        %1464 = vrot.lane.b32.xlu0 %v748, 48
        %v1465 = vpop.permute.xlu0 %1464
        %v1467 = vsel %vm799, %v1459, 0
        %v1470 = vsel %vm817, %v1465, 0
        %1472 = vmatprep.subr.bf16.mxu0 0
        %1473 = vmatpush1.bf16.msra.mxu0 0
        %1474 = vmatprep.subr.bf16.mxu0 0
        %1475 = vmatpush1.bf16.msra.mxu0 0
        %1476 = vmatprep.subr.bf16.mxu0 0
        %1477 = vmatpush1.bf16.msra.mxu0 0
        %1478 = vmatprep.subr.bf16.mxu0 0
        %1479 = vmatpush1.bf16.msra.mxu0 0
        %1480 = vmatprep.subr.bf16.mxu0 0
        %1481 = vmatpush1.bf16.msra.mxu0 0
        %1482 = vmatprep.subr.bf16.mxu0 0
        %1483 = vmatpush1.bf16.msra.mxu0 0
        %1484 = vmatprep.subr.bf16.mxu0 0
        %1485 = vmatpush1.bf16.msra.mxu0 0
        %1486 = vmatprep.subr.bf16.mxu0 0
        %1487 = vmatpush1.bf16.msra.mxu0 %v1470
        %1488 = vmatprep.subr.bf16.mxu0 0
        %1489 = vmatpush2.bf16.msra.mxu0 0
        %1490 = vmatprep.subr.bf16.mxu0 0
        %1491 = vmatpush2.bf16.msra.mxu0 0
        %1492 = vmatprep.subr.bf16.mxu0 0
        %1493 = vmatpush2.bf16.msra.mxu0 0
        %1494 = vmatprep.subr.bf16.mxu0 0
        %1495 = vmatpush2.bf16.msra.mxu0 0
        %1496 = vmatprep.subr.bf16.mxu0 0
        %1497 = vmatpush2.bf16.msra.mxu0 0
        %1498 = vmatprep.subr.bf16.mxu0 0
        %1499 = vmatpush2.bf16.msra.mxu0 0
        %1500 = vmatprep.subr.bf16.mxu0 0
        %1501 = vmatpush2.bf16.msra.mxu0 0
        %1502 = vmatprep.subr.bf16.mxu0 0
        %1503 = vmatpush2.bf16.msra.mxu0 0
        %1504 = vmatprep.mubr.bf16.mxu0 0
        %1505 = vmatmul.mubr.bf16.gmra.mxu0 %v1467
        %v1506 = vpop.f32.mrf.mxu0
        %v1507 = vadd.f32 0.0, %v1506
        %v1508 = vpop.f32.mrf.mxu0
        %v1509 = vpop.f32.mrf.mxu0
        %v1510 = vpop.f32.mrf.mxu0
        %1511 = vdwg.mxu0
        %v1512 = vrcp.pop %v1463
        %v1513 = vmul.f32 %v1507, %v1512
        %v1514 = vpack.c.bf16 %v1513, %v1513
        %v1515 = vld [vmem:[#allocation9 + $0x8] sm:$0x3]
        %v1517 = vsel %vm752, %v1514, 0
        %v1520 = vsel %vm986, %v1515, 0
        %1522 = vmatprep.subr.bf16.mxu0 0
        %1523 = vmatpush1.bf16.msra.mxu0 0
        %1524 = vmatprep.subr.bf16.mxu0 0
        %1525 = vmatpush1.bf16.msra.mxu0 0
        %1526 = vmatprep.subr.bf16.mxu0 0
        %1527 = vmatpush1.bf16.msra.mxu0 0
        %1528 = vmatprep.subr.bf16.mxu0 0
        %1529 = vmatpush1.bf16.msra.mxu0 0
        %1530 = vmatprep.subr.bf16.mxu0 0
        %1531 = vmatpush1.bf16.msra.mxu0 0
        %1532 = vmatprep.subr.bf16.mxu0 0
        %1533 = vmatpush1.bf16.msra.mxu0 0
        %1534 = vmatprep.subr.bf16.mxu0 0
        %1535 = vmatpush1.bf16.msra.mxu0 0
        %1536 = vmatprep.subr.bf16.mxu0 0
        %1537 = vmatpush1.bf16.msra.mxu0 %v1520
        %1538 = vmatprep.subr.bf16.mxu0 0
        %1539 = vmatpush2.bf16.msra.mxu0 0
        %1540 = vmatprep.subr.bf16.mxu0 0
        %1541 = vmatpush2.bf16.msra.mxu0 0
        %1542 = vmatprep.subr.bf16.mxu0 0
        %1543 = vmatpush2.bf16.msra.mxu0 0
        %1544 = vmatprep.subr.bf16.mxu0 0
        %1545 = vmatpush2.bf16.msra.mxu0 0
        %1546 = vmatprep.subr.bf16.mxu0 0
        %1547 = vmatpush2.bf16.msra.mxu0 0
        %1548 = vmatprep.subr.bf16.mxu0 0
        %1549 = vmatpush2.bf16.msra.mxu0 0
        %1550 = vmatprep.subr.bf16.mxu0 0
        %1551 = vmatpush2.bf16.msra.mxu0 0
        %1552 = vmatprep.subr.bf16.mxu0 0
        %1553 = vmatpush2.bf16.msra.mxu0 0
        %1554 = vmatprep.mubr.bf16.mxu0 0
        %1555 = vmatmul.mubr.bf16.gmra.mxu0 %v1517
        %v1556 = vpop.f32.mrf.mxu0
        %v1557 = vadd.f32 0.0, %v1556
        %v1558 = vpop.f32.mrf.mxu0
        %v1559 = vpop.f32.mrf.mxu0
        %v1560 = vpop.f32.mrf.mxu0
        %1561 = vdwg.mxu0
        %v1562 = vadd.f32 %v1401, %v1557
        %1563 = vrot.lane.b32.xlu0 %v748, 108
        %v1564 = vpop.permute.xlu0 %1563
        %1565 = vrot.lane.b32.xlu0 %v748, 76
        %v1566 = vpop.permute.xlu0 %1565
        %v1568 = vsel %vm752, %v1564, 0
        %v1571 = vsel %vm752, %v1566, 0
        %1573 = vmatprep.subr.bf16.mxu0 0
        %1574 = vmatpush1.bf16.xpose.msra.mxu0 0
        %1575 = vmatprep.subr.bf16.mxu0 0
        %1576 = vmatpush1.bf16.xpose.msra.mxu0 0
        %1577 = vmatprep.subr.bf16.mxu0 0
        %1578 = vmatpush1.bf16.xpose.msra.mxu0 0
        %1579 = vmatprep.subr.bf16.mxu0 0
        %1580 = vmatpush1.bf16.xpose.msra.mxu0 0
        %1581 = vmatprep.subr.bf16.mxu0 0
        %1582 = vmatpush1.bf16.xpose.msra.mxu0 0
        %1583 = vmatprep.subr.bf16.mxu0 0
        %1584 = vmatpush1.bf16.xpose.msra.mxu0 0
        %1585 = vmatprep.subr.bf16.mxu0 0
        %1586 = vmatpush1.bf16.xpose.msra.mxu0 0
        %1587 = vmatprep.subr.bf16.mxu0 0
        %1588 = vmatpush1.bf16.xpose.msra.mxu0 %v1571
        %1589 = vmatprep.subr.bf16.mxu0 0
        %1590 = vmatpush2.bf16.xpose.msra.mxu0 0
        %1591 = vmatprep.subr.bf16.mxu0 0
        %1592 = vmatpush2.bf16.xpose.msra.mxu0 0
        %1593 = vmatprep.subr.bf16.mxu0 0
        %1594 = vmatpush2.bf16.xpose.msra.mxu0 0
        %1595 = vmatprep.subr.bf16.mxu0 0
        %1596 = vmatpush2.bf16.xpose.msra.mxu0 0
        %1597 = vmatprep.subr.bf16.mxu0 0
        %1598 = vmatpush2.bf16.xpose.msra.mxu0 0
        %1599 = vmatprep.subr.bf16.mxu0 0
        %1600 = vmatpush2.bf16.xpose.msra.mxu0 0
        %1601 = vmatprep.subr.bf16.mxu0 0
        %1602 = vmatpush2.bf16.xpose.msra.mxu0 0
        %1603 = vmatprep.subr.bf16.mxu0 0
        %1604 = vmatpush2.bf16.xpose.msra.mxu0 0
        %1605 = vmatprep.mubr.bf16.mxu0 0
        %1606 = vmatmul.mubr.bf16.gmra.mxu0 %v1568
        %v1607 = vpop.f32.mrf.mxu0
        %v1608 = vadd.f32 0.0, %v1607
        %v1609 = vpop.f32.mrf.mxu0
        %v1610 = vpop.f32.mrf.mxu0
        %v1611 = vpop.f32.mrf.mxu0
        %1612 = vdwg.mxu0
        %v1613 = vsel %vm799, %v1608, -inf
        %1614 = vmax.xlane.f32.xlu0 %v1613
        %v1615 = vpop.xlane.xlu0 %1614
        %v1616 = vsub.f32 %v1608, %v1615
        %v1617 = vpack.c.bf16 %v1616, %v1616
        %v1619 = vmul.bf16 %v1617, 1069105081
        %v1620 = vpow.bf16.pop %v1619
        %v1621 = vunpack.c.l.bf16 %v1620
        %v1622 = vsel %vm799, %v1621, 0.0
        %1623 = vadd.xlane.f32.xlu0 %v1622
        %v1624 = vpop.xlane.xlu0 %1623
        %1625 = vrot.lane.b32.xlu0 %v748, 44
        %v1626 = vpop.permute.xlu0 %1625
        %v1628 = vsel %vm799, %v1620, 0
        %v1631 = vsel %vm817, %v1626, 0
        %1633 = vmatprep.subr.bf16.mxu0 0
        %1634 = vmatpush1.bf16.msra.mxu0 0
        %1635 = vmatprep.subr.bf16.mxu0 0
        %1636 = vmatpush1.bf16.msra.mxu0 0
        %1637 = vmatprep.subr.bf16.mxu0 0
        %1638 = vmatpush1.bf16.msra.mxu0 0
        %1639 = vmatprep.subr.bf16.mxu0 0
        %1640 = vmatpush1.bf16.msra.mxu0 0
        %1641 = vmatprep.subr.bf16.mxu0 0
        %1642 = vmatpush1.bf16.msra.mxu0 0
        %1643 = vmatprep.subr.bf16.mxu0 0
        %1644 = vmatpush1.bf16.msra.mxu0 0
        %1645 = vmatprep.subr.bf16.mxu0 0
        %1646 = vmatpush1.bf16.msra.mxu0 0
        %1647 = vmatprep.subr.bf16.mxu0 0
        %1648 = vmatpush1.bf16.msra.mxu0 %v1631
        %1649 = vmatprep.subr.bf16.mxu0 0
        %1650 = vmatpush2.bf16.msra.mxu0 0
        %1651 = vmatprep.subr.bf16.mxu0 0
        %1652 = vmatpush2.bf16.msra.mxu0 0
        %1653 = vmatprep.subr.bf16.mxu0 0
        %1654 = vmatpush2.bf16.msra.mxu0 0
        %1655 = vmatprep.subr.bf16.mxu0 0
        %1656 = vmatpush2.bf16.msra.mxu0 0
        %1657 = vmatprep.subr.bf16.mxu0 0
        %1658 = vmatpush2.bf16.msra.mxu0 0
        %1659 = vmatprep.subr.bf16.mxu0 0
        %1660 = vmatpush2.bf16.msra.mxu0 0
        %1661 = vmatprep.subr.bf16.mxu0 0
        %1662 = vmatpush2.bf16.msra.mxu0 0
        %1663 = vmatprep.subr.bf16.mxu0 0
        %1664 = vmatpush2.bf16.msra.mxu0 0
        %1665 = vmatprep.mubr.bf16.mxu0 0
        %1666 = vmatmul.mubr.bf16.gmra.mxu0 %v1628
        %v1667 = vpop.f32.mrf.mxu0
        %v1668 = vadd.f32 0.0, %v1667
        %v1669 = vpop.f32.mrf.mxu0
        %v1670 = vpop.f32.mrf.mxu0
        %v1671 = vpop.f32.mrf.mxu0
        %1672 = vdwg.mxu0
        %v1673 = vrcp.pop %v1624
        %v1674 = vmul.f32 %v1668, %v1673
        %v1675 = vpack.c.bf16 %v1674, %v1674
        %v1676 = vld [vmem:[#allocation9 + $0x8] sm:$0xc]
        %v1678 = vunpack.c.l.b16 %v1676
        %v1679 = vpack.c.b16 %v1678, %v1678
        %v1680 = vrot.slane %v1679, 2
        %v1682 = vsel %vm752, %v1675, 0
        %v1685 = vsel %vm986, %v1680, 0
        %1687 = vmatprep.subr.bf16.mxu0 0
        %1688 = vmatpush1.bf16.msra.mxu0 0
        %1689 = vmatprep.subr.bf16.mxu0 0
        %1690 = vmatpush1.bf16.msra.mxu0 0
        %1691 = vmatprep.subr.bf16.mxu0 0
        %1692 = vmatpush1.bf16.msra.mxu0 0
        %1693 = vmatprep.subr.bf16.mxu0 0
        %1694 = vmatpush1.bf16.msra.mxu0 0
        %1695 = vmatprep.subr.bf16.mxu0 0
        %1696 = vmatpush1.bf16.msra.mxu0 0
        %1697 = vmatprep.subr.bf16.mxu0 0
        %1698 = vmatpush1.bf16.msra.mxu0 0
        %1699 = vmatprep.subr.bf16.mxu0 0
        %1700 = vmatpush1.bf16.msra.mxu0 0
        %1701 = vmatprep.subr.bf16.mxu0 0
        %1702 = vmatpush1.bf16.msra.mxu0 %v1685
        %1703 = vmatprep.subr.bf16.mxu0 0
        %1704 = vmatpush2.bf16.msra.mxu0 0
        %1705 = vmatprep.subr.bf16.mxu0 0
        %1706 = vmatpush2.bf16.msra.mxu0 0
        %1707 = vmatprep.subr.bf16.mxu0 0
        %1708 = vmatpush2.bf16.msra.mxu0 0
        %1709 = vmatprep.subr.bf16.mxu0 0
        %1710 = vmatpush2.bf16.msra.mxu0 0
        %1711 = vmatprep.subr.bf16.mxu0 0
        %1712 = vmatpush2.bf16.msra.mxu0 0
        %1713 = vmatprep.subr.bf16.mxu0 0
        %1714 = vmatpush2.bf16.msra.mxu0 0
        %1715 = vmatprep.subr.bf16.mxu0 0
        %1716 = vmatpush2.bf16.msra.mxu0 0
        %1717 = vmatprep.subr.bf16.mxu0 0
        %1718 = vmatpush2.bf16.msra.mxu0 0
        %1719 = vmatprep.mubr.bf16.mxu0 0
        %1720 = vmatmul.mubr.bf16.gmra.mxu0 %v1682
        %v1721 = vpop.f32.mrf.mxu0
        %v1722 = vadd.f32 0.0, %v1721
        %v1723 = vpop.f32.mrf.mxu0
        %v1724 = vpop.f32.mrf.mxu0
        %v1725 = vpop.f32.mrf.mxu0
        %1726 = vdwg.mxu0
        %v1727 = vadd.f32 %v1562, %v1722
        %1728 = vrot.lane.b32.xlu0 %v748, 104
        %v1729 = vpop.permute.xlu0 %1728
        %1730 = vrot.lane.b32.xlu0 %v748, 72
        %v1731 = vpop.permute.xlu0 %1730
        %v1733 = vsel %vm752, %v1729, 0
        %v1736 = vsel %vm752, %v1731, 0
        %1738 = vmatprep.subr.bf16.mxu0 0
        %1739 = vmatpush1.bf16.xpose.msra.mxu0 0
        %1740 = vmatprep.subr.bf16.mxu0 0
        %1741 = vmatpush1.bf16.xpose.msra.mxu0 0
        %1742 = vmatprep.subr.bf16.mxu0 0
        %1743 = vmatpush1.bf16.xpose.msra.mxu0 0
        %1744 = vmatprep.subr.bf16.mxu0 0
        %1745 = vmatpush1.bf16.xpose.msra.mxu0 0
        %1746 = vmatprep.subr.bf16.mxu0 0
        %1747 = vmatpush1.bf16.xpose.msra.mxu0 0
        %1748 = vmatprep.subr.bf16.mxu0 0
        %1749 = vmatpush1.bf16.xpose.msra.mxu0 0
        %1750 = vmatprep.subr.bf16.mxu0 0
        %1751 = vmatpush1.bf16.xpose.msra.mxu0 0
        %1752 = vmatprep.subr.bf16.mxu0 0
        %1753 = vmatpush1.bf16.xpose.msra.mxu0 %v1736
        %1754 = vmatprep.subr.bf16.mxu0 0
        %1755 = vmatpush2.bf16.xpose.msra.mxu0 0
        %1756 = vmatprep.subr.bf16.mxu0 0
        %1757 = vmatpush2.bf16.xpose.msra.mxu0 0
        %1758 = vmatprep.subr.bf16.mxu0 0
        %1759 = vmatpush2.bf16.xpose.msra.mxu0 0
        %1760 = vmatprep.subr.bf16.mxu0 0
        %1761 = vmatpush2.bf16.xpose.msra.mxu0 0
        %1762 = vmatprep.subr.bf16.mxu0 0
        %1763 = vmatpush2.bf16.xpose.msra.mxu0 0
        %1764 = vmatprep.subr.bf16.mxu0 0
        %1765 = vmatpush2.bf16.xpose.msra.mxu0 0
        %1766 = vmatprep.subr.bf16.mxu0 0
        %1767 = vmatpush2.bf16.xpose.msra.mxu0 0
        %1768 = vmatprep.subr.bf16.mxu0 0
        %1769 = vmatpush2.bf16.xpose.msra.mxu0 0
        %1770 = vmatprep.mubr.bf16.mxu0 0
        %1771 = vmatmul.mubr.bf16.gmra.mxu0 %v1733
        %v1772 = vpop.f32.mrf.mxu0
        %v1773 = vadd.f32 0.0, %v1772
        %v1774 = vpop.f32.mrf.mxu0
        %v1775 = vpop.f32.mrf.mxu0
        %v1776 = vpop.f32.mrf.mxu0
        %1777 = vdwg.mxu0
        %v1778 = vsel %vm799, %v1773, -inf
        %1779 = vmax.xlane.f32.xlu0 %v1778
        %v1780 = vpop.xlane.xlu0 %1779
        %v1781 = vsub.f32 %v1773, %v1780
        %v1782 = vpack.c.bf16 %v1781, %v1781
        %v1784 = vmul.bf16 %v1782, 1069105081
        %v1785 = vpow.bf16.pop %v1784
        %v1786 = vunpack.c.l.bf16 %v1785
        %v1787 = vsel %vm799, %v1786, 0.0
        %1788 = vadd.xlane.f32.xlu0 %v1787
        %v1789 = vpop.xlane.xlu0 %1788
        %1790 = vrot.lane.b32.xlu0 %v748, 40
        %v1791 = vpop.permute.xlu0 %1790
        %v1793 = vsel %vm799, %v1785, 0
        %v1796 = vsel %vm817, %v1791, 0
        %1798 = vmatprep.subr.bf16.mxu0 0
        %1799 = vmatpush1.bf16.msra.mxu0 0
        %1800 = vmatprep.subr.bf16.mxu0 0
        %1801 = vmatpush1.bf16.msra.mxu0 0
        %1802 = vmatprep.subr.bf16.mxu0 0
        %1803 = vmatpush1.bf16.msra.mxu0 0
        %1804 = vmatprep.subr.bf16.mxu0 0
        %1805 = vmatpush1.bf16.msra.mxu0 0
        %1806 = vmatprep.subr.bf16.mxu0 0
        %1807 = vmatpush1.bf16.msra.mxu0 0
        %1808 = vmatprep.subr.bf16.mxu0 0
        %1809 = vmatpush1.bf16.msra.mxu0 0
        %1810 = vmatprep.subr.bf16.mxu0 0
        %1811 = vmatpush1.bf16.msra.mxu0 0
        %1812 = vmatprep.subr.bf16.mxu0 0
        %1813 = vmatpush1.bf16.msra.mxu0 %v1796
        %1814 = vmatprep.subr.bf16.mxu0 0
        %1815 = vmatpush2.bf16.msra.mxu0 0
        %1816 = vmatprep.subr.bf16.mxu0 0
        %1817 = vmatpush2.bf16.msra.mxu0 0
        %1818 = vmatprep.subr.bf16.mxu0 0
        %1819 = vmatpush2.bf16.msra.mxu0 0
        %1820 = vmatprep.subr.bf16.mxu0 0
        %1821 = vmatpush2.bf16.msra.mxu0 0
        %1822 = vmatprep.subr.bf16.mxu0 0
        %1823 = vmatpush2.bf16.msra.mxu0 0
        %1824 = vmatprep.subr.bf16.mxu0 0
        %1825 = vmatpush2.bf16.msra.mxu0 0
        %1826 = vmatprep.subr.bf16.mxu0 0
        %1827 = vmatpush2.bf16.msra.mxu0 0
        %1828 = vmatprep.subr.bf16.mxu0 0
        %1829 = vmatpush2.bf16.msra.mxu0 0
        %1830 = vmatprep.mubr.bf16.mxu0 0
        %1831 = vmatmul.mubr.bf16.gmra.mxu0 %v1793
        %v1832 = vpop.f32.mrf.mxu0
        %v1833 = vadd.f32 0.0, %v1832
        %v1834 = vpop.f32.mrf.mxu0
        %v1835 = vpop.f32.mrf.mxu0
        %v1836 = vpop.f32.mrf.mxu0
        %1837 = vdwg.mxu0
        %v1838 = vrcp.pop %v1789
        %v1839 = vmul.f32 %v1833, %v1838
        %v1840 = vpack.c.bf16 %v1839, %v1839
        %v1841 = vld [vmem:[#allocation9 + $0xc] sm:$0x3]
        %v1843 = vsel %vm752, %v1840, 0
        %v1846 = vsel %vm986, %v1841, 0
        %1848 = vmatprep.subr.bf16.mxu0 0
        %1849 = vmatpush1.bf16.msra.mxu0 0
        %1850 = vmatprep.subr.bf16.mxu0 0
        %1851 = vmatpush1.bf16.msra.mxu0 0
        %1852 = vmatprep.subr.bf16.mxu0 0
        %1853 = vmatpush1.bf16.msra.mxu0 0
        %1854 = vmatprep.subr.bf16.mxu0 0
        %1855 = vmatpush1.bf16.msra.mxu0 0
        %1856 = vmatprep.subr.bf16.mxu0 0
        %1857 = vmatpush1.bf16.msra.mxu0 0
        %1858 = vmatprep.subr.bf16.mxu0 0
        %1859 = vmatpush1.bf16.msra.mxu0 0
        %1860 = vmatprep.subr.bf16.mxu0 0
        %1861 = vmatpush1.bf16.msra.mxu0 0
        %1862 = vmatprep.subr.bf16.mxu0 0
        %1863 = vmatpush1.bf16.msra.mxu0 %v1846
        %1864 = vmatprep.subr.bf16.mxu0 0
        %1865 = vmatpush2.bf16.msra.mxu0 0
        %1866 = vmatprep.subr.bf16.mxu0 0
        %1867 = vmatpush2.bf16.msra.mxu0 0
        %1868 = vmatprep.subr.bf16.mxu0 0
        %1869 = vmatpush2.bf16.msra.mxu0 0
        %1870 = vmatprep.subr.bf16.mxu0 0
        %1871 = vmatpush2.bf16.msra.mxu0 0
        %1872 = vmatprep.subr.bf16.mxu0 0
        %1873 = vmatpush2.bf16.msra.mxu0 0
        %1874 = vmatprep.subr.bf16.mxu0 0
        %1875 = vmatpush2.bf16.msra.mxu0 0
        %1876 = vmatprep.subr.bf16.mxu0 0
        %1877 = vmatpush2.bf16.msra.mxu0 0
        %1878 = vmatprep.subr.bf16.mxu0 0
        %1879 = vmatpush2.bf16.msra.mxu0 0
        %1880 = vmatprep.mubr.bf16.mxu0 0
        %1881 = vmatmul.mubr.bf16.gmra.mxu0 %v1843
        %v1882 = vpop.f32.mrf.mxu0
        %v1883 = vadd.f32 0.0, %v1882
        %v1884 = vpop.f32.mrf.mxu0
        %v1885 = vpop.f32.mrf.mxu0
        %v1886 = vpop.f32.mrf.mxu0
        %1887 = vdwg.mxu0
        %v1888 = vadd.f32 %v1727, %v1883
        %1889 = vrot.lane.b32.xlu0 %v748, 100
        %v1890 = vpop.permute.xlu0 %1889
        %1891 = vrot.lane.b32.xlu0 %v748, 68
        %v1892 = vpop.permute.xlu0 %1891
        %v1894 = vsel %vm752, %v1890, 0
        %v1897 = vsel %vm752, %v1892, 0
        %1899 = vmatprep.subr.bf16.mxu0 0
        %1900 = vmatpush1.bf16.xpose.msra.mxu0 0
        %1901 = vmatprep.subr.bf16.mxu0 0
        %1902 = vmatpush1.bf16.xpose.msra.mxu0 0
        %1903 = vmatprep.subr.bf16.mxu0 0
        %1904 = vmatpush1.bf16.xpose.msra.mxu0 0
        %1905 = vmatprep.subr.bf16.mxu0 0
        %1906 = vmatpush1.bf16.xpose.msra.mxu0 0
        %1907 = vmatprep.subr.bf16.mxu0 0
        %1908 = vmatpush1.bf16.xpose.msra.mxu0 0
        %1909 = vmatprep.subr.bf16.mxu0 0
        %1910 = vmatpush1.bf16.xpose.msra.mxu0 0
        %1911 = vmatprep.subr.bf16.mxu0 0
        %1912 = vmatpush1.bf16.xpose.msra.mxu0 0
        %1913 = vmatprep.subr.bf16.mxu0 0
        %1914 = vmatpush1.bf16.xpose.msra.mxu0 %v1897
        %1915 = vmatprep.subr.bf16.mxu0 0
        %1916 = vmatpush2.bf16.xpose.msra.mxu0 0
        %1917 = vmatprep.subr.bf16.mxu0 0
        %1918 = vmatpush2.bf16.xpose.msra.mxu0 0
        %1919 = vmatprep.subr.bf16.mxu0 0
        %1920 = vmatpush2.bf16.xpose.msra.mxu0 0
        %1921 = vmatprep.subr.bf16.mxu0 0
        %1922 = vmatpush2.bf16.xpose.msra.mxu0 0
        %1923 = vmatprep.subr.bf16.mxu0 0
        %1924 = vmatpush2.bf16.xpose.msra.mxu0 0
        %1925 = vmatprep.subr.bf16.mxu0 0
        %1926 = vmatpush2.bf16.xpose.msra.mxu0 0
        %1927 = vmatprep.subr.bf16.mxu0 0
        %1928 = vmatpush2.bf16.xpose.msra.mxu0 0
        %1929 = vmatprep.subr.bf16.mxu0 0
        %1930 = vmatpush2.bf16.xpose.msra.mxu0 0
        %1931 = vmatprep.mubr.bf16.mxu0 0
        %1932 = vmatmul.mubr.bf16.gmra.mxu0 %v1894
        %v1933 = vpop.f32.mrf.mxu0
        %v1934 = vadd.f32 0.0, %v1933
        %v1935 = vpop.f32.mrf.mxu0
        %v1936 = vpop.f32.mrf.mxu0
        %v1937 = vpop.f32.mrf.mxu0
        %1938 = vdwg.mxu0
        %v1939 = vsel %vm799, %v1934, -inf
        %1940 = vmax.xlane.f32.xlu0 %v1939
        %v1941 = vpop.xlane.xlu0 %1940
        %v1942 = vsub.f32 %v1934, %v1941
        %v1943 = vpack.c.bf16 %v1942, %v1942
        %v1945 = vmul.bf16 %v1943, 1069105081
        %v1946 = vpow.bf16.pop %v1945
        %v1947 = vunpack.c.l.bf16 %v1946
        %v1948 = vsel %vm799, %v1947, 0.0
        %1949 = vadd.xlane.f32.xlu0 %v1948
        %v1950 = vpop.xlane.xlu0 %1949
        %1951 = vrot.lane.b32.xlu0 %v748, 36
        %v1952 = vpop.permute.xlu0 %1951
        %v1954 = vsel %vm799, %v1946, 0
        %v1957 = vsel %vm817, %v1952, 0
        %1959 = vmatprep.subr.bf16.mxu0 0
        %1960 = vmatpush1.bf16.msra.mxu0 0
        %1961 = vmatprep.subr.bf16.mxu0 0
        %1962 = vmatpush1.bf16.msra.mxu0 0
        %1963 = vmatprep.subr.bf16.mxu0 0
        %1964 = vmatpush1.bf16.msra.mxu0 0
        %1965 = vmatprep.subr.bf16.mxu0 0
        %1966 = vmatpush1.bf16.msra.mxu0 0
        %1967 = vmatprep.subr.bf16.mxu0 0
        %1968 = vmatpush1.bf16.msra.mxu0 0
        %1969 = vmatprep.subr.bf16.mxu0 0
        %1970 = vmatpush1.bf16.msra.mxu0 0
        %1971 = vmatprep.subr.bf16.mxu0 0
        %1972 = vmatpush1.bf16.msra.mxu0 0
        %1973 = vmatprep.subr.bf16.mxu0 0
        %1974 = vmatpush1.bf16.msra.mxu0 %v1957
        %1975 = vmatprep.subr.bf16.mxu0 0
        %1976 = vmatpush2.bf16.msra.mxu0 0
        %1977 = vmatprep.subr.bf16.mxu0 0
        %1978 = vmatpush2.bf16.msra.mxu0 0
        %1979 = vmatprep.subr.bf16.mxu0 0
        %1980 = vmatpush2.bf16.msra.mxu0 0
        %1981 = vmatprep.subr.bf16.mxu0 0
        %1982 = vmatpush2.bf16.msra.mxu0 0
        %1983 = vmatprep.subr.bf16.mxu0 0
        %1984 = vmatpush2.bf16.msra.mxu0 0
        %1985 = vmatprep.subr.bf16.mxu0 0
        %1986 = vmatpush2.bf16.msra.mxu0 0
        %1987 = vmatprep.subr.bf16.mxu0 0
        %1988 = vmatpush2.bf16.msra.mxu0 0
        %1989 = vmatprep.subr.bf16.mxu0 0
        %1990 = vmatpush2.bf16.msra.mxu0 0
        %1991 = vmatprep.mubr.bf16.mxu0 0
        %1992 = vmatmul.mubr.bf16.gmra.mxu0 %v1954
        %v1993 = vpop.f32.mrf.mxu0
        %v1994 = vadd.f32 0.0, %v1993
        %v1995 = vpop.f32.mrf.mxu0
        %v1996 = vpop.f32.mrf.mxu0
        %v1997 = vpop.f32.mrf.mxu0
        %1998 = vdwg.mxu0
        %v1999 = vrcp.pop %v1950
        %v2000 = vmul.f32 %v1994, %v1999
        %v2001 = vpack.c.bf16 %v2000, %v2000
        %v2002 = vld [vmem:[#allocation9 + $0xc] sm:$0xc]
        %v2004 = vunpack.c.l.b16 %v2002
        %v2005 = vpack.c.b16 %v2004, %v2004
        %v2006 = vrot.slane %v2005, 2
        %v2008 = vsel %vm752, %v2001, 0
        %v2011 = vsel %vm986, %v2006, 0
        %2013 = vmatprep.subr.bf16.mxu0 0
        %2014 = vmatpush1.bf16.msra.mxu0 0
        %2015 = vmatprep.subr.bf16.mxu0 0
        %2016 = vmatpush1.bf16.msra.mxu0 0
        %2017 = vmatprep.subr.bf16.mxu0 0
        %2018 = vmatpush1.bf16.msra.mxu0 0
        %2019 = vmatprep.subr.bf16.mxu0 0
        %2020 = vmatpush1.bf16.msra.mxu0 0
        %2021 = vmatprep.subr.bf16.mxu0 0
        %2022 = vmatpush1.bf16.msra.mxu0 0
        %2023 = vmatprep.subr.bf16.mxu0 0
        %2024 = vmatpush1.bf16.msra.mxu0 0
        %2025 = vmatprep.subr.bf16.mxu0 0
        %2026 = vmatpush1.bf16.msra.mxu0 0
        %2027 = vmatprep.subr.bf16.mxu0 0
        %2028 = vmatpush1.bf16.msra.mxu0 %v2011
        %2029 = vmatprep.subr.bf16.mxu0 0
        %2030 = vmatpush2.bf16.msra.mxu0 0
        %2031 = vmatprep.subr.bf16.mxu0 0
        %2032 = vmatpush2.bf16.msra.mxu0 0
        %2033 = vmatprep.subr.bf16.mxu0 0
        %2034 = vmatpush2.bf16.msra.mxu0 0
        %2035 = vmatprep.subr.bf16.mxu0 0
        %2036 = vmatpush2.bf16.msra.mxu0 0
        %2037 = vmatprep.subr.bf16.mxu0 0
        %2038 = vmatpush2.bf16.msra.mxu0 0
        %2039 = vmatprep.subr.bf16.mxu0 0
        %2040 = vmatpush2.bf16.msra.mxu0 0
        %2041 = vmatprep.subr.bf16.mxu0 0
        %2042 = vmatpush2.bf16.msra.mxu0 0
        %2043 = vmatprep.subr.bf16.mxu0 0
        %2044 = vmatpush2.bf16.msra.mxu0 0
        %2045 = vmatprep.mubr.bf16.mxu0 0
        %2046 = vmatmul.mubr.bf16.gmra.mxu0 %v2008
        %v2047 = vpop.f32.mrf.mxu0
        %v2048 = vadd.f32 0.0, %v2047
        %v2049 = vpop.f32.mrf.mxu0
        %v2050 = vpop.f32.mrf.mxu0
        %v2051 = vpop.f32.mrf.mxu0
        %2052 = vdwg.mxu0
        %v2053 = vadd.f32 %v1888, %v2048
        %2054 = vst.msk [vmem:[#allocation3] sm:$0xff] %vm511, %v2053
        %v2055 = vld [vmem:[#allocation3] sm:$0xff]
        %v2056 = vld [vmem:[#allocation13 + $0x4] sm:$0x1]
        %v2057 = vlaneseq
        %v2058 = vshrl.u32 %v2057, 7
        %v2059 = vsub.s32 0, %v2058
        %v2060 = vrot.slane %v2056, %v2059
        %v2061 = vadd.f32 %v2055, %v2060
        %v2062 = vadd.f32 %v2061, %v677
        %v2063 = vld [vmem:[#allocation13 + $0x5] sm:$0x1]
        %v2064 = vld [vmem:[#allocation13 + $0x6] sm:$0x1]
        %v2065 = vsel %vm511, %v2062, 0.0
        %2066 = vadd.xlane.f32.xlu0 %v2065
        %v2067 = vpop.xlane.xlu0 %2066
        %v2068 = vmul.f32 %v2062, %v2062
        %v2069 = vsel %vm511, %v2068, 0.0
        %2070 = vadd.xlane.f32.xlu0 %v2069
        %v2071 = vpop.xlane.xlu0 %2070
        %v2072 = vmul.f32 %v2067, 0.03125
        %v2073 = vmul.f32 %v2071, 0.03125
        %v2074 = vmul.f32 %v2072, %v2072
        %v2075 = vsub.f32 %v2073, %v2074
        %v2076 = vsub.f32 %v2062, %v2072
        %v2077 = vadd.f32 %v2075, 1e-05
        %v2078 = vrsqrt.pop %v2077
        %v2079 = vmul.f32 %v2076, %v2078
        %v2080 = vlaneseq
        %v2081 = vshrl.u32 %v2080, 7
        %v2082 = vsub.s32 0, %v2081
        %v2083 = vrot.slane %v2063, %v2082
        %v2084 = vmul.f32 %v2079, %v2083
        %v2085 = vlaneseq
        %v2086 = vshrl.u32 %v2085, 7
        %v2087 = vsub.s32 0, %v2086
        %v2088 = vrot.slane %v2064, %v2087
        %v2089 = vadd.f32 %v2084, %v2088
        %v2090 = vpack.c.bf16 %v2089, %v2089
        %v2091 = vld [vmem:[#allocation10] sm:$0xf]
        %v2092 = vld [vmem:[#allocation10 + $0x4] sm:$0xf]
        %v2093 = vld [vmem:[#allocation10 + $0x8] sm:$0xf]
        %v2094 = vld [vmem:[#allocation10 + $0xc] sm:$0xf]
        %v2095 = vld [vmem:[#allocation15] sm:$0x1]
        %v2096 = vlaneseq
        %v2097 = vshrl.u32 %v2096, 7
        %v2098 = vsub.s32 0, %v2097
        %v2099 = vrot.slane %v2095, %v2098
        %v2104 = vunpack.c.l.b16 %v2091
        %v2105 = vunpack.c.l.b16 %v2092
        %v2106 = vunpack.c.l.b16 %v2093
        %v2107 = vunpack.c.l.b16 %v2094
        %v2108 = vpack.c.b16 %v2105, %v2104
        %v2109 = vpack.c.b16 %v2107, %v2106
        %v2113 = vsel %vm511, %v2090, 0
        %2115 = vmatprep.subr.bf16.mxu0 0
        %2116 = vmatpush1.bf16.msra.mxu0 0
        %2117 = vmatprep.subr.bf16.mxu0 0
        %2118 = vmatpush1.bf16.msra.mxu0 0
        %2119 = vmatprep.subr.bf16.mxu0 0
        %2120 = vmatpush1.bf16.msra.mxu0 0
        %2121 = vmatprep.subr.bf16.mxu0 0
        %2122 = vmatpush1.bf16.msra.mxu0 0
        %2123 = vmatprep.subr.bf16.mxu0 0
        %2124 = vmatpush1.bf16.msra.mxu0 0
        %2125 = vmatprep.subr.bf16.mxu0 0
        %2126 = vmatpush1.bf16.msra.mxu0 0
        %2127 = vmatprep.subr.bf16.mxu0 0
        %2128 = vmatpush1.bf16.msra.mxu0 %v2109
        %2129 = vmatprep.subr.bf16.mxu0 0
        %2130 = vmatpush1.bf16.msra.mxu0 %v2108
        %2131 = vmatprep.subr.bf16.mxu0 0
        %2132 = vmatpush2.bf16.msra.mxu0 0
        %2133 = vmatprep.subr.bf16.mxu0 0
        %2134 = vmatpush2.bf16.msra.mxu0 0
        %2135 = vmatprep.subr.bf16.mxu0 0
        %2136 = vmatpush2.bf16.msra.mxu0 0
        %2137 = vmatprep.subr.bf16.mxu0 0
        %2138 = vmatpush2.bf16.msra.mxu0 0
        %2139 = vmatprep.subr.bf16.mxu0 0
        %2140 = vmatpush2.bf16.msra.mxu0 0
        %2141 = vmatprep.subr.bf16.mxu0 0
        %2142 = vmatpush2.bf16.msra.mxu0 0
        %2143 = vmatprep.subr.bf16.mxu0 0
        %2144 = vmatpush2.bf16.msra.mxu0 0
        %2145 = vmatprep.subr.bf16.mxu0 0
        %2146 = vmatpush2.bf16.msra.mxu0 0
        %2147 = vmatprep.mubr.bf16.mxu0 0
        %2148 = vmatmul.mubr.bf16.gmra.mxu0 %v2113
        %v2149 = vpop.f32.mrf.mxu0
        %v2150 = vadd.f32 %v2099, %v2149
        %v2151 = vpop.f32.mrf.mxu0
        %v2152 = vpop.f32.mrf.mxu0
        %v2153 = vpop.f32.mrf.mxu0
        %2154 = vdwg.mxu0
        %v2155 = vmul.f32 %v2150, 0.5
        %v2156 = vmul.f32 %v2150, 0.044715
        %v2157 = vmul.f32 %v2156, %v2150
        %v2158 = vmul.f32 %v2157, %v2150
        %v2159 = vadd.f32 %v2150, %v2158
        %v2160 = vmul.f32 %v2159, 0.7978846
        %v2161 = vtanh.pop %v2160
        %v2162 = vadd.f32 %v2161, 1.0
        %v2163 = vmul.f32 %v2155, %v2162
        %v2164 = vlaneseq
        %v2165 = vshrl.u32 %v2164, 7
        %vm2166 = vcmp.eq.s32.totalorder %v2165, 0
        %vm2167 = vcmp.eq.s32.totalorder %v2165, 7
        %v2168 = vrot.slane %v2163, 7
        %v2169 = vsel %vm2166, 1, 0
        %vm2170 = vcmp.eq.s32.totalorder %v2169, 1
        %v2171 = vsel %vm2170, 0.0, %v2168
        %v2172 = vrot.slane %v2163, 1
        %v2173 = vsel %vm2167, 1, 0
        %vm2174 = vcmp.eq.s32.totalorder %v2173, 1
        %v2175 = vsel %vm2174, 0.0, %v2172
        %v2176 = vld [vmem:[#allocation15 + $0x1] sm:$0x1]
        %v2177 = vlaneseq
        %v2178 = vshrl.u32 %v2177, 7
        %v2179 = vsub.s32 0, %v2178
        %v2180 = vrot.slane %v2176, %v2179
        %v2181 = vmul.f32 %v2171, %v2180
        %v2182 = vld [vmem:[#allocation15 + $0x2] sm:$0x1]
        %v2183 = vlaneseq
        %v2184 = vshrl.u32 %v2183, 7
        %v2185 = vsub.s32 0, %v2184
        %v2186 = vrot.slane %v2182, %v2185
        %v2187 = vmul.f32 %v2163, %v2186
        %v2188 = vadd.f32 %v2181, %v2187
        %v2189 = vld [vmem:[#allocation15 + $0x3] sm:$0x1]
        %v2190 = vlaneseq
        %v2191 = vshrl.u32 %v2190, 7
        %v2192 = vsub.s32 0, %v2191
        %v2193 = vrot.slane %v2189, %v2192
        %v2194 = vmul.f32 %v2175, %v2193
        %v2195 = vadd.f32 %v2188, %v2194
        %v2196 = vld [vmem:[#allocation15 + $0x4] sm:$0x1]
        %v2197 = vlaneseq
        %v2198 = vshrl.u32 %v2197, 7
        %v2199 = vsub.s32 0, %v2198
        %v2200 = vrot.slane %v2196, %v2199
        %v2201 = vmul.f32 %v2195, %v2200
        %v2202 = vld [vmem:[#allocation15 + $0x5] sm:$0x1]
        %v2203 = vlaneseq
        %v2204 = vshrl.u32 %v2203, 7
        %v2205 = vsub.s32 0, %v2204
        %v2206 = vrot.slane %v2202, %v2205
        %v2207 = vadd.f32 %v2201, %v2206
        %v2208 = vmul.f32 %v2207, 0.5
        %v2209 = vmul.f32 %v2207, 0.044715
        %v2210 = vmul.f32 %v2209, %v2207
        %v2211 = vmul.f32 %v2210, %v2207
        %v2212 = vadd.f32 %v2207, %v2211
        %v2213 = vmul.f32 %v2212, 0.7978846
        %v2214 = vtanh.pop %v2213
        %v2215 = vadd.f32 %v2214, 1.0
        %v2216 = vmul.f32 %v2208, %v2215
        %v2217 = vpack.c.bf16 %v2216, %v2216
        %v2218 = vld [vmem:[%s7] sm:$0xf]
        %v2219 = vld [vmem:[%s7 + $0x4] sm:$0xf]
        %v2220 = vld [vmem:[%s7 + $0x8] sm:$0xf]
        %v2221 = vld [vmem:[%s7 + $0xc] sm:$0xf]
        %v2222 = vld [vmem:[%s7 + $0x10] sm:$0xf]
        %v2223 = vld [vmem:[%s7 + $0x14] sm:$0xf]
        %v2224 = vld [vmem:[%s7 + $0x18] sm:$0xf]
        %v2225 = vld [vmem:[%s7 + $0x1c] sm:$0xf]
        %v2226 = vld [vmem:[#allocation13 + $0x7] sm:$0x1]
        %v2227 = vlaneseq
        %v2228 = vshrl.u32 %v2227, 7
        %v2229 = vsub.s32 0, %v2228
        %v2230 = vrot.slane %v2226, %v2229
        %v2239 = vunpack.c.l.b16 %v2218
        %v2240 = vunpack.c.l.b16 %v2219
        %v2241 = vunpack.c.l.b16 %v2220
        %v2242 = vunpack.c.l.b16 %v2221
        %v2243 = vunpack.c.l.b16 %v2222
        %v2244 = vunpack.c.l.b16 %v2223
        %v2245 = vunpack.c.l.b16 %v2224
        %v2246 = vunpack.c.l.b16 %v2225
        %v2247 = vpack.c.b16 %v2240, %v2239
        %v2248 = vpack.c.b16 %v2242, %v2241
        %v2249 = vpack.c.b16 %v2244, %v2243
        %v2250 = vpack.c.b16 %v2246, %v2245
        %vm2255 = vcmask 523264
        %v2257 = vsel %vm2255, %v2217, 0
        %2259 = vmatprep.subr.bf16.mxu0 0
        %2260 = vmatpush1.bf16.msra.mxu0 0
        %2261 = vmatprep.subr.bf16.mxu0 0
        %2262 = vmatpush1.bf16.msra.mxu0 0
        %2263 = vmatprep.subr.bf16.mxu0 0
        %2264 = vmatpush1.bf16.msra.mxu0 0
        %2265 = vmatprep.subr.bf16.mxu0 0
        %2266 = vmatpush1.bf16.msra.mxu0 0
        %2267 = vmatprep.subr.bf16.mxu0 0
        %2268 = vmatpush1.bf16.msra.mxu0 %v2250
        %2269 = vmatprep.subr.bf16.mxu0 0
        %2270 = vmatpush1.bf16.msra.mxu0 %v2249
        %2271 = vmatprep.subr.bf16.mxu0 0
        %2272 = vmatpush1.bf16.msra.mxu0 %v2248
        %2273 = vmatprep.subr.bf16.mxu0 0
        %2274 = vmatpush1.bf16.msra.mxu0 %v2247
        %2275 = vmatprep.subr.bf16.mxu0 0
        %2276 = vmatpush2.bf16.msra.mxu0 0
        %2277 = vmatprep.subr.bf16.mxu0 0
        %2278 = vmatpush2.bf16.msra.mxu0 0
        %2279 = vmatprep.subr.bf16.mxu0 0
        %2280 = vmatpush2.bf16.msra.mxu0 0
        %2281 = vmatprep.subr.bf16.mxu0 0
        %2282 = vmatpush2.bf16.msra.mxu0 0
        %2283 = vmatprep.subr.bf16.mxu0 0
        %2284 = vmatpush2.bf16.msra.mxu0 0
        %2285 = vmatprep.subr.bf16.mxu0 0
        %2286 = vmatpush2.bf16.msra.mxu0 0
        %2287 = vmatprep.subr.bf16.mxu0 0
        %2288 = vmatpush2.bf16.msra.mxu0 0
        %2289 = vmatprep.subr.bf16.mxu0 0
        %2290 = vmatpush2.bf16.msra.mxu0 0
        %2291 = vmatprep.mubr.bf16.mxu0 0
        %2292 = vmatmul.mubr.bf16.gmra.mxu0 %v2257
        %v2293 = vpop.f32.mrf.mxu0
        %v2294 = vadd.f32 %v2230, %v2293
        %v2295 = vpop.f32.mrf.mxu0
        %v2296 = vpop.f32.mrf.mxu0
        %v2297 = vpop.f32.mrf.mxu0
        %2298 = vdwg.mxu0
        %v2299 = vadd.f32 %v2294, %v2089
        %v2300 = vld [vmem:[#allocation13 + $0x8] sm:$0x1]
        %v2301 = vld [vmem:[#allocation13 + $0x9] sm:$0x1]
        %v2302 = vsel %vm511, %v2299, 0.0
        %2303 = vadd.xlane.f32.xlu0 %v2302
        %v2304 = vpop.xlane.xlu0 %2303
        %v2305 = vmul.f32 %v2299, %v2299
        %v2306 = vsel %vm511, %v2305, 0.0
        %2307 = vadd.xlane.f32.xlu0 %v2306
        %v2308 = vpop.xlane.xlu0 %2307
        %v2309 = vmul.f32 %v2304, 0.03125
        %v2310 = vmul.f32 %v2308, 0.03125
        %v2311 = vmul.f32 %v2309, %v2309
        %v2312 = vsub.f32 %v2310, %v2311
        %v2313 = vsub.f32 %v2299, %v2309
        %v2314 = vadd.f32 %v2312, 1e-05
        %v2315 = vrsqrt.pop %v2314
        %v2316 = vmul.f32 %v2313, %v2315
        %v2317 = vlaneseq
        %v2318 = vshrl.u32 %v2317, 7
        %v2319 = vsub.s32 0, %v2318
        %v2320 = vrot.slane %v2300, %v2319
        %v2321 = vmul.f32 %v2316, %v2320
        %v2322 = vlaneseq
        %v2323 = vshrl.u32 %v2322, 7
        %v2324 = vsub.s32 0, %v2323
        %v2325 = vrot.slane %v2301, %v2324
        %v2326 = vadd.f32 %v2321, %v2325
        %v2327 = vpack.c.bf16 %v2326, %v2326
        %v2328 = vld [vmem:[#allocation12] sm:$0xf]
        %v2329 = vld [vmem:[#allocation12 + $0x4] sm:$0xf]
        %v2330 = vld [vmem:[#allocation12 + $0x8] sm:$0xf]
        %v2331 = vld [vmem:[#allocation12 + $0xc] sm:$0xf]
        %v2332 = vld [vmem:[#allocation13 + $0xa] sm:$0x1]
        %v2333 = vlaneseq
        %v2334 = vshrl.u32 %v2333, 7
        %v2335 = vsub.s32 0, %v2334
        %v2336 = vrot.slane %v2332, %v2335
        %v2341 = vunpack.c.l.b16 %v2328
        %v2342 = vunpack.c.l.b16 %v2329
        %v2343 = vunpack.c.l.b16 %v2330
        %v2344 = vunpack.c.l.b16 %v2331
        %v2345 = vpack.c.b16 %v2342, %v2341
        %v2346 = vpack.c.b16 %v2344, %v2343
        %v2350 = vsel %vm511, %v2327, 0
        %2352 = vmatprep.subr.bf16.mxu0 0
        %2353 = vmatpush1.bf16.msra.mxu0 0
        %2354 = vmatprep.subr.bf16.mxu0 0
        %2355 = vmatpush1.bf16.msra.mxu0 0
        %2356 = vmatprep.subr.bf16.mxu0 0
        %2357 = vmatpush1.bf16.msra.mxu0 0
        %2358 = vmatprep.subr.bf16.mxu0 0
        %2359 = vmatpush1.bf16.msra.mxu0 0
        %2360 = vmatprep.subr.bf16.mxu0 0
        %2361 = vmatpush1.bf16.msra.mxu0 0
        %2362 = vmatprep.subr.bf16.mxu0 0
        %2363 = vmatpush1.bf16.msra.mxu0 0
        %2364 = vmatprep.subr.bf16.mxu0 0
        %2365 = vmatpush1.bf16.msra.mxu0 %v2346
        %2366 = vmatprep.subr.bf16.mxu0 0
        %2367 = vmatpush1.bf16.msra.mxu0 %v2345
        %2368 = vmatprep.subr.bf16.mxu0 0
        %2369 = vmatpush2.bf16.msra.mxu0 0
        %2370 = vmatprep.subr.bf16.mxu0 0
        %2371 = vmatpush2.bf16.msra.mxu0 0
        %2372 = vmatprep.subr.bf16.mxu0 0
        %2373 = vmatpush2.bf16.msra.mxu0 0
        %2374 = vmatprep.subr.bf16.mxu0 0
        %2375 = vmatpush2.bf16.msra.mxu0 0
        %2376 = vmatprep.subr.bf16.mxu0 0
        %2377 = vmatpush2.bf16.msra.mxu0 0
        %2378 = vmatprep.subr.bf16.mxu0 0
        %2379 = vmatpush2.bf16.msra.mxu0 0
        %2380 = vmatprep.subr.bf16.mxu0 0
        %2381 = vmatpush2.bf16.msra.mxu0 0
        %2382 = vmatprep.subr.bf16.mxu0 0
        %2383 = vmatpush2.bf16.msra.mxu0 0
        %2384 = vmatprep.mubr.bf16.mxu0 0
        %2385 = vmatmul.mubr.bf16.gmra.mxu0 %v2350
        %v2386 = vpop.f32.mrf.mxu0
        %v2387 = vadd.f32 %v2336, %v2386
        %v2388 = vpop.f32.mrf.mxu0
        %v2389 = vpop.f32.mrf.mxu0
        %v2390 = vpop.f32.mrf.mxu0
        %2391 = vdwg.mxu0
        %v2392 = vmul.f32 %v2387, 0.5
        %v2393 = vmul.f32 %v2387, 0.044715
        %v2394 = vmul.f32 %v2393, %v2387
        %v2395 = vmul.f32 %v2394, %v2387
        %v2396 = vadd.f32 %v2387, %v2395
        %v2397 = vmul.f32 %v2396, 0.7978846
        %v2398 = vtanh.pop %v2397
        %v2399 = vadd.f32 %v2398, 1.0
        %v2400 = vmul.f32 %v2392, %v2399
        %v2401 = vpack.c.bf16 %v2400, %v2400
        %v2402 = vld [vmem:[%s9] sm:$0xf]
        %v2403 = vld [vmem:[%s9 + $0x4] sm:$0xf]
        %v2404 = vld [vmem:[%s9 + $0x8] sm:$0xf]
        %v2405 = vld [vmem:[%s9 + $0xc] sm:$0xf]
        %v2406 = vld [vmem:[#allocation13 + $0xb] sm:$0x1]
        %v2407 = vlaneseq
        %v2408 = vshrl.u32 %v2407, 7
        %v2409 = vsub.s32 0, %v2408
        %v2410 = vrot.slane %v2406, %v2409
        %v2415 = vunpack.c.l.b16 %v2402
        %v2416 = vunpack.c.l.b16 %v2403
        %v2417 = vunpack.c.l.b16 %v2404
        %v2418 = vunpack.c.l.b16 %v2405
        %v2419 = vpack.c.b16 %v2416, %v2415
        %v2420 = vpack.c.b16 %v2418, %v2417
        %v2424 = vsel %vm511, %v2401, 0
        %2426 = vmatprep.subr.bf16.mxu0 0
        %2427 = vmatpush1.bf16.msra.mxu0 0
        %2428 = vmatprep.subr.bf16.mxu0 0
        %2429 = vmatpush1.bf16.msra.mxu0 0
        %2430 = vmatprep.subr.bf16.mxu0 0
        %2431 = vmatpush1.bf16.msra.mxu0 0
        %2432 = vmatprep.subr.bf16.mxu0 0
        %2433 = vmatpush1.bf16.msra.mxu0 0
        %2434 = vmatprep.subr.bf16.mxu0 0
        %2435 = vmatpush1.bf16.msra.mxu0 0
        %2436 = vmatprep.subr.bf16.mxu0 0
        %2437 = vmatpush1.bf16.msra.mxu0 0
        %2438 = vmatprep.subr.bf16.mxu0 0
        %2439 = vmatpush1.bf16.msra.mxu0 %v2420
        %2440 = vmatprep.subr.bf16.mxu0 0
        %2441 = vmatpush1.bf16.msra.mxu0 %v2419
        %2442 = vmatprep.subr.bf16.mxu0 0
        %2443 = vmatpush2.bf16.msra.mxu0 0
        %2444 = vmatprep.subr.bf16.mxu0 0
        %2445 = vmatpush2.bf16.msra.mxu0 0
        %2446 = vmatprep.subr.bf16.mxu0 0
        %2447 = vmatpush2.bf16.msra.mxu0 0
        %2448 = vmatprep.subr.bf16.mxu0 0
        %2449 = vmatpush2.bf16.msra.mxu0 0
        %2450 = vmatprep.subr.bf16.mxu0 0
        %2451 = vmatpush2.bf16.msra.mxu0 0
        %2452 = vmatprep.subr.bf16.mxu0 0
        %2453 = vmatpush2.bf16.msra.mxu0 0
        %2454 = vmatprep.subr.bf16.mxu0 0
        %2455 = vmatpush2.bf16.msra.mxu0 0
        %2456 = vmatprep.subr.bf16.mxu0 0
        %2457 = vmatpush2.bf16.msra.mxu0 0
        %2458 = vmatprep.mubr.bf16.mxu0 0
        %2459 = vmatmul.mubr.bf16.gmra.mxu0 %v2424
        %v2460 = vpop.f32.mrf.mxu0
        %v2461 = vadd.f32 %v2410, %v2460
        %v2462 = vpop.f32.mrf.mxu0
        %v2463 = vpop.f32.mrf.mxu0
        %v2464 = vpop.f32.mrf.mxu0
        %2465 = vdwg.mxu0
        %v2466 = vmul.f32 %v2461, 0.5
        %v2467 = vadd.f32 %v2466, %v2299
        %2468 = vst.msk [vmem:[%s502] sm:$0xff] %vm511, %v2467
        %s2469 = sand.u32 %s295, 1
        %s2470 = scalar_lea.sflag [#allocation6], %s2469
        %s2471 = sand.u32 %s295, 1
        %s2472 = smul.addr %s2471, 8
        %s2473 = scalar_lea.vmem [#allocation16], %s2472
        // Predicated region
        $region97: #{tpu_custom_call.1} parent=67 // pred_check
          %p2474 = pneg %p305
        $region98: #{tpu_custom_call.1} parent=67 // pred_check_branch
          %2476 = sbr.rel (%p2474) target = $region100
        $region99: #{tpu_custom_call.1} parent=67 // pred_region
          %s2478 = ssub.s32 128, 128
          %2479 = vsyncadd %s2470, %s2478
          %s2480 = smul.addr %s30, 128
          %s2481 = scalar_lea.hbm %s12, %s2480
          %s2483 = sshll.u32 %s2473, 4
          %s2484 = int_to_ptr.vmem [resolvable:$true] %s2483
          %2486 = dma.vmem_to_hbm [thread:$0]  %s2484, 128, %s2481, %s2470
        $region100: #{tpu_custom_call.1} parent=67 // pred_fallthru
          _
      $region68: #{tpu_custom_call.1} parent=5 // pred_fallthru
        _
      %p2487 = scmp.le.s32.totalorder 2, %s25
      // Predicated region
      $region101: #{tpu_custom_call.1} parent=5 // pred_check
        %p2488 = pneg %p2487
      $region102: #{tpu_custom_call.1} parent=5 // pred_check_branch
        %2490 = sbr.rel (%p2488) target = $region104
      $region103: #{tpu_custom_call.1} parent=5 // pred_region
        %s2491 = ssub.s32 %s25, 2
        // Predicated region
        $region105: #{tpu_custom_call.1} parent=103 // pred_check
          %p2492 = pneg %p311
        $region106: #{tpu_custom_call.1} parent=103 // pred_check_branch
          %2494 = sbr.rel (%p2492) target = $region108
        $region107: #{tpu_custom_call.1} parent=103 // pred_region
          %s2495 = sand.u32 %s296, 1
          %s2496 = scalar_lea.sflag [#allocation6], %s2495
          %s2497 = sand.u32 %s296, 1
          %s2498 = smul.addr %s2497, 8
          %s2499 = scalar_lea.vmem [#allocation16], %s2498
          %2500 = dma.done %s2496, 128
        $region108: #{tpu_custom_call.1} parent=103 // pred_fallthru
          _
      $region104: #{tpu_custom_call.1} parent=5 // pred_fallthru
        _
    $region6: #{tpu_custom_call.1} parent=1 // loop_footer
      %s29 = sadd.s32 1, %s25
    $region7: #{tpu_custom_call.1} parent=1 // loop_footer_branch
      %24 = sbr.rel target = $region3
    $region8: #{tpu_custom_call.1} parent=1 // loop_exit
      _
    %2501 = vsyncpa [#allocation5], 1
    %s2502 = scalar_lea.sflag [#allocation5], 1
    %2503 = vsyncpa %s2502, 1
    %2504 = vsyncpa [#allocation8], 1
    %2505 = vsyncpa [#allocation11], 1
    %2506 = vsyncpa [#allocation14], 1
    %2507 = vsyncpa [#allocation6], 1
    %s2508 = scalar_lea.sflag [#allocation6], 1
    %2509 = vsyncpa %s2508, 1

</llo_original>
